<compile_context>
chip_gen: v5e
topology: v5e:2x2
jax: 0.10.0
libtpu: 0.0.40
codegen_flags: <defaults>
</compile_context>

<pallas_src>
import functools
import math

import jax
import jax.numpy as jnp
from jax.experimental import pallas as pl
from jax.experimental.pallas import tpu as pltpu


# ------------------------- in-kernel math helpers -------------------------- #

def _mm_nt(a, w):
    """(M, K) x (N, K) -> (M, N); operands already cast, f32 accumulation."""
    return jax.lax.dot_general(a, w, (((1,), (1,)), ((), ())),
                               preferred_element_type=jnp.float32)


def _mm_nn(a, b):
    """(M, K) x (K, N) -> (M, N); operands already cast, f32 accumulation."""
    return jax.lax.dot_general(a, b, (((1,), (0,)), ((), ())),
                               preferred_element_type=jnp.float32)


def _ln(x, g, b):
    """LayerNorm over the last dim, f32 statistics (nn.LayerNorm, eps=1e-5)."""
    mu = jnp.mean(x, axis=-1, keepdims=True)
    xc = x - mu
    var = jnp.mean(xc * xc, axis=-1, keepdims=True)
    return xc * jax.lax.rsqrt(var + 1e-5) * g + b


def _mha_core(q, k, v, wo, bo, n_head):
    """Multi-head attention on ALREADY-PROJECTED q/k/v.

    q: (Sq, D) f32, k/v: (Sk, D) f32, wo: (D, D) bf16 (PyTorch out x in), bo: (1, D) f32.
    Casts each operand to bf16 exactly once; per-head score/context matmuls use static
    lane slices; the out-projection is one (Sq, D) x (D, D) matmul on the re-assembled
    context (== torch concat-heads @ Wo^T + bo).
    """
    D = q.shape[-1]
    dh = D // n_head
    scale = 1.0 / math.sqrt(dh)
    qb = q.astype(jnp.bfloat16)
    kb = k.astype(jnp.bfloat16)
    vb = v.astype(jnp.bfloat16)
    ctx = []
    for h in range(n_head):                                   # n_head small, static
        sl = slice(h * dh, (h + 1) * dh)
        s = _mm_nt(qb[:, sl], kb[:, sl]) * scale              # (Sq, Sk) f32
        m = jnp.max(s, axis=-1, keepdims=True)
        e = jnp.exp(s - m)                                    # f32 softmax stats
        p = e * pl.reciprocal(jnp.sum(e, axis=-1, keepdims=True), approx=True)
        ctx.append(_mm_nn(p.astype(jnp.bfloat16), vb[:, sl])) # (Sq, dh) f32
    c = jnp.concatenate(ctx, axis=-1).astype(jnp.bfloat16)    # (Sq, D)
    return _mm_nt(c, wo) + bo


# ----------------------------- Pallas kernels ------------------------------ #

def _linear_kernel(x_ref, w_ref, b_ref, o_ref, *, activation):
    y = _mm_nt(x_ref[...].astype(jnp.bfloat16), w_ref[...]) + b_ref[...]
    if activation == "relu":
        y = jnp.maximum(y, 0.0)
    o_ref[...] = y


def _encoder_stack_kernel(x_ref, pos_ref, w_attn_ref, w_ffn_ref, p_ref, b1_ref,
                          o_ref, *, n_head, d_ff):
    """One post-norm TransformerEncoderLayer; grid = (batch, layer).  The residual
    stream lives in the OUTPUT block (constant index across the layer axis)."""
    l = pl.program_id(1)

    @pl.when(l == 0)
    def _():
        o_ref[...] = x_ref[...]

    x = o_ref[0]                                  # (S, D) f32 residual stream
    D = x.shape[-1]
    pos = pos_ref[...]
    w = w_attn_ref[0]                             # (4D, D) bf16: [Wq; Wk; Wv; Wo]
    wf = w_ffn_ref[0]                             # (2*dff, D) bf16: [W1; W2^T]
    p = p_ref[0]                                  # (9, D) f32 biases + LN params

    # --- self-attention (DETR: q = k = src + pos, v = src), stacked q/k proj ---
    qk_in = (x + pos).astype(jnp.bfloat16)        # cast once (hoisted)
    xb = x.astype(jnp.bfloat16)
    qk = _mm_nt(qk_in, w[:2 * D])                 # (S, 2D) f32
    q = qk[:, :D] + p[0:1]
    k = qk[:, D:] + p[1:2]
    v = _mm_nt(xb, w[2 * D:3 * D]) + p[2:3]
    attn = _mha_core(q, k, v, w[3 * D:], p[3:4], n_head)
    x = _ln(x + attn, p[4:5], p[5:6])

    # --- FFN (relu) ---
    h = jnp.maximum(_mm_nt(x.astype(jnp.bfloat16), wf[:d_ff]) + b1_ref[0], 0.0)
    ffn = _mm_nn(h.astype(jnp.bfloat16), wf[d_ff:]) + p[8:9]
    o_ref[0] = _ln(x + ffn, p[6:7], p[7:8])


def _decoder_stack_kernel(tgt_ref, mem_ref, pos_ref, qpos_ref,
                          w_attn_ref, w_ffn_ref, p_ref, b1_ref,
                          o_ref, *, n_head, d_ff):
    """One post-norm TransformerDecoderLayer (self-attn + cross-attn + FFN);
    grid = (batch, layer), target stream resident in the output block."""
    l = pl.program_id(1)

    @pl.when(l == 0)
    def _():
        o_ref[...] = tgt_ref[...]

    t = o_ref[0]                                  # (St, D) f32
    D = t.shape[-1]
    mem = mem_ref[0]                              # (Sm, D) f32
    pos = pos_ref[...]
    qpos = qpos_ref[...]
    w = w_attn_ref[0]                             # (8D, D) bf16
    wf = w_ffn_ref[0]                             # (2*dff, D) bf16
    p = p_ref[0]                                  # (15, D) f32

    # --- self-attention (q = k = tgt + query_pos, v = tgt), stacked q/k proj ---
    qk_in = (t + qpos).astype(jnp.bfloat16)
    tb = t.astype(jnp.bfloat16)
    qk = _mm_nt(qk_in, w[:2 * D])
    q = qk[:, :D] + p[0:1]
    k = qk[:, D:] + p[1:2]
    v = _mm_nt(tb, w[2 * D:3 * D]) + p[2:3]
    a = _mha_core(q, k, v, w[3 * D:4 * D], p[3:4], n_head)
    t = _ln(t + a, p[8:9], p[9:10])

    # --- cross-attention (q = tgt + query_pos, k = mem + pos, v = mem) ---
    q = _mm_nt((t + qpos).astype(jnp.bfloat16), w[4 * D:5 * D]) + p[4:5]
    k = _mm_nt((mem + pos).astype(jnp.bfloat16), w[5 * D:6 * D]) + p[5:6]
    v = _mm_nt(mem.astype(jnp.bfloat16), w[6 * D:7 * D]) + p[6:7]
    a = _mha_core(q, k, v, w[7 * D:], p[7:8], n_head)
    t = _ln(t + a, p[10:11], p[11:12])

    # --- FFN (relu) ---
    h = jnp.maximum(_mm_nt(t.astype(jnp.bfloat16), wf[:d_ff]) + b1_ref[0], 0.0)
    f = _mm_nn(h.astype(jnp.bfloat16), wf[d_ff:]) + p[14:15]
    o_ref[0] = _ln(t + f, p[12:13], p[13:14])


# ------------------------------ host wrappers ------------------------------ #

def _nbytes(*arrs):
    return int(sum(int(a.size) * a.dtype.itemsize for a in arrs))


def _vmem_limit(working_bytes):
    """Explicit scoped-VMEM limit (fits v7x's 64 MiB): 2x double-buffering + headroom."""
    return int(min(max(2 * int(working_bytes) + (8 << 20), 16 << 20), 48 << 20))


def _pick_tile(M, in_dim, out_dim, budget=40 << 20):
    """Largest row-tile that (a) divides M, (b) obeys the (8,128) rule,
    (c) fits `budget` with double-buffered f32 in/out blocks + resident weights."""
    if M % 8 != 0:
        return M
    per_row = 2 * 4 * (in_dim + out_dim)              # double-buffered in + out, f32
    w_bytes = in_dim * out_dim * 2 + out_dim * 4
    cap = max((budget - w_bytes) // per_row, 8)
    for cand in (8192, 4096, 2048, 1024, 512, 256, 128, 64, 32, 16, 8):
        if cand <= cap and cand <= M and M % cand == 0:
            return cand
    return M


def linear(x, W, b, activation=None):
    """Tiled Pallas linear for the (potentially large-M) vision path.
    x: (..., in), W: (out, in) bf16 [PyTorch layout], b: (out,) f32."""
    in_dim = x.shape[-1]
    out_dim = W.shape[0]
    lead = x.shape[:-1]
    x2 = x.reshape(-1, in_dim).astype(jnp.float32)
    M = x2.shape[0]
    tm = _pick_tile(M, in_dim, out_dim)
    b2 = b.reshape(1, out_dim).astype(jnp.float32)
    w_bytes = _nbytes(W) + out_dim * 4
    cost = pl.CostEstimate(
        flops=int(2 * M * in_dim * out_dim),
        transcendentals=0,
        bytes_accessed=int(M * in_dim * 4 + w_bytes + M * out_dim * 4))
    out = pl.pallas_call(
        functools.partial(_linear_kernel, activation=activation),
        out_shape=jax.ShapeDtypeStruct((M, out_dim), jnp.float32),
        grid=(M // tm,),
        in_specs=[
            pl.BlockSpec((tm, in_dim), lambda i: (i, 0)),
            pl.BlockSpec((out_dim, in_dim), lambda i: (0, 0)),
            pl.BlockSpec((1, out_dim), lambda i: (0, 0)),
        ],
        out_specs=pl.BlockSpec((tm, out_dim), lambda i: (i, 0)),
        compiler_params=pltpu.CompilerParams(
            dimension_semantics=("parallel",),
            vmem_limit_bytes=_vmem_limit(w_bytes + tm * (in_dim + out_dim) * 4)),
        cost_estimate=cost,
    )(x2, W, b2)
    return out.reshape(lead + (out_dim,))


def encoder_stack(x, pos, sp, n_head):
    """Whole stack of post-norm encoder layers in ONE pallas_call.
    grid=(B, n_layers): batch 'parallel' (v7x 2-TC split), layer 'arbitrary'."""
    B, S, D = x.shape
    L, _, dff = sp["b1"].shape
    w_bytes = _nbytes(sp["w_attn"], sp["w_ffn"], sp["p_vec"], sp["b1"])
    act_bytes = (2 * B * S * D + S * D) * 4
    flops = B * L * (8 * S * D * D + 4 * S * S * D + 4 * S * D * dff)
    cost = pl.CostEstimate(
        flops=int(flops),
        transcendentals=int(B * L * (n_head * S * S + 2 * S)),
        bytes_accessed=int(w_bytes + act_bytes))
    return pl.pallas_call(
        functools.partial(_encoder_stack_kernel, n_head=n_head, d_ff=dff),
        out_shape=jax.ShapeDtypeStruct((B, S, D), jnp.float32),
        grid=(B, L),
        in_specs=[
            pl.BlockSpec((1, S, D), lambda b, l: (b, 0, 0)),
            pl.BlockSpec((S, D), lambda b, l: (0, 0)),
            pl.BlockSpec((1, 4 * D, D), lambda b, l: (l, 0, 0)),
            pl.BlockSpec((1, 2 * dff, D), lambda b, l: (l, 0, 0)),
            pl.BlockSpec((1, 9, D), lambda b, l: (l, 0, 0)),
            pl.BlockSpec((1, 1, dff), lambda b, l: (l, 0, 0)),
        ],
        out_specs=pl.BlockSpec((1, S, D), lambda b, l: (b, 0, 0)),
        compiler_params=pltpu.CompilerParams(
            dimension_semantics=("parallel", "arbitrary"),
            vmem_limit_bytes=_vmem_limit(w_bytes + act_bytes)),
        cost_estimate=cost,
    )(x.astype(jnp.float32), pos.astype(jnp.float32),
      sp["w_attn"], sp["w_ffn"], sp["p_vec"], sp["b1"])


def decoder_stack(tgt, memory, pos, query_pos, sp, n_head):
    """Whole stack of post-norm decoder layers (self + cross + FFN) in ONE pallas_call."""
    B, St, D = tgt.shape
    Sm = memory.shape[1]
    L, _, dff = sp["b1"].shape
    w_bytes = _nbytes(sp["w_attn"], sp["w_ffn"], sp["p_vec"], sp["b1"])
    act_bytes = (2 * B * St * D + B * Sm * D + Sm * D + St * D) * 4
    flops = B * L * (8 * St * D * D + 4 * St * St * D
                     + 4 * St * D * D + 4 * Sm * D * D + 4 * St * Sm * D
                     + 4 * St * D * dff)
    cost = pl.CostEstimate(
        flops=int(flops),
        transcendentals=int(B * L * (n_head * (St * St + St * Sm) + 3 * St)),
        bytes_accessed=int(w_bytes + act_bytes))
    return pl.pallas_call(
        functools.partial(_decoder_stack_kernel, n_head=n_head, d_ff=dff),
        out_shape=jax.ShapeDtypeStruct((B, St, D), jnp.float32),
        grid=(B, L),
        in_specs=[
            pl.BlockSpec((1, St, D), lambda b, l: (b, 0, 0)),
            pl.BlockSpec((1, Sm, D), lambda b, l: (b, 0, 0)),
            pl.BlockSpec((Sm, D), lambda b, l: (0, 0)),
            pl.BlockSpec((St, D), lambda b, l: (0, 0)),
            pl.BlockSpec((1, 8 * D, D), lambda b, l: (l, 0, 0)),
            pl.BlockSpec((1, 2 * dff, D), lambda b, l: (l, 0, 0)),
            pl.BlockSpec((1, 15, D), lambda b, l: (l, 0, 0)),
            pl.BlockSpec((1, 1, dff), lambda b, l: (l, 0, 0)),
        ],
        out_specs=pl.BlockSpec((1, St, D), lambda b, l: (b, 0, 0)),
        compiler_params=pltpu.CompilerParams(
            dimension_semantics=("parallel", "arbitrary"),
            vmem_limit_bytes=_vmem_limit(w_bytes + act_bytes)),
        cost_estimate=cost,
    )(tgt.astype(jnp.float32), memory.astype(jnp.float32),
      pos.astype(jnp.float32), query_pos.astype(jnp.float32),
      sp["w_attn"], sp["w_ffn"], sp["p_vec"], sp["b1"])


# ------------------------------ pos embeddings ------------------------------ #

def position_embedding_sine_2d(H, W, num_pos_feats, temperature=10000.0):
    """DETR PositionEmbeddingSine (normalize=True), all-valid mask -> (H, W, 2*npf)."""
    eps = 1e-6
    scale = 2 * math.pi
    y_embed = jnp.broadcast_to(jnp.arange(1, H + 1, dtype=jnp.float32)[:, None], (H, W))
    x_embed = jnp.broadcast_to(jnp.arange(1, W + 1, dtype=jnp.float32)[None, :], (H, W))
    y_embed = y_embed / (y_embed[-1:, :] + eps) * scale
    x_embed = x_embed / (x_embed[:, -1:] + eps) * scale
    dim_t = jnp.arange(num_pos_feats, dtype=jnp.float32)
    dim_t = temperature ** (2.0 * (dim_t // 2) / num_pos_feats)
    pos_x = x_embed[:, :, None] / dim_t
    pos_y = y_embed[:, :, None] / dim_t
    pos_x = jnp.stack([jnp.sin(pos_x[:, :, 0::2]), jnp.cos(pos_x[:, :, 1::2])],
                      axis=3).reshape(H, W, -1)
    pos_y = jnp.stack([jnp.sin(pos_y[:, :, 0::2]), jnp.cos(pos_y[:, :, 1::2])],
                      axis=3).reshape(H, W, -1)
    return jnp.concatenate([pos_y, pos_x], axis=2)            # (H, W, 2*npf)


def position_embedding_sine_1d(L, d):
    pos = jnp.arange(L, dtype=jnp.float32)[:, None]
    dim = jnp.arange(d, dtype=jnp.float32)[None, :]
    div = jnp.power(10000.0, 2.0 * (dim // 2) / d)
    ang = pos / div
    return jnp.where((jnp.arange(d) % 2) == 0, jnp.sin(ang), jnp.cos(ang))   # (L, d)


# ------------------------------ parameter init ----------------------------- #

def _init_linear_f32(key, out_dim, in_dim, scale=0.02):
    kw, kb = jax.random.split(key)
    W = scale * jax.random.normal(kw, (out_dim, in_dim), jnp.float32)
    b = scale * jax.random.normal(kb, (out_dim,), jnp.float32)
    return W, b


def _init_attention(key, d, scale=0.02):
    """Returns (Wq, Wk, Wv, Wo) each (d, d) f32 and (bq, bk, bv, bo) each (d,) f32,
    matching torch.nn.MultiheadAttention's in_proj/out_proj layout."""
    k1, k2, k3, k4 = jax.random.split(key, 4)
    in_w = scale * jax.random.normal(k1, (3 * d, d), jnp.float32)
    in_b = scale * jax.random.normal(k2, (3 * d,), jnp.float32)
    out_w = scale * jax.random.normal(k3, (d, d), jnp.float32)
    out_b = scale * jax.random.normal(k4, (d,), jnp.float32)
    return ((in_w[:d], in_w[d:2 * d], in_w[2 * d:], out_w),
            (in_b[:d], in_b[d:2 * d], in_b[2 * d:], out_b))


def _init_encoder_stack(key, n_layers, d, dff):
    """Per-layer weights packed into 4 stacked slabs (leading layer axis)."""
    w_attn, w_ffn, p_vec, b1s = [], [], [], []
    ones, zeros = jnp.ones((d,), jnp.float32), jnp.zeros((d,), jnp.float32)
    for k in jax.random.split(key, n_layers):
        ka, k1, k2 = jax.random.split(k, 3)
        (wq, wk, wv, wo), (bq, bk, bv, bo) = _init_attention(ka, d)
        W1, b1 = _init_linear_f32(k1, dff, d)
        W2, b2 = _init_linear_f32(k2, d, dff)
        w_attn.append(jnp.concatenate([wq, wk, wv, wo], axis=0))         # (4d, d)
        w_ffn.append(jnp.concatenate([W1, W2.T], axis=0))                # (2dff, d)
        p_vec.append(jnp.stack([bq, bk, bv, bo, ones, zeros, ones, zeros, b2], axis=0))
        b1s.append(b1.reshape(1, dff))
    return dict(
        w_attn=jnp.stack(w_attn).astype(jnp.bfloat16),
        w_ffn=jnp.stack(w_ffn).astype(jnp.bfloat16),
        p_vec=jnp.stack(p_vec).astype(jnp.float32),
        b1=jnp.stack(b1s).astype(jnp.float32))


def _init_decoder_stack(key, n_layers, d, dff):
    w_attn, w_ffn, p_vec, b1s = [], [], [], []
    ones, zeros = jnp.ones((d,), jnp.float32), jnp.zeros((d,), jnp.float32)
    for k in jax.random.split(key, n_layers):
        ks, kc, k1, k2 = jax.random.split(k, 4)
        (swq, swk, swv, swo), (sbq, sbk, sbv, sbo) = _init_attention(ks, d)
        (cwq, cwk, cwv, cwo), (cbq, cbk, cbv, cbo) = _init_attention(kc, d)
        W1, b1 = _init_linear_f32(k1, dff, d)
        W2, b2 = _init_linear_f32(k2, d, dff)
        w_attn.append(jnp.concatenate([swq, swk, swv, swo,
                                       cwq, cwk, cwv, cwo], axis=0))     # (8d, d)
        w_ffn.append(jnp.concatenate([W1, W2.T], axis=0))                # (2dff, d)
        p_vec.append(jnp.stack([sbq, sbk, sbv, sbo, cbq, cbk, cbv, cbo,
                                ones, zeros, ones, zeros, ones, zeros, b2], axis=0))
        b1s.append(b1.reshape(1, dff))
    return dict(
        w_attn=jnp.stack(w_attn).astype(jnp.bfloat16),
        w_ffn=jnp.stack(w_ffn).astype(jnp.bfloat16),
        p_vec=jnp.stack(p_vec).astype(jnp.float32),
        b1=jnp.stack(b1s).astype(jnp.float32))


def init_params(key, cfg):
    d = cfg["d_model"]
    dff = cfg["d_ff"]
    ks = jax.random.split(key, 16)

    betas = jnp.linspace(1e-4, 0.02, cfg["num_diffusion_steps"], dtype=jnp.float32)
    alphas = 1.0 - betas
    alpha_bars = jnp.cumprod(alphas)

    # proprio_proj + input_proprio_proj share their input -> one stacked matmul (jnp).
    d_prop_in = cfg["d_prop"] * cfg["n_frame_stack"]
    Wp1, bp1 = _init_linear_f32(ks[2], d, d_prop_in)
    Wp2, bp2 = _init_linear_f32(ks[6], d, d_prop_in)
    proprio_both = (jnp.concatenate([Wp1, Wp2], axis=0),
                    jnp.concatenate([bp1, bp2], axis=0))

    # Patchify "backbone" conv composed with the 1x1 input_proj (both affine -> exact).
    cpp = 3 * cfg["patch"] * cfg["patch"]
    kb1, kb2, ki1, ki2 = jax.random.split(ks[10], 4)
    Wbb = 0.02 * jax.random.normal(kb1, (cfg["backbone_channels"], cpp), jnp.float32)
    bbb = 0.02 * jax.random.normal(kb2, (cfg["backbone_channels"],), jnp.float32)
    Wip = 0.02 * jax.random.normal(ki1, (d, cfg["backbone_channels"]), jnp.float32)
    bip = 0.02 * jax.random.normal(ki2, (d,), jnp.float32)
    vision_proj = ((Wip @ Wbb).astype(jnp.bfloat16), Wip @ bbb + bip)

    return dict(
        betas=betas, alphas=alphas, alpha_bars=alpha_bars,
        time_embed=0.02 * jax.random.normal(ks[0], (cfg["num_diffusion_steps"], d), jnp.float32),
        cls_embed=0.02 * jax.random.normal(ks[1], (1, d), jnp.float32),
        proprio_both=proprio_both,
        action_proj=_init_linear_f32(ks[3], d, cfg["d_action"]),
        latent_proj=_init_linear_f32(ks[4], 2 * cfg["d_z"], d),
        latent_out_proj=_init_linear_f32(ks[5], d, cfg["d_z"]),
        query_embed=0.02 * jax.random.normal(ks[7], (cfg["chunk_size"], d), jnp.float32),
        noised_action_proj=_init_linear_f32(ks[8], d, cfg["d_action"]),
        additional_pos_embed=0.02 * jax.random.normal(ks[9], (2, d), jnp.float32),
        vision_proj=vision_proj,
        action_head=_init_linear_f32(ks[12], cfg["d_action"], d),
        rep_encoder=_init_encoder_stack(ks[13], cfg["n_rep_layers"], d, dff),
        act_encoder=_init_encoder_stack(ks[14], cfg["n_enc_layers"], d, dff),
        act_decoder=_init_decoder_stack(ks[15], cfg["n_dec_layers"], d, dff),
    )


# --------------------------------- forward --------------------------------- #

def act_forward(params, obs, actions, key, cfg):
    state = obs["state"].astype(jnp.float32)          # (B, d_prop * n_fs)
    rgb = obs["rgb"].astype(jnp.float32)              # (B, num_views, C*n_fs, H, W)
    actions = actions.astype(jnp.float32)
    bs = state.shape[0]
    d = cfg["d_model"]
    n_head = cfg["n_head"]
    d_z = cfg["d_z"]

    # fused proprio_proj + input_proprio_proj (tiny -> plain jnp, one matmul)
    Wb, bb = params["proprio_both"]
    both = state @ Wb.T + bb                           # (B, 2d)
    state_embed = both[:, :d][:, None, :]
    proprio_input = both[:, d:]

    # ---- CVAE representation encoder ----
    cls = jnp.broadcast_to(params["cls_embed"][None], (bs, 1, d))
    Wa, ba = params["action_proj"]
    action_embed = actions @ Wa.T + ba
    x = jnp.concatenate([cls, state_embed, action_embed], axis=1)        # (B, Lr, d)
    pos1d = position_embedding_sine_1d(x.shape[1], d)                    # (Lr, d)
    x = encoder_stack(x, pos1d, params["rep_encoder"], n_head)           # fused stack
    enc_out = x[:, 0]                                                    # (B, d)
    Wl, bl = params["latent_proj"]
    latent_info = enc_out @ Wl.T + bl
    mu = latent_info[:, :d_z]
    logvar = latent_info[:, d_z:]
    std = jnp.exp(logvar / 2.0)
    key, k_eps, k_t, k_noise = jax.random.split(key, 4)
    eps = jax.random.normal(k_eps, std.shape, jnp.float32)
    z = mu + std * eps
    Wlo, blo = params["latent_out_proj"]
    latent_input = z @ Wlo.T + blo                                       # (B, d)

    # ---- vision path (NHWC, all cameras through one fused backbone∘input_proj matmul) ----
    B, num_view, cfs, H, W = rgb.shape
    nfs = cfg["n_frame_stack"]
    ch = cfs // nfs
    p_sz = cfg["patch"]
    Hf, Wf = H // p_sz, W // p_sz
    vis = rgb.reshape(B, num_view, nfs, ch, H, W).transpose(0, 2, 1, 3, 4, 5)
    vis = vis.reshape(B, num_view * nfs, ch, H, W)
    ncam = vis.shape[1]
    patches = vis.reshape(B, ncam, ch, Hf, p_sz, Wf, p_sz)
    patches = patches.transpose(0, 1, 3, 5, 2, 4, 6).reshape(
        B * ncam * Hf * Wf, ch * p_sz * p_sz)
    feat = linear(patches, *params["vision_proj"])                       # Pallas tiled
    # token order matches torch: concat cams along width, flatten H-major -> (h, cam, w)
    feat = feat.reshape(B, ncam, Hf, Wf, d).transpose(0, 2, 1, 3, 4).reshape(
        B, Hf * ncam * Wf, d)

    pos2d = position_embedding_sine_2d(Hf, Wf, d // 2)                   # (Hf, Wf, d)
    pos_cam = jnp.broadcast_to(pos2d[:, None], (Hf, ncam, Wf, d)).reshape(
        Hf * ncam * Wf, d)

    addition = jnp.stack([latent_input, proprio_input], axis=1)          # (B, 2, d)
    src = jnp.concatenate([addition, feat], axis=1)                      # (B, 2+Lvis, d)
    pos_total = jnp.concatenate([params["additional_pos_embed"], pos_cam], axis=0)

    # ---- diffusion noising (plain jnp: tiny elementwise FMA) ----
    t = jax.random.randint(k_t, (bs,), 0, cfg["num_diffusion_steps"])
    ab = params["alpha_bars"][t]
    noise = jax.random.normal(k_noise, actions.shape, jnp.float32)
    noisy_actions = (jnp.sqrt(ab)[:, None, None] * actions
                     + jnp.sqrt(1.0 - ab)[:, None, None] * noise)

    Wn, bn = params["noised_action_proj"]
    tgt = noisy_actions @ Wn.T + bn + params["time_embed"][t][:, None, :]

    # ---- ACT encoder + decoder (fused stacks) ----
    memory = encoder_stack(src, pos_total, params["act_encoder"], n_head)
    tgt = decoder_stack(tgt, memory, pos_total, params["query_embed"],
                        params["act_decoder"], n_head)

    Wh, bh = params["action_head"]
    predicted_noise = tgt @ Wh.T + bh                                    # (B, chunk, d_action)
    return (predicted_noise, noise), [mu, logvar]


# ----------------------------------- main ----------------------------------- #

if __name__ == "__main__":
    cfg = dict(
        d_model=32, d_prop=8, d_action=4, d_z=8, d_ff=64, n_head=4,
        n_rep_layers=1, n_enc_layers=1, n_dec_layers=1, n_frame_stack=1,
        chunk_size=8, num_diffusion_steps=500, patch=4, backbone_channels=64,
    )
    assert cfg["d_model"] % cfg["n_head"] == 0

    key = jax.random.PRNGKey(0)
    kp, kd = jax.random.split(key)
    params = init_params(kp, cfg)

    k1, k2, k3 = jax.random.split(kd, 3)
    obs = dict(
        state=jax.random.normal(k1, (2, cfg["d_prop"] * cfg["n_frame_stack"]), jnp.float32),
        rgb=jax.random.normal(k2, (2, 1, 3 * cfg["n_frame_stack"], 16, 16), jnp.float32),
    )
    actions = jax.random.normal(k3, (2, cfg["chunk_size"], cfg["d_action"]), jnp.float32)

    fwd = jax.jit(functools.partial(act_forward, cfg=cfg))
    (pred_noise, noise), (mu, logvar) = fwd(params, obs, actions, jax.random.PRNGKey(42))
    jax.block_until_ready(pred_noise)

    assert pred_noise.shape == (2, cfg["chunk_size"], cfg["d_action"])
    assert noise.shape == actions.shape
    assert mu.shape == (2, cfg["d_z"]) and logvar.shape == (2, cfg["d_z"])
    assert bool(jnp.all(jnp.isfinite(pred_noise)))
    print("KERNEL_OK")
</pallas_src>

<mosaic_0001>
module attributes {stable_mosaic.version = 11 : i64} {
  func.func @_linear_kernel(%arg0: i32, %arg1: memref<32x48xf32, #tpu.memory_space<vmem>>, %arg2: memref<32x48xbf16, #tpu.memory_space<vmem>>, %arg3: memref<1x32xf32, #tpu.memory_space<vmem>>, %arg4: memref<32x32xf32, #tpu.memory_space<vmem>>) attributes {dimension_semantics = [#tpu.dimension_semantics<parallel>], iteration_bounds = array<i64: 1>, scalar_prefetch = 0 : i64, scratch_operands = 0 : i64, tpu.core_type = #tpu.core_type<tc>, window_params = [{transform_indices = @transform_0, window_bounds = array<i64: 32, 48>}, {pipeline_mode = #tpu.pipeline_mode<synchronous>, transform_indices = @transform_1, window_bounds = array<i64: 32, 48>}, {pipeline_mode = #tpu.pipeline_mode<synchronous>, transform_indices = @transform_2, window_bounds = array<i64: 1, 32>}, {transform_indices = @transform_3, window_bounds = array<i64: 32, 32>}]} {
    %c0 = arith.constant 0 : index
    %c0_0 = arith.constant 0 : index
    %0 = vector.load %arg1[%c0, %c0_0] : memref<32x48xf32, #tpu.memory_space<vmem>>, vector<32x48xf32>
    %1 = arith.truncf %0 : vector<32x48xf32> to vector<32x48xbf16>
    %c0_1 = arith.constant 0 : index
    %c0_2 = arith.constant 0 : index
    %2 = vector.load %arg2[%c0_1, %c0_2] : memref<32x48xbf16, #tpu.memory_space<vmem>>, vector<32x48xbf16>
    %cst = arith.constant dense<0.000000e+00> : vector<32x32xf32>
    %3 = tpu.matmul %1, %2, %cst {dimension_numbers = #tpu.dot_dimension_numbers<[1], [1], [0], [0], [0, 0, 1, 0], [], []>} : vector<32x48xbf16>, vector<32x48xbf16>, vector<32x32xf32> -> vector<32x32xf32>
    %c0_3 = arith.constant 0 : index
    %c0_4 = arith.constant 0 : index
    %4 = vector.load %arg3[%c0_3, %c0_4] : memref<1x32xf32, #tpu.memory_space<vmem>>, vector<1x32xf32>
    %5 = vector.broadcast %4 : vector<1x32xf32> to vector<32x32xf32>
    %6 = arith.addf %3, %5 : vector<32x32xf32>
    %c0_5 = arith.constant 0 : index
    %c0_6 = arith.constant 0 : index
    %7 = vector.load %arg4[%c0_5, %c0_6] : memref<32x32xf32, #tpu.memory_space<vmem>>, vector<32x32xf32>
    tpu.vector_store %arg4[%c0_5, %c0_6], %6 {strides = array<i32>} : memref<32x32xf32, #tpu.memory_space<vmem>>, vector<32x32xf32>,
    return
  }
  func.func @transform_0(%arg0: i32) -> (i32, i32) {
    %c0_i32 = arith.constant 0 : i32
    %c0_i32_0 = arith.constant 0 : i32
    return %arg0, %c0_i32 : i32, i32
  }
  func.func @transform_1(%arg0: i32) -> (i32, i32) {
    %c0_i32 = arith.constant 0 : i32
    %c0_i32_0 = arith.constant 0 : i32
    %c0_i32_1 = arith.constant 0 : i32
    return %c0_i32, %c0_i32_0 : i32, i32
  }
  func.func @transform_2(%arg0: i32) -> (i32, i32) {
    %c0_i32 = arith.constant 0 : i32
    %c0_i32_0 = arith.constant 0 : i32
    %c0_i32_1 = arith.constant 0 : i32
    return %c0_i32, %c0_i32_0 : i32, i32
  }
  func.func @transform_3(%arg0: i32) -> (i32, i32) {
    %c0_i32 = arith.constant 0 : i32
    %c0_i32_0 = arith.constant 0 : i32
    return %arg0, %c0_i32 : i32, i32
  }
}

module attributes {stable_mosaic.version = 11 : i64} {
  func.func @_encoder_stack_kernel(%arg0: i32, %arg1: i32, %arg2: memref<1x10x32xf32, #tpu.memory_space<vmem>>, %arg3: memref<10x32xf32, #tpu.memory_space<vmem>>, %arg4: memref<1x128x32xbf16, #tpu.memory_space<vmem>>, %arg5: memref<1x128x32xbf16, #tpu.memory_space<vmem>>, %arg6: memref<1x9x32xf32, #tpu.memory_space<vmem>>, %arg7: memref<1x1x64xf32, #tpu.memory_space<vmem>>, %arg8: memref<1x10x32xf32, #tpu.memory_space<vmem>>) attributes {dimension_semantics = [#tpu.dimension_semantics<parallel>, #tpu.dimension_semantics<arbitrary>], iteration_bounds = array<i64: 2, 1>, scalar_prefetch = 0 : i64, scratch_operands = 0 : i64, tpu.core_type = #tpu.core_type<tc>, window_params = [{transform_indices = @transform_0, window_bounds = array<i64: 1, 10, 32>}, {pipeline_mode = #tpu.pipeline_mode<synchronous>, transform_indices = @transform_1, window_bounds = array<i64: 10, 32>}, {transform_indices = @transform_2, window_bounds = array<i64: 1, 128, 32>}, {transform_indices = @transform_3, window_bounds = array<i64: 1, 128, 32>}, {transform_indices = @transform_4, window_bounds = array<i64: 1, 9, 32>}, {transform_indices = @transform_5, window_bounds = array<i64: 1, 1, 64>}, {transform_indices = @transform_6, window_bounds = array<i64: 1, 10, 32>}]} {
    %c0_i32 = arith.constant 0 : i32
    %0 = arith.cmpi eq, %arg1, %c0_i32 : i32
    %1 = arith.extui %0 : i1 to i32
    %c0_i32_0 = arith.constant 0 : i32
    %2 = arith.cmpi ne, %1, %c0_i32_0 : i32
    scf.if %2 {
      %c0_55 = arith.constant 0 : index
      %c0_56 = arith.constant 0 : index
      %c0_57 = arith.constant 0 : index
      %176 = vector.load %arg2[%c0_55, %c0_56, %c0_57] : memref<1x10x32xf32, #tpu.memory_space<vmem>>, vector<1x10x32xf32>
      %c0_58 = arith.constant 0 : index
      %c0_59 = arith.constant 0 : index
      %c0_60 = arith.constant 0 : index
      %177 = vector.load %arg8[%c0_58, %c0_59, %c0_60] : memref<1x10x32xf32, #tpu.memory_space<vmem>>, vector<1x10x32xf32>
      tpu.vector_store %arg8[%c0_58, %c0_59, %c0_60], %176 {strides = array<i32>} : memref<1x10x32xf32, #tpu.memory_space<vmem>>, vector<1x10x32xf32>,
    } else {
    }
    %c0 = arith.constant 0 : index
    %c0_1 = arith.constant 0 : index
    %c0_2 = arith.constant 0 : index
    %3 = vector.load %arg8[%c0, %c0_1, %c0_2] : memref<1x10x32xf32, #tpu.memory_space<vmem>>, vector<1x10x32xf32>
    %4 = vector.shape_cast %3 : vector<1x10x32xf32> to vector<10x32xf32>
    %c0_3 = arith.constant 0 : index
    %c0_4 = arith.constant 0 : index
    %5 = vector.load %arg3[%c0_3, %c0_4] : memref<10x32xf32, #tpu.memory_space<vmem>>, vector<10x32xf32>
    %c0_5 = arith.constant 0 : index
    %c0_6 = arith.constant 0 : index
    %c0_7 = arith.constant 0 : index
    %6 = vector.load %arg4[%c0_5, %c0_6, %c0_7] : memref<1x128x32xbf16, #tpu.memory_space<vmem>>, vector<1x128x32xbf16>
    %7 = vector.shape_cast %6 : vector<1x128x32xbf16> to vector<128x32xbf16>
    %c0_8 = arith.constant 0 : index
    %c0_9 = arith.constant 0 : index
    %c0_10 = arith.constant 0 : index
    %8 = vector.load %arg5[%c0_8, %c0_9, %c0_10] : memref<1x128x32xbf16, #tpu.memory_space<vmem>>, vector<1x128x32xbf16>
    %9 = vector.shape_cast %8 : vector<1x128x32xbf16> to vector<128x32xbf16>
    %c0_11 = arith.constant 0 : index
    %c0_12 = arith.constant 0 : index
    %c0_13 = arith.constant 0 : index
    %10 = vector.load %arg6[%c0_11, %c0_12, %c0_13] : memref<1x9x32xf32, #tpu.memory_space<vmem>>, vector<1x9x32xf32>
    %11 = vector.shape_cast %10 : vector<1x9x32xf32> to vector<9x32xf32>
    %12 = arith.addf %4, %5 : vector<10x32xf32>
    %13 = arith.truncf %12 : vector<10x32xf32> to vector<10x32xbf16>
    %14 = arith.truncf %4 : vector<10x32xf32> to vector<10x32xbf16>
    %15 = vector.extract_strided_slice %7 {offsets = [0, 0], sizes = [64, 32], strides = [1, 1]} : vector<128x32xbf16> to vector<64x32xbf16>
    %cst = arith.constant dense<0.000000e+00> : vector<10x64xf32>
    %16 = tpu.matmul %13, %15, %cst {dimension_numbers = #tpu.dot_dimension_numbers<[1], [1], [0], [0], [0, 0, 1, 0], [], []>} : vector<10x32xbf16>, vector<64x32xbf16>, vector<10x64xf32> -> vector<10x64xf32>
    %17 = vector.extract_strided_slice %16 {offsets = [0, 0], sizes = [10, 32], strides = [1, 1]} : vector<10x64xf32> to vector<10x32xf32>
    %18 = vector.extract_strided_slice %11 {offsets = [0, 0], sizes = [1, 32], strides = [1, 1]} : vector<9x32xf32> to vector<1x32xf32>
    %19 = vector.broadcast %18 : vector<1x32xf32> to vector<10x32xf32>
    %20 = arith.addf %17, %19 : vector<10x32xf32>
    %21 = vector.extract_strided_slice %16 {offsets = [0, 32], sizes = [10, 32], strides = [1, 1]} : vector<10x64xf32> to vector<10x32xf32>
    %22 = vector.extract_strided_slice %11 {offsets = [1, 0], sizes = [1, 32], strides = [1, 1]} : vector<9x32xf32> to vector<1x32xf32>
    %23 = vector.broadcast %22 : vector<1x32xf32> to vector<10x32xf32>
    %24 = arith.addf %21, %23 : vector<10x32xf32>
    %25 = vector.extract_strided_slice %7 {offsets = [64, 0], sizes = [32, 32], strides = [1, 1]} : vector<128x32xbf16> to vector<32x32xbf16>
    %cst_14 = arith.constant dense<0.000000e+00> : vector<10x32xf32>
    %26 = tpu.matmul %14, %25, %cst_14 {dimension_numbers = #tpu.dot_dimension_numbers<[1], [1], [0], [0], [0, 0, 1, 0], [], []>} : vector<10x32xbf16>, vector<32x32xbf16>, vector<10x32xf32> -> vector<10x32xf32>
    %27 = vector.extract_strided_slice %11 {offsets = [2, 0], sizes = [1, 32], strides = [1, 1]} : vector<9x32xf32> to vector<1x32xf32>
    %28 = vector.broadcast %27 : vector<1x32xf32> to vector<10x32xf32>
    %29 = arith.addf %26, %28 : vector<10x32xf32>
    %30 = vector.extract_strided_slice %7 {offsets = [96, 0], sizes = [32, 32], strides = [1, 1]} : vector<128x32xbf16> to vector<32x32xbf16>
    %31 = vector.extract_strided_slice %11 {offsets = [3, 0], sizes = [1, 32], strides = [1, 1]} : vector<9x32xf32> to vector<1x32xf32>
    %32 = arith.truncf %20 : vector<10x32xf32> to vector<10x32xbf16>
    %33 = arith.truncf %24 : vector<10x32xf32> to vector<10x32xbf16>
    %34 = arith.truncf %29 : vector<10x32xf32> to vector<10x32xbf16>
    %35 = vector.extract_strided_slice %32 {offsets = [0, 0], sizes = [10, 8], strides = [1, 1]} : vector<10x32xbf16> to vector<10x8xbf16>
    %36 = vector.extract_strided_slice %33 {offsets = [0, 0], sizes = [10, 8], strides = [1, 1]} : vector<10x32xbf16> to vector<10x8xbf16>
    %cst_15 = arith.constant dense<0.000000e+00> : vector<10x10xf32>
    %37 = tpu.matmul %35, %36, %cst_15 {dimension_numbers = #tpu.dot_dimension_numbers<[1], [1], [0], [0], [0, 0, 1, 0], [], []>} : vector<10x8xbf16>, vector<10x8xbf16>, vector<10x10xf32> -> vector<10x10xf32>
    %cst_16 = arith.constant 0.353553385 : f32
    %38 = vector.broadcast %cst_16 : f32 to vector<10x10xf32>
    %39 = arith.mulf %37, %38 : vector<10x10xf32>
    %cst_17 = arith.constant dense<0xFF800000> : vector<10xf32>
    %40 = vector.multi_reduction <maximumf>, %39, %cst_17 [1] : vector<10x10xf32> to vector<10xf32>
    %41 = vector.shape_cast %40 : vector<10xf32> to vector<10x1xf32>
    %42 = vector.broadcast %41 : vector<10x1xf32> to vector<10x10xf32>
    %43 = arith.subf %39, %42 : vector<10x10xf32>
    %44 = math.exp %43 : vector<10x10xf32>
    %cst_18 = arith.constant dense<0.000000e+00> : vector<10xf32>
    %45 = vector.multi_reduction <add>, %44, %cst_18 [1] : vector<10x10xf32> to vector<10xf32>
    %46 = vector.shape_cast %45 : vector<10xf32> to vector<10x1xf32>
    %47 = tpu.reciprocal %46 {approx = true} : vector<10x1xf32> -> vector<10x1xf32>
    %48 = vector.broadcast %47 : vector<10x1xf32> to vector<10x10xf32>
    %49 = arith.mulf %44, %48 : vector<10x10xf32>
    %50 = arith.truncf %49 : vector<10x10xf32> to vector<10x10xbf16>
    %51 = vector.extract_strided_slice %34 {offsets = [0, 0], sizes = [10, 8], strides = [1, 1]} : vector<10x32xbf16> to vector<10x8xbf16>
    %cst_19 = arith.constant dense<0.000000e+00> : vector<10x8xf32>
    %52 = tpu.matmul %50, %51, %cst_19 {dimension_numbers = #tpu.dot_dimension_numbers<[1], [0], [0], [1], [0, 0, 1, 1], [], []>} : vector<10x10xbf16>, vector<10x8xbf16>, vector<10x8xf32> -> vector<10x8xf32>
    %53 = vector.extract_strided_slice %32 {offsets = [0, 8], sizes = [10, 8], strides = [1, 1]} : vector<10x32xbf16> to vector<10x8xbf16>
    %54 = vector.extract_strided_slice %33 {offsets = [0, 8], sizes = [10, 8], strides = [1, 1]} : vector<10x32xbf16> to vector<10x8xbf16>
    %cst_20 = arith.constant dense<0.000000e+00> : vector<10x10xf32>
    %55 = tpu.matmul %53, %54, %cst_20 {dimension_numbers = #tpu.dot_dimension_numbers<[1], [1], [0], [0], [0, 0, 1, 0], [], []>} : vector<10x8xbf16>, vector<10x8xbf16>, vector<10x10xf32> -> vector<10x10xf32>
    %cst_21 = arith.constant 0.353553385 : f32
    %56 = vector.broadcast %cst_21 : f32 to vector<10x10xf32>
    %57 = arith.mulf %55, %56 : vector<10x10xf32>
    %cst_22 = arith.constant dense<0xFF800000> : vector<10xf32>
    %58 = vector.multi_reduction <maximumf>, %57, %cst_22 [1] : vector<10x10xf32> to vector<10xf32>
    %59 = vector.shape_cast %58 : vector<10xf32> to vector<10x1xf32>
    %60 = vector.broadcast %59 : vector<10x1xf32> to vector<10x10xf32>
    %61 = arith.subf %57, %60 : vector<10x10xf32>
    %62 = math.exp %61 : vector<10x10xf32>
    %cst_23 = arith.constant dense<0.000000e+00> : vector<10xf32>
    %63 = vector.multi_reduction <add>, %62, %cst_23 [1] : vector<10x10xf32> to vector<10xf32>
    %64 = vector.shape_cast %63 : vector<10xf32> to vector<10x1xf32>
    %65 = tpu.reciprocal %64 {approx = true} : vector<10x1xf32> -> vector<10x1xf32>
    %66 = vector.broadcast %65 : vector<10x1xf32> to vector<10x10xf32>
    %67 = arith.mulf %62, %66 : vector<10x10xf32>
    %68 = arith.truncf %67 : vector<10x10xf32> to vector<10x10xbf16>
    %69 = vector.extract_strided_slice %34 {offsets = [0, 8], sizes = [10, 8], strides = [1, 1]} : vector<10x32xbf16> to vector<10x8xbf16>
    %cst_24 = arith.constant dense<0.000000e+00> : vector<10x8xf32>
    %70 = tpu.matmul %68, %69, %cst_24 {dimension_numbers = #tpu.dot_dimension_numbers<[1], [0], [0], [1], [0, 0, 1, 1], [], []>} : vector<10x10xbf16>, vector<10x8xbf16>, vector<10x8xf32> -> vector<10x8xf32>
    %71 = vector.extract_strided_slice %32 {offsets = [0, 16], sizes = [10, 8], strides = [1, 1]} : vector<10x32xbf16> to vector<10x8xbf16>
    %72 = vector.extract_strided_slice %33 {offsets = [0, 16], sizes = [10, 8], strides = [1, 1]} : vector<10x32xbf16> to vector<10x8xbf16>
    %cst_25 = arith.constant dense<0.000000e+00> : vector<10x10xf32>
    %73 = tpu.matmul %71, %72, %cst_25 {dimension_numbers = #tpu.dot_dimension_numbers<[1], [1], [0], [0], [0, 0, 1, 0], [], []>} : vector<10x8xbf16>, vector<10x8xbf16>, vector<10x10xf32> -> vector<10x10xf32>
    %cst_26 = arith.constant 0.353553385 : f32
    %74 = vector.broadcast %cst_26 : f32 to vector<10x10xf32>
    %75 = arith.mulf %73, %74 : vector<10x10xf32>
    %cst_27 = arith.constant dense<0xFF800000> : vector<10xf32>
    %76 = vector.multi_reduction <maximumf>, %75, %cst_27 [1] : vector<10x10xf32> to vector<10xf32>
    %77 = vector.shape_cast %76 : vector<10xf32> to vector<10x1xf32>
    %78 = vector.broadcast %77 : vector<10x1xf32> to vector<10x10xf32>
    %79 = arith.subf %75, %78 : vector<10x10xf32>
    %80 = math.exp %79 : vector<10x10xf32>
    %cst_28 = arith.constant dense<0.000000e+00> : vector<10xf32>
    %81 = vector.multi_reduction <add>, %80, %cst_28 [1] : vector<10x10xf32> to vector<10xf32>
    %82 = vector.shape_cast %81 : vector<10xf32> to vector<10x1xf32>
    %83 = tpu.reciprocal %82 {approx = true} : vector<10x1xf32> -> vector<10x1xf32>
    %84 = vector.broadcast %83 : vector<10x1xf32> to vector<10x10xf32>
    %85 = arith.mulf %80, %84 : vector<10x10xf32>
    %86 = arith.truncf %85 : vector<10x10xf32> to vector<10x10xbf16>
    %87 = vector.extract_strided_slice %34 {offsets = [0, 16], sizes = [10, 8], strides = [1, 1]} : vector<10x32xbf16> to vector<10x8xbf16>
    %cst_29 = arith.constant dense<0.000000e+00> : vector<10x8xf32>
    %88 = tpu.matmul %86, %87, %cst_29 {dimension_numbers = #tpu.dot_dimension_numbers<[1], [0], [0], [1], [0, 0, 1, 1], [], []>} : vector<10x10xbf16>, vector<10x8xbf16>, vector<10x8xf32> -> vector<10x8xf32>
    %89 = vector.extract_strided_slice %32 {offsets = [0, 24], sizes = [10, 8], strides = [1, 1]} : vector<10x32xbf16> to vector<10x8xbf16>
    %90 = vector.extract_strided_slice %33 {offsets = [0, 24], sizes = [10, 8], strides = [1, 1]} : vector<10x32xbf16> to vector<10x8xbf16>
    %cst_30 = arith.constant dense<0.000000e+00> : vector<10x10xf32>
    %91 = tpu.matmul %89, %90, %cst_30 {dimension_numbers = #tpu.dot_dimension_numbers<[1], [1], [0], [0], [0, 0, 1, 0], [], []>} : vector<10x8xbf16>, vector<10x8xbf16>, vector<10x10xf32> -> vector<10x10xf32>
    %cst_31 = arith.constant 0.353553385 : f32
    %92 = vector.broadcast %cst_31 : f32 to vector<10x10xf32>
    %93 = arith.mulf %91, %92 : vector<10x10xf32>
    %cst_32 = arith.constant dense<0xFF800000> : vector<10xf32>
    %94 = vector.multi_reduction <maximumf>, %93, %cst_32 [1] : vector<10x10xf32> to vector<10xf32>
    %95 = vector.shape_cast %94 : vector<10xf32> to vector<10x1xf32>
    %96 = vector.broadcast %95 : vector<10x1xf32> to vector<10x10xf32>
    %97 = arith.subf %93, %96 : vector<10x10xf32>
    %98 = math.exp %97 : vector<10x10xf32>
    %cst_33 = arith.constant dense<0.000000e+00> : vector<10xf32>
    %99 = vector.multi_reduction <add>, %98, %cst_33 [1] : vector<10x10xf32> to vector<10xf32>
    %100 = vector.shape_cast %99 : vector<10xf32> to vector<10x1xf32>
    %101 = tpu.reciprocal %100 {approx = true} : vector<10x1xf32> -> vector<10x1xf32>
    %102 = vector.broadcast %101 : vector<10x1xf32> to vector<10x10xf32>
    %103 = arith.mulf %98, %102 : vector<10x10xf32>
    %104 = arith.truncf %103 : vector<10x10xf32> to vector<10x10xbf16>
    %105 = vector.extract_strided_slice %34 {offsets = [0, 24], sizes = [10, 8], strides = [1, 1]} : vector<10x32xbf16> to vector<10x8xbf16>
    %cst_34 = arith.constant dense<0.000000e+00> : vector<10x8xf32>
    %106 = tpu.matmul %104, %105, %cst_34 {dimension_numbers = #tpu.dot_dimension_numbers<[1], [0], [0], [1], [0, 0, 1, 1], [], []>} : vector<10x10xbf16>, vector<10x8xbf16>, vector<10x8xf32> -> vector<10x8xf32>
    %107 = tpu.concatenate %52, %70, %88, %106 in 1 : vector<10x8xf32>, vector<10x8xf32>, vector<10x8xf32>, vector<10x8xf32> -> vector<10x32xf32>
    %108 = arith.truncf %107 : vector<10x32xf32> to vector<10x32xbf16>
    %cst_35 = arith.constant dense<0.000000e+00> : vector<10x32xf32>
    %109 = tpu.matmul %108, %30, %cst_35 {dimension_numbers = #tpu.dot_dimension_numbers<[1], [1], [0], [0], [0, 0, 1, 0], [], []>} : vector<10x32xbf16>, vector<32x32xbf16>, vector<10x32xf32> -> vector<10x32xf32>
    %110 = vector.broadcast %31 : vector<1x32xf32> to vector<10x32xf32>
    %111 = arith.addf %109, %110 : vector<10x32xf32>
    %112 = arith.addf %4, %111 : vector<10x32xf32>
    %113 = vector.extract_strided_slice %11 {offsets = [4, 0], sizes = [1, 32], strides = [1, 1]} : vector<9x32xf32> to vector<1x32xf32>
    %114 = vector.extract_strided_slice %11 {offsets = [5, 0], sizes = [1, 32], strides = [1, 1]} : vector<9x32xf32> to vector<1x32xf32>
    %cst_36 = arith.constant dense<0.000000e+00> : vector<10xf32>
    %115 = vector.multi_reduction <add>, %112, %cst_36 [1] : vector<10x32xf32> to vector<10xf32>
    %116 = vector.shape_cast %115 : vector<10xf32> to vector<10x1xf32>
    %cst_37 = arith.constant 3.200000e+01 : f32
    %117 = vector.broadcast %cst_37 : f32 to vector<10x1xf32>
    %118 = arith.divf %116, %117 : vector<10x1xf32>
    %119 = vector.broadcast %118 : vector<10x1xf32> to vector<10x32xf32>
    %120 = arith.subf %112, %119 : vector<10x32xf32>
    %121 = arith.mulf %120, %120 : vector<10x32xf32>
    %cst_38 = arith.constant dense<0.000000e+00> : vector<10xf32>
    %122 = vector.multi_reduction <add>, %121, %cst_38 [1] : vector<10x32xf32> to vector<10xf32>
    %123 = vector.shape_cast %122 : vector<10xf32> to vector<10x1xf32>
    %cst_39 = arith.constant 3.200000e+01 : f32
    %124 = vector.broadcast %cst_39 : f32 to vector<10x1xf32>
    %125 = arith.divf %123, %124 : vector<10x1xf32>
    %cst_40 = arith.constant 9.99999974E-6 : f32
    %126 = vector.broadcast %cst_40 : f32 to vector<10x1xf32>
    %127 = arith.addf %125, %126 : vector<10x1xf32>
    %128 = math.rsqrt %127 : vector<10x1xf32>
    %129 = vector.broadcast %128 : vector<10x1xf32> to vector<10x32xf32>
    %130 = arith.mulf %120, %129 : vector<10x32xf32>
    %131 = vector.broadcast %113 : vector<1x32xf32> to vector<10x32xf32>
    %132 = arith.mulf %130, %131 : vector<10x32xf32>
    %133 = vector.broadcast %114 : vector<1x32xf32> to vector<10x32xf32>
    %134 = arith.addf %132, %133 : vector<10x32xf32>
    %135 = arith.truncf %134 : vector<10x32xf32> to vector<10x32xbf16>
    %136 = vector.extract_strided_slice %9 {offsets = [0, 0], sizes = [64, 32], strides = [1, 1]} : vector<128x32xbf16> to vector<64x32xbf16>
    %cst_41 = arith.constant dense<0.000000e+00> : vector<10x64xf32>
    %137 = tpu.matmul %135, %136, %cst_41 {dimension_numbers = #tpu.dot_dimension_numbers<[1], [1], [0], [0], [0, 0, 1, 0], [], []>} : vector<10x32xbf16>, vector<64x32xbf16>, vector<10x64xf32> -> vector<10x64xf32>
    %c0_42 = arith.constant 0 : index
    %c0_43 = arith.constant 0 : index
    %c0_44 = arith.constant 0 : index
    %138 = vector.load %arg7[%c0_42, %c0_43, %c0_44] : memref<1x1x64xf32, #tpu.memory_space<vmem>>, vector<1x1x64xf32>
    %139 = vector.shape_cast %138 : vector<1x1x64xf32> to vector<1x64xf32>
    %140 = vector.broadcast %139 : vector<1x64xf32> to vector<10x64xf32>
    %141 = arith.addf %137, %140 : vector<10x64xf32>
    %cst_45 = arith.constant 0.000000e+00 : f32
    %142 = vector.broadcast %cst_45 : f32 to vector<10x64xf32>
    %143 = arith.maximumf %141, %142 : vector<10x64xf32>
    %144 = arith.truncf %143 : vector<10x64xf32> to vector<10x64xbf16>
    %145 = vector.extract_strided_slice %9 {offsets = [64, 0], sizes = [64, 32], strides = [1, 1]} : vector<128x32xbf16> to vector<64x32xbf16>
    %cst_46 = arith.constant dense<0.000000e+00> : vector<10x32xf32>
    %146 = tpu.matmul %144, %145, %cst_46 {dimension_numbers = #tpu.dot_dimension_numbers<[1], [0], [0], [1], [0, 0, 1, 1], [], []>} : vector<10x64xbf16>, vector<64x32xbf16>, vector<10x32xf32> -> vector<10x32xf32>
    %147 = vector.extract_strided_slice %11 {offsets = [8, 0], sizes = [1, 32], strides = [1, 1]} : vector<9x32xf32> to vector<1x32xf32>
    %148 = vector.broadcast %147 : vector<1x32xf32> to vector<10x32xf32>
    %149 = arith.addf %146, %148 : vector<10x32xf32>
    %150 = arith.addf %134, %149 : vector<10x32xf32>
    %151 = vector.extract_strided_slice %11 {offsets = [6, 0], sizes = [1, 32], strides = [1, 1]} : vector<9x32xf32> to vector<1x32xf32>
    %152 = vector.extract_strided_slice %11 {offsets = [7, 0], sizes = [1, 32], strides = [1, 1]} : vector<9x32xf32> to vector<1x32xf32>
    %cst_47 = arith.constant dense<0.000000e+00> : vector<10xf32>
    %153 = vector.multi_reduction <add>, %150, %cst_47 [1] : vector<10x32xf32> to vector<10xf32>
    %154 = vector.shape_cast %153 : vector<10xf32> to vector<10x1xf32>
    %cst_48 = arith.constant 3.200000e+01 : f32
    %155 = vector.broadcast %cst_48 : f32 to vector<10x1xf32>
    %156 = arith.divf %154, %155 : vector<10x1xf32>
    %157 = vector.broadcast %156 : vector<10x1xf32> to vector<10x32xf32>
    %158 = arith.subf %150, %157 : vector<10x32xf32>
    %159 = arith.mulf %158, %158 : vector<10x32xf32>
    %cst_49 = arith.constant dense<0.000000e+00> : vector<10xf32>
    %160 = vector.multi_reduction <add>, %159, %cst_49 [1] : vector<10x32xf32> to vector<10xf32>
    %161 = vector.shape_cast %160 : vector<10xf32> to vector<10x1xf32>
    %cst_50 = arith.constant 3.200000e+01 : f32
    %162 = vector.broadcast %cst_50 : f32 to vector<10x1xf32>
    %163 = arith.divf %161, %162 : vector<10x1xf32>
    %cst_51 = arith.constant 9.99999974E-6 : f32
    %164 = vector.broadcast %cst_51 : f32 to vector<10x1xf32>
    %165 = arith.addf %163, %164 : vector<10x1xf32>
    %166 = math.rsqrt %165 : vector<10x1xf32>
    %167 = vector.broadcast %166 : vector<10x1xf32> to vector<10x32xf32>
    %168 = arith.mulf %158, %167 : vector<10x32xf32>
    %169 = vector.broadcast %151 : vector<1x32xf32> to vector<10x32xf32>
    %170 = arith.mulf %168, %169 : vector<10x32xf32>
    %171 = vector.broadcast %152 : vector<1x32xf32> to vector<10x32xf32>
    %172 = arith.addf %170, %171 : vector<10x32xf32>
    %c0_52 = arith.constant 0 : index
    %c0_53 = arith.constant 0 : index
    %c0_54 = arith.constant 0 : index
    %173 = vector.load %arg8[%c0_52, %c0_53, %c0_54] : memref<1x10x32xf32, #tpu.memory_space<vmem>>, vector<1x10x32xf32>
    %174 = vector.shape_cast %173 : vector<1x10x32xf32> to vector<10x32xf32>
    %175 = vector.shape_cast %172 : vector<10x32xf32> to vector<1x10x32xf32>
    tpu.vector_store %arg8[%c0_52, %c0_53, %c0_54], %175 {strides = array<i32>} : memref<1x10x32xf32, #tpu.memory_space<vmem>>, vector<1x10x32xf32>,
    return
  }
  func.func @transform_0(%arg0: i32, %arg1: i32) -> (i32, i32, i32) {
    %c0_i32 = arith.constant 0 : i32
    %c0_i32_0 = arith.constant 0 : i32
    %c0_i32_1 = arith.constant 0 : i32
    return %arg0, %c0_i32, %c0_i32_0 : i32, i32, i32
  }
  func.func @transform_1(%arg0: i32, %arg1: i32) -> (i32, i32) {
    %c0_i32 = arith.constant 0 : i32
    %c0_i32_0 = arith.constant 0 : i32
    %c0_i32_1 = arith.constant 0 : i32
    return %c0_i32, %c0_i32_0 : i32, i32
  }
  func.func @transform_2(%arg0: i32, %arg1: i32) -> (i32, i32, i32) {
    %c0_i32 = arith.constant 0 : i32
    %c0_i32_0 = arith.constant 0 : i32
    %c0_i32_1 = arith.constant 0 : i32
    return %arg1, %c0_i32, %c0_i32_0 : i32, i32, i32
  }
  func.func @transform_3(%arg0: i32, %arg1: i32) -> (i32, i32, i32) {
    %c0_i32 = arith.constant 0 : i32
    %c0_i32_0 = arith.constant 0 : i32
    %c0_i32_1 = arith.constant 0 : i32
    return %arg1, %c0_i32, %c0_i32_0 : i32, i32, i32
  }
  func.func @transform_4(%arg0: i32, %arg1: i32) -> (i32, i32, i32) {
    %c0_i32 = arith.constant 0 : i32
    %c0_i32_0 = arith.constant 0 : i32
    %c0_i32_1 = arith.constant 0 : i32
    return %arg1, %c0_i32, %c0_i32_0 : i32, i32, i32
  }
  func.func @transform_5(%arg0: i32, %arg1: i32) -> (i32, i32, i32) {
    %c0_i32 = arith.constant 0 : i32
    %c0_i32_0 = arith.constant 0 : i32
    %c0_i32_1 = arith.constant 0 : i32
    return %arg1, %c0_i32, %c0_i32_0 : i32, i32, i32
  }
  func.func @transform_6(%arg0: i32, %arg1: i32) -> (i32, i32, i32) {
    %c0_i32 = arith.constant 0 : i32
    %c0_i32_0 = arith.constant 0 : i32
    %c0_i32_1 = arith.constant 0 : i32
    return %arg0, %c0_i32, %c0_i32_0 : i32, i32, i32
  }
}

module attributes {stable_mosaic.version = 11 : i64} {
  func.func @_encoder_stack_kernel(%arg0: i32, %arg1: i32, %arg2: memref<1x18x32xf32, #tpu.memory_space<vmem>>, %arg3: memref<18x32xf32, #tpu.memory_space<vmem>>, %arg4: memref<1x128x32xbf16, #tpu.memory_space<vmem>>, %arg5: memref<1x128x32xbf16, #tpu.memory_space<vmem>>, %arg6: memref<1x9x32xf32, #tpu.memory_space<vmem>>, %arg7: memref<1x1x64xf32, #tpu.memory_space<vmem>>, %arg8: memref<1x18x32xf32, #tpu.memory_space<vmem>>) attributes {dimension_semantics = [#tpu.dimension_semantics<parallel>, #tpu.dimension_semantics<arbitrary>], iteration_bounds = array<i64: 2, 1>, scalar_prefetch = 0 : i64, scratch_operands = 0 : i64, tpu.core_type = #tpu.core_type<tc>, window_params = [{transform_indices = @transform_0, window_bounds = array<i64: 1, 18, 32>}, {pipeline_mode = #tpu.pipeline_mode<synchronous>, transform_indices = @transform_1, window_bounds = array<i64: 18, 32>}, {transform_indices = @transform_2, window_bounds = array<i64: 1, 128, 32>}, {transform_indices = @transform_3, window_bounds = array<i64: 1, 128, 32>}, {transform_indices = @transform_4, window_bounds = array<i64: 1, 9, 32>}, {transform_indices = @transform_5, window_bounds = array<i64: 1, 1, 64>}, {transform_indices = @transform_6, window_bounds = array<i64: 1, 18, 32>}]} {
    %c0_i32 = arith.constant 0 : i32
    %0 = arith.cmpi eq, %arg1, %c0_i32 : i32
    %1 = arith.extui %0 : i1 to i32
    %c0_i32_0 = arith.constant 0 : i32
    %2 = arith.cmpi ne, %1, %c0_i32_0 : i32
    scf.if %2 {
      %c0_55 = arith.constant 0 : index
      %c0_56 = arith.constant 0 : index
      %c0_57 = arith.constant 0 : index
      %176 = vector.load %arg2[%c0_55, %c0_56, %c0_57] : memref<1x18x32xf32, #tpu.memory_space<vmem>>, vector<1x18x32xf32>
      %c0_58 = arith.constant 0 : index
      %c0_59 = arith.constant 0 : index
      %c0_60 = arith.constant 0 : index
      %177 = vector.load %arg8[%c0_58, %c0_59, %c0_60] : memref<1x18x32xf32, #tpu.memory_space<vmem>>, vector<1x18x32xf32>
      tpu.vector_store %arg8[%c0_58, %c0_59, %c0_60], %176 {strides = array<i32>} : memref<1x18x32xf32, #tpu.memory_space<vmem>>, vector<1x18x32xf32>,
    } else {
    }
    %c0 = arith.constant 0 : index
    %c0_1 = arith.constant 0 : index
    %c0_2 = arith.constant 0 : index
    %3 = vector.load %arg8[%c0, %c0_1, %c0_2] : memref<1x18x32xf32, #tpu.memory_space<vmem>>, vector<1x18x32xf32>
    %4 = vector.shape_cast %3 : vector<1x18x32xf32> to vector<18x32xf32>
    %c0_3 = arith.constant 0 : index
    %c0_4 = arith.constant 0 : index
    %5 = vector.load %arg3[%c0_3, %c0_4] : memref<18x32xf32, #tpu.memory_space<vmem>>, vector<18x32xf32>
    %c0_5 = arith.constant 0 : index
    %c0_6 = arith.constant 0 : index
    %c0_7 = arith.constant 0 : index
    %6 = vector.load %arg4[%c0_5, %c0_6, %c0_7] : memref<1x128x32xbf16, #tpu.memory_space<vmem>>, vector<1x128x32xbf16>
    %7 = vector.shape_cast %6 : vector<1x128x32xbf16> to vector<128x32xbf16>
    %c0_8 = arith.constant 0 : index
    %c0_9 = arith.constant 0 : index
    %c0_10 = arith.constant 0 : index
    %8 = vector.load %arg5[%c0_8, %c0_9, %c0_10] : memref<1x128x32xbf16, #tpu.memory_space<vmem>>, vector<1x128x32xbf16>
    %9 = vector.shape_cast %8 : vector<1x128x32xbf16> to vector<128x32xbf16>
    %c0_11 = arith.constant 0 : index
    %c0_12 = arith.constant 0 : index
    %c0_13 = arith.constant 0 : index
    %10 = vector.load %arg6[%c0_11, %c0_12, %c0_13] : memref<1x9x32xf32, #tpu.memory_space<vmem>>, vector<1x9x32xf32>
    %11 = vector.shape_cast %10 : vector<1x9x32xf32> to vector<9x32xf32>
    %12 = arith.addf %4, %5 : vector<18x32xf32>
    %13 = arith.truncf %12 : vector<18x32xf32> to vector<18x32xbf16>
    %14 = arith.truncf %4 : vector<18x32xf32> to vector<18x32xbf16>
    %15 = vector.extract_strided_slice %7 {offsets = [0, 0], sizes = [64, 32], strides = [1, 1]} : vector<128x32xbf16> to vector<64x32xbf16>
    %cst = arith.constant dense<0.000000e+00> : vector<18x64xf32>
    %16 = tpu.matmul %13, %15, %cst {dimension_numbers = #tpu.dot_dimension_numbers<[1], [1], [0], [0], [0, 0, 1, 0], [], []>} : vector<18x32xbf16>, vector<64x32xbf16>, vector<18x64xf32> -> vector<18x64xf32>
    %17 = vector.extract_strided_slice %16 {offsets = [0, 0], sizes = [18, 32], strides = [1, 1]} : vector<18x64xf32> to vector<18x32xf32>
    %18 = vector.extract_strided_slice %11 {offsets = [0, 0], sizes = [1, 32], strides = [1, 1]} : vector<9x32xf32> to vector<1x32xf32>
    %19 = vector.broadcast %18 : vector<1x32xf32> to vector<18x32xf32>
    %20 = arith.addf %17, %19 : vector<18x32xf32>
    %21 = vector.extract_strided_slice %16 {offsets = [0, 32], sizes = [18, 32], strides = [1, 1]} : vector<18x64xf32> to vector<18x32xf32>
    %22 = vector.extract_strided_slice %11 {offsets = [1, 0], sizes = [1, 32], strides = [1, 1]} : vector<9x32xf32> to vector<1x32xf32>
    %23 = vector.broadcast %22 : vector<1x32xf32> to vector<18x32xf32>
    %24 = arith.addf %21, %23 : vector<18x32xf32>
    %25 = vector.extract_strided_slice %7 {offsets = [64, 0], sizes = [32, 32], strides = [1, 1]} : vector<128x32xbf16> to vector<32x32xbf16>
    %cst_14 = arith.constant dense<0.000000e+00> : vector<18x32xf32>
    %26 = tpu.matmul %14, %25, %cst_14 {dimension_numbers = #tpu.dot_dimension_numbers<[1], [1], [0], [0], [0, 0, 1, 0], [], []>} : vector<18x32xbf16>, vector<32x32xbf16>, vector<18x32xf32> -> vector<18x32xf32>
    %27 = vector.extract_strided_slice %11 {offsets = [2, 0], sizes = [1, 32], strides = [1, 1]} : vector<9x32xf32> to vector<1x32xf32>
    %28 = vector.broadcast %27 : vector<1x32xf32> to vector<18x32xf32>
    %29 = arith.addf %26, %28 : vector<18x32xf32>
    %30 = vector.extract_strided_slice %7 {offsets = [96, 0], sizes = [32, 32], strides = [1, 1]} : vector<128x32xbf16> to vector<32x32xbf16>
    %31 = vector.extract_strided_slice %11 {offsets = [3, 0], sizes = [1, 32], strides = [1, 1]} : vector<9x32xf32> to vector<1x32xf32>
    %32 = arith.truncf %20 : vector<18x32xf32> to vector<18x32xbf16>
    %33 = arith.truncf %24 : vector<18x32xf32> to vector<18x32xbf16>
    %34 = arith.truncf %29 : vector<18x32xf32> to vector<18x32xbf16>
    %35 = vector.extract_strided_slice %32 {offsets = [0, 0], sizes = [18, 8], strides = [1, 1]} : vector<18x32xbf16> to vector<18x8xbf16>
    %36 = vector.extract_strided_slice %33 {offsets = [0, 0], sizes = [18, 8], strides = [1, 1]} : vector<18x32xbf16> to vector<18x8xbf16>
    %cst_15 = arith.constant dense<0.000000e+00> : vector<18x18xf32>
    %37 = tpu.matmul %35, %36, %cst_15 {dimension_numbers = #tpu.dot_dimension_numbers<[1], [1], [0], [0], [0, 0, 1, 0], [], []>} : vector<18x8xbf16>, vector<18x8xbf16>, vector<18x18xf32> -> vector<18x18xf32>
    %cst_16 = arith.constant 0.353553385 : f32
    %38 = vector.broadcast %cst_16 : f32 to vector<18x18xf32>
    %39 = arith.mulf %37, %38 : vector<18x18xf32>
    %cst_17 = arith.constant dense<0xFF800000> : vector<18xf32>
    %40 = vector.multi_reduction <maximumf>, %39, %cst_17 [1] : vector<18x18xf32> to vector<18xf32>
    %41 = vector.shape_cast %40 : vector<18xf32> to vector<18x1xf32>
    %42 = vector.broadcast %41 : vector<18x1xf32> to vector<18x18xf32>
    %43 = arith.subf %39, %42 : vector<18x18xf32>
    %44 = math.exp %43 : vector<18x18xf32>
    %cst_18 = arith.constant dense<0.000000e+00> : vector<18xf32>
    %45 = vector.multi_reduction <add>, %44, %cst_18 [1] : vector<18x18xf32> to vector<18xf32>
    %46 = vector.shape_cast %45 : vector<18xf32> to vector<18x1xf32>
    %47 = tpu.reciprocal %46 {approx = true} : vector<18x1xf32> -> vector<18x1xf32>
    %48 = vector.broadcast %47 : vector<18x1xf32> to vector<18x18xf32>
    %49 = arith.mulf %44, %48 : vector<18x18xf32>
    %50 = arith.truncf %49 : vector<18x18xf32> to vector<18x18xbf16>
    %51 = vector.extract_strided_slice %34 {offsets = [0, 0], sizes = [18, 8], strides = [1, 1]} : vector<18x32xbf16> to vector<18x8xbf16>
    %cst_19 = arith.constant dense<0.000000e+00> : vector<18x8xf32>
    %52 = tpu.matmul %50, %51, %cst_19 {dimension_numbers = #tpu.dot_dimension_numbers<[1], [0], [0], [1], [0, 0, 1, 1], [], []>} : vector<18x18xbf16>, vector<18x8xbf16>, vector<18x8xf32> -> vector<18x8xf32>
    %53 = vector.extract_strided_slice %32 {offsets = [0, 8], sizes = [18, 8], strides = [1, 1]} : vector<18x32xbf16> to vector<18x8xbf16>
    %54 = vector.extract_strided_slice %33 {offsets = [0, 8], sizes = [18, 8], strides = [1, 1]} : vector<18x32xbf16> to vector<18x8xbf16>
    %cst_20 = arith.constant dense<0.000000e+00> : vector<18x18xf32>
    %55 = tpu.matmul %53, %54, %cst_20 {dimension_numbers = #tpu.dot_dimension_numbers<[1], [1], [0], [0], [0, 0, 1, 0], [], []>} : vector<18x8xbf16>, vector<18x8xbf16>, vector<18x18xf32> -> vector<18x18xf32>
    %cst_21 = arith.constant 0.353553385 : f32
    %56 = vector.broadcast %cst_21 : f32 to vector<18x18xf32>
    %57 = arith.mulf %55, %56 : vector<18x18xf32>
    %cst_22 = arith.constant dense<0xFF800000> : vector<18xf32>
    %58 = vector.multi_reduction <maximumf>, %57, %cst_22 [1] : vector<18x18xf32> to vector<18xf32>
    %59 = vector.shape_cast %58 : vector<18xf32> to vector<18x1xf32>
    %60 = vector.broadcast %59 : vector<18x1xf32> to vector<18x18xf32>
    %61 = arith.subf %57, %60 : vector<18x18xf32>
    %62 = math.exp %61 : vector<18x18xf32>
    %cst_23 = arith.constant dense<0.000000e+00> : vector<18xf32>
    %63 = vector.multi_reduction <add>, %62, %cst_23 [1] : vector<18x18xf32> to vector<18xf32>
    %64 = vector.shape_cast %63 : vector<18xf32> to vector<18x1xf32>
    %65 = tpu.reciprocal %64 {approx = true} : vector<18x1xf32> -> vector<18x1xf32>
    %66 = vector.broadcast %65 : vector<18x1xf32> to vector<18x18xf32>
    %67 = arith.mulf %62, %66 : vector<18x18xf32>
    %68 = arith.truncf %67 : vector<18x18xf32> to vector<18x18xbf16>
    %69 = vector.extract_strided_slice %34 {offsets = [0, 8], sizes = [18, 8], strides = [1, 1]} : vector<18x32xbf16> to vector<18x8xbf16>
    %cst_24 = arith.constant dense<0.000000e+00> : vector<18x8xf32>
    %70 = tpu.matmul %68, %69, %cst_24 {dimension_numbers = #tpu.dot_dimension_numbers<[1], [0], [0], [1], [0, 0, 1, 1], [], []>} : vector<18x18xbf16>, vector<18x8xbf16>, vector<18x8xf32> -> vector<18x8xf32>
    %71 = vector.extract_strided_slice %32 {offsets = [0, 16], sizes = [18, 8], strides = [1, 1]} : vector<18x32xbf16> to vector<18x8xbf16>
    %72 = vector.extract_strided_slice %33 {offsets = [0, 16], sizes = [18, 8], strides = [1, 1]} : vector<18x32xbf16> to vector<18x8xbf16>
    %cst_25 = arith.constant dense<0.000000e+00> : vector<18x18xf32>
    %73 = tpu.matmul %71, %72, %cst_25 {dimension_numbers = #tpu.dot_dimension_numbers<[1], [1], [0], [0], [0, 0, 1, 0], [], []>} : vector<18x8xbf16>, vector<18x8xbf16>, vector<18x18xf32> -> vector<18x18xf32>
    %cst_26 = arith.constant 0.353553385 : f32
    %74 = vector.broadcast %cst_26 : f32 to vector<18x18xf32>
    %75 = arith.mulf %73, %74 : vector<18x18xf32>
    %cst_27 = arith.constant dense<0xFF800000> : vector<18xf32>
    %76 = vector.multi_reduction <maximumf>, %75, %cst_27 [1] : vector<18x18xf32> to vector<18xf32>
    %77 = vector.shape_cast %76 : vector<18xf32> to vector<18x1xf32>
    %78 = vector.broadcast %77 : vector<18x1xf32> to vector<18x18xf32>
    %79 = arith.subf %75, %78 : vector<18x18xf32>
    %80 = math.exp %79 : vector<18x18xf32>
    %cst_28 = arith.constant dense<0.000000e+00> : vector<18xf32>
    %81 = vector.multi_reduction <add>, %80, %cst_28 [1] : vector<18x18xf32> to vector<18xf32>
    %82 = vector.shape_cast %81 : vector<18xf32> to vector<18x1xf32>
    %83 = tpu.reciprocal %82 {approx = true} : vector<18x1xf32> -> vector<18x1xf32>
    %84 = vector.broadcast %83 : vector<18x1xf32> to vector<18x18xf32>
    %85 = arith.mulf %80, %84 : vector<18x18xf32>
    %86 = arith.truncf %85 : vector<18x18xf32> to vector<18x18xbf16>
    %87 = vector.extract_strided_slice %34 {offsets = [0, 16], sizes = [18, 8], strides = [1, 1]} : vector<18x32xbf16> to vector<18x8xbf16>
    %cst_29 = arith.constant dense<0.000000e+00> : vector<18x8xf32>
    %88 = tpu.matmul %86, %87, %cst_29 {dimension_numbers = #tpu.dot_dimension_numbers<[1], [0], [0], [1], [0, 0, 1, 1], [], []>} : vector<18x18xbf16>, vector<18x8xbf16>, vector<18x8xf32> -> vector<18x8xf32>
    %89 = vector.extract_strided_slice %32 {offsets = [0, 24], sizes = [18, 8], strides = [1, 1]} : vector<18x32xbf16> to vector<18x8xbf16>
    %90 = vector.extract_strided_slice %33 {offsets = [0, 24], sizes = [18, 8], strides = [1, 1]} : vector<18x32xbf16> to vector<18x8xbf16>
    %cst_30 = arith.constant dense<0.000000e+00> : vector<18x18xf32>
    %91 = tpu.matmul %89, %90, %cst_30 {dimension_numbers = #tpu.dot_dimension_numbers<[1], [1], [0], [0], [0, 0, 1, 0], [], []>} : vector<18x8xbf16>, vector<18x8xbf16>, vector<18x18xf32> -> vector<18x18xf32>
    %cst_31 = arith.constant 0.353553385 : f32
    %92 = vector.broadcast %cst_31 : f32 to vector<18x18xf32>
    %93 = arith.mulf %91, %92 : vector<18x18xf32>
    %cst_32 = arith.constant dense<0xFF800000> : vector<18xf32>
    %94 = vector.multi_reduction <maximumf>, %93, %cst_32 [1] : vector<18x18xf32> to vector<18xf32>
    %95 = vector.shape_cast %94 : vector<18xf32> to vector<18x1xf32>
    %96 = vector.broadcast %95 : vector<18x1xf32> to vector<18x18xf32>
    %97 = arith.subf %93, %96 : vector<18x18xf32>
    %98 = math.exp %97 : vector<18x18xf32>
    %cst_33 = arith.constant dense<0.000000e+00> : vector<18xf32>
    %99 = vector.multi_reduction <add>, %98, %cst_33 [1] : vector<18x18xf32> to vector<18xf32>
    %100 = vector.shape_cast %99 : vector<18xf32> to vector<18x1xf32>
    %101 = tpu.reciprocal %100 {approx = true} : vector<18x1xf32> -> vector<18x1xf32>
    %102 = vector.broadcast %101 : vector<18x1xf32> to vector<18x18xf32>
    %103 = arith.mulf %98, %102 : vector<18x18xf32>
    %104 = arith.truncf %103 : vector<18x18xf32> to vector<18x18xbf16>
    %105 = vector.extract_strided_slice %34 {offsets = [0, 24], sizes = [18, 8], strides = [1, 1]} : vector<18x32xbf16> to vector<18x8xbf16>
    %cst_34 = arith.constant dense<0.000000e+00> : vector<18x8xf32>
    %106 = tpu.matmul %104, %105, %cst_34 {dimension_numbers = #tpu.dot_dimension_numbers<[1], [0], [0], [1], [0, 0, 1, 1], [], []>} : vector<18x18xbf16>, vector<18x8xbf16>, vector<18x8xf32> -> vector<18x8xf32>
    %107 = tpu.concatenate %52, %70, %88, %106 in 1 : vector<18x8xf32>, vector<18x8xf32>, vector<18x8xf32>, vector<18x8xf32> -> vector<18x32xf32>
    %108 = arith.truncf %107 : vector<18x32xf32> to vector<18x32xbf16>
    %cst_35 = arith.constant dense<0.000000e+00> : vector<18x32xf32>
    %109 = tpu.matmul %108, %30, %cst_35 {dimension_numbers = #tpu.dot_dimension_numbers<[1], [1], [0], [0], [0, 0, 1, 0], [], []>} : vector<18x32xbf16>, vector<32x32xbf16>, vector<18x32xf32> -> vector<18x32xf32>
    %110 = vector.broadcast %31 : vector<1x32xf32> to vector<18x32xf32>
    %111 = arith.addf %109, %110 : vector<18x32xf32>
    %112 = arith.addf %4, %111 : vector<18x32xf32>
    %113 = vector.extract_strided_slice %11 {offsets = [4, 0], sizes = [1, 32], strides = [1, 1]} : vector<9x32xf32> to vector<1x32xf32>
    %114 = vector.extract_strided_slice %11 {offsets = [5, 0], sizes = [1, 32], strides = [1, 1]} : vector<9x32xf32> to vector<1x32xf32>
    %cst_36 = arith.constant dense<0.000000e+00> : vector<18xf32>
    %115 = vector.multi_reduction <add>, %112, %cst_36 [1] : vector<18x32xf32> to vector<18xf32>
    %116 = vector.shape_cast %115 : vector<18xf32> to vector<18x1xf32>
    %cst_37 = arith.constant 3.200000e+01 : f32
    %117 = vector.broadcast %cst_37 : f32 to vector<18x1xf32>
    %118 = arith.divf %116, %117 : vector<18x1xf32>
    %119 = vector.broadcast %118 : vector<18x1xf32> to vector<18x32xf32>
    %120 = arith.subf %112, %119 : vector<18x32xf32>
    %121 = arith.mulf %120, %120 : vector<18x32xf32>
    %cst_38 = arith.constant dense<0.000000e+00> : vector<18xf32>
    %122 = vector.multi_reduction <add>, %121, %cst_38 [1] : vector<18x32xf32> to vector<18xf32>
    %123 = vector.shape_cast %122 : vector<18xf32> to vector<18x1xf32>
    %cst_39 = arith.constant 3.200000e+01 : f32
    %124 = vector.broadcast %cst_39 : f32 to vector<18x1xf32>
    %125 = arith.divf %123, %124 : vector<18x1xf32>
    %cst_40 = arith.constant 9.99999974E-6 : f32
    %126 = vector.broadcast %cst_40 : f32 to vector<18x1xf32>
    %127 = arith.addf %125, %126 : vector<18x1xf32>
    %128 = math.rsqrt %127 : vector<18x1xf32>
    %129 = vector.broadcast %128 : vector<18x1xf32> to vector<18x32xf32>
    %130 = arith.mulf %120, %129 : vector<18x32xf32>
    %131 = vector.broadcast %113 : vector<1x32xf32> to vector<18x32xf32>
    %132 = arith.mulf %130, %131 : vector<18x32xf32>
    %133 = vector.broadcast %114 : vector<1x32xf32> to vector<18x32xf32>
    %134 = arith.addf %132, %133 : vector<18x32xf32>
    %135 = arith.truncf %134 : vector<18x32xf32> to vector<18x32xbf16>
    %136 = vector.extract_strided_slice %9 {offsets = [0, 0], sizes = [64, 32], strides = [1, 1]} : vector<128x32xbf16> to vector<64x32xbf16>
    %cst_41 = arith.constant dense<0.000000e+00> : vector<18x64xf32>
    %137 = tpu.matmul %135, %136, %cst_41 {dimension_numbers = #tpu.dot_dimension_numbers<[1], [1], [0], [0], [0, 0, 1, 0], [], []>} : vector<18x32xbf16>, vector<64x32xbf16>, vector<18x64xf32> -> vector<18x64xf32>
    %c0_42 = arith.constant 0 : index
    %c0_43 = arith.constant 0 : index
    %c0_44 = arith.constant 0 : index
    %138 = vector.load %arg7[%c0_42, %c0_43, %c0_44] : memref<1x1x64xf32, #tpu.memory_space<vmem>>, vector<1x1x64xf32>
    %139 = vector.shape_cast %138 : vector<1x1x64xf32> to vector<1x64xf32>
    %140 = vector.broadcast %139 : vector<1x64xf32> to vector<18x64xf32>
    %141 = arith.addf %137, %140 : vector<18x64xf32>
    %cst_45 = arith.constant 0.000000e+00 : f32
    %142 = vector.broadcast %cst_45 : f32 to vector<18x64xf32>
    %143 = arith.maximumf %141, %142 : vector<18x64xf32>
    %144 = arith.truncf %143 : vector<18x64xf32> to vector<18x64xbf16>
    %145 = vector.extract_strided_slice %9 {offsets = [64, 0], sizes = [64, 32], strides = [1, 1]} : vector<128x32xbf16> to vector<64x32xbf16>
    %cst_46 = arith.constant dense<0.000000e+00> : vector<18x32xf32>
    %146 = tpu.matmul %144, %145, %cst_46 {dimension_numbers = #tpu.dot_dimension_numbers<[1], [0], [0], [1], [0, 0, 1, 1], [], []>} : vector<18x64xbf16>, vector<64x32xbf16>, vector<18x32xf32> -> vector<18x32xf32>
    %147 = vector.extract_strided_slice %11 {offsets = [8, 0], sizes = [1, 32], strides = [1, 1]} : vector<9x32xf32> to vector<1x32xf32>
    %148 = vector.broadcast %147 : vector<1x32xf32> to vector<18x32xf32>
    %149 = arith.addf %146, %148 : vector<18x32xf32>
    %150 = arith.addf %134, %149 : vector<18x32xf32>
    %151 = vector.extract_strided_slice %11 {offsets = [6, 0], sizes = [1, 32], strides = [1, 1]} : vector<9x32xf32> to vector<1x32xf32>
    %152 = vector.extract_strided_slice %11 {offsets = [7, 0], sizes = [1, 32], strides = [1, 1]} : vector<9x32xf32> to vector<1x32xf32>
    %cst_47 = arith.constant dense<0.000000e+00> : vector<18xf32>
    %153 = vector.multi_reduction <add>, %150, %cst_47 [1] : vector<18x32xf32> to vector<18xf32>
    %154 = vector.shape_cast %153 : vector<18xf32> to vector<18x1xf32>
    %cst_48 = arith.constant 3.200000e+01 : f32
    %155 = vector.broadcast %cst_48 : f32 to vector<18x1xf32>
    %156 = arith.divf %154, %155 : vector<18x1xf32>
    %157 = vector.broadcast %156 : vector<18x1xf32> to vector<18x32xf32>
    %158 = arith.subf %150, %157 : vector<18x32xf32>
    %159 = arith.mulf %158, %158 : vector<18x32xf32>
    %cst_49 = arith.constant dense<0.000000e+00> : vector<18xf32>
    %160 = vector.multi_reduction <add>, %159, %cst_49 [1] : vector<18x32xf32> to vector<18xf32>
    %161 = vector.shape_cast %160 : vector<18xf32> to vector<18x1xf32>
    %cst_50 = arith.constant 3.200000e+01 : f32
    %162 = vector.broadcast %cst_50 : f32 to vector<18x1xf32>
    %163 = arith.divf %161, %162 : vector<18x1xf32>
    %cst_51 = arith.constant 9.99999974E-6 : f32
    %164 = vector.broadcast %cst_51 : f32 to vector<18x1xf32>
    %165 = arith.addf %163, %164 : vector<18x1xf32>
    %166 = math.rsqrt %165 : vector<18x1xf32>
    %167 = vector.broadcast %166 : vector<18x1xf32> to vector<18x32xf32>
    %168 = arith.mulf %158, %167 : vector<18x32xf32>
    %169 = vector.broadcast %151 : vector<1x32xf32> to vector<18x32xf32>
    %170 = arith.mulf %168, %169 : vector<18x32xf32>
    %171 = vector.broadcast %152 : vector<1x32xf32> to vector<18x32xf32>
    %172 = arith.addf %170, %171 : vector<18x32xf32>
    %c0_52 = arith.constant 0 : index
    %c0_53 = arith.constant 0 : index
    %c0_54 = arith.constant 0 : index
    %173 = vector.load %arg8[%c0_52, %c0_53, %c0_54] : memref<1x18x32xf32, #tpu.memory_space<vmem>>, vector<1x18x32xf32>
    %174 = vector.shape_cast %173 : vector<1x18x32xf32> to vector<18x32xf32>
    %175 = vector.shape_cast %172 : vector<18x32xf32> to vector<1x18x32xf32>
    tpu.vector_store %arg8[%c0_52, %c0_53, %c0_54], %175 {strides = array<i32>} : memref<1x18x32xf32, #tpu.memory_space<vmem>>, vector<1x18x32xf32>,
    return
  }
  func.func @transform_0(%arg0: i32, %arg1: i32) -> (i32, i32, i32) {
    %c0_i32 = arith.constant 0 : i32
    %c0_i32_0 = arith.constant 0 : i32
    %c0_i32_1 = arith.constant 0 : i32
    return %arg0, %c0_i32, %c0_i32_0 : i32, i32, i32
  }
  func.func @transform_1(%arg0: i32, %arg1: i32) -> (i32, i32) {
    %c0_i32 = arith.constant 0 : i32
    %c0_i32_0 = arith.constant 0 : i32
    %c0_i32_1 = arith.constant 0 : i32
    return %c0_i32, %c0_i32_0 : i32, i32
  }
  func.func @transform_2(%arg0: i32, %arg1: i32) -> (i32, i32, i32) {
    %c0_i32 = arith.constant 0 : i32
    %c0_i32_0 = arith.constant 0 : i32
    %c0_i32_1 = arith.constant 0 : i32
    return %arg1, %c0_i32, %c0_i32_0 : i32, i32, i32
  }
  func.func @transform_3(%arg0: i32, %arg1: i32) -> (i32, i32, i32) {
    %c0_i32 = arith.constant 0 : i32
    %c0_i32_0 = arith.constant 0 : i32
    %c0_i32_1 = arith.constant 0 : i32
    return %arg1, %c0_i32, %c0_i32_0 : i32, i32, i32
  }
  func.func @transform_4(%arg0: i32, %arg1: i32) -> (i32, i32, i32) {
    %c0_i32 = arith.constant 0 : i32
    %c0_i32_0 = arith.constant 0 : i32
    %c0_i32_1 = arith.constant 0 : i32
    return %arg1, %c0_i32, %c0_i32_0 : i32, i32, i32
  }
  func.func @transform_5(%arg0: i32, %arg1: i32) -> (i32, i32, i32) {
    %c0_i32 = arith.constant 0 : i32
    %c0_i32_0 = arith.constant 0 : i32
    %c0_i32_1 = arith.constant 0 : i32
    return %arg1, %c0_i32, %c0_i32_0 : i32, i32, i32
  }
  func.func @transform_6(%arg0: i32, %arg1: i32) -> (i32, i32, i32) {
    %c0_i32 = arith.constant 0 : i32
    %c0_i32_0 = arith.constant 0 : i32
    %c0_i32_1 = arith.constant 0 : i32
    return %arg0, %c0_i32, %c0_i32_0 : i32, i32, i32
  }
}

module attributes {stable_mosaic.version = 11 : i64} {
  func.func @_decoder_stack_kernel(%arg0: i32, %arg1: i32, %arg2: memref<1x8x32xf32, #tpu.memory_space<vmem>>, %arg3: memref<1x18x32xf32, #tpu.memory_space<vmem>>, %arg4: memref<18x32xf32, #tpu.memory_space<vmem>>, %arg5: memref<8x32xf32, #tpu.memory_space<vmem>>, %arg6: memref<1x256x32xbf16, #tpu.memory_space<vmem>>, %arg7: memref<1x128x32xbf16, #tpu.memory_space<vmem>>, %arg8: memref<1x15x32xf32, #tpu.memory_space<vmem>>, %arg9: memref<1x1x64xf32, #tpu.memory_space<vmem>>, %arg10: memref<1x8x32xf32, #tpu.memory_space<vmem>>) attributes {dimension_semantics = [#tpu.dimension_semantics<parallel>, #tpu.dimension_semantics<arbitrary>], iteration_bounds = array<i64: 2, 1>, scalar_prefetch = 0 : i64, scratch_operands = 0 : i64, tpu.core_type = #tpu.core_type<tc>, window_params = [{transform_indices = @transform_0, window_bounds = array<i64: 1, 8, 32>}, {transform_indices = @transform_1, window_bounds = array<i64: 1, 18, 32>}, {pipeline_mode = #tpu.pipeline_mode<synchronous>, transform_indices = @transform_2, window_bounds = array<i64: 18, 32>}, {pipeline_mode = #tpu.pipeline_mode<synchronous>, transform_indices = @transform_3, window_bounds = array<i64: 8, 32>}, {transform_indices = @transform_4, window_bounds = array<i64: 1, 256, 32>}, {transform_indices = @transform_5, window_bounds = array<i64: 1, 128, 32>}, {transform_indices = @transform_6, window_bounds = array<i64: 1, 15, 32>}, {transform_indices = @transform_7, window_bounds = array<i64: 1, 1, 64>}, {transform_indices = @transform_8, window_bounds = array<i64: 1, 8, 32>}]} {
    %c0_i32 = arith.constant 0 : i32
    %0 = arith.cmpi eq, %arg1, %c0_i32 : i32
    %1 = arith.extui %0 : i1 to i32
    %c0_i32_0 = arith.constant 0 : i32
    %2 = arith.cmpi ne, %1, %c0_i32_0 : i32
    scf.if %2 {
      %c0_89 = arith.constant 0 : index
      %c0_90 = arith.constant 0 : index
      %c0_91 = arith.constant 0 : index
      %304 = vector.load %arg2[%c0_89, %c0_90, %c0_91] : memref<1x8x32xf32, #tpu.memory_space<vmem>>, vector<1x8x32xf32>
      %c0_92 = arith.constant 0 : index
      %c0_93 = arith.constant 0 : index
      %c0_94 = arith.constant 0 : index
      %305 = vector.load %arg10[%c0_92, %c0_93, %c0_94] : memref<1x8x32xf32, #tpu.memory_space<vmem>>, vector<1x8x32xf32>
      tpu.vector_store %arg10[%c0_92, %c0_93, %c0_94], %304 {strides = array<i32>} : memref<1x8x32xf32, #tpu.memory_space<vmem>>, vector<1x8x32xf32>,
    } else {
    }
    %c0 = arith.constant 0 : index
    %c0_1 = arith.constant 0 : index
    %c0_2 = arith.constant 0 : index
    %3 = vector.load %arg10[%c0, %c0_1, %c0_2] : memref<1x8x32xf32, #tpu.memory_space<vmem>>, vector<1x8x32xf32>
    %4 = vector.shape_cast %3 : vector<1x8x32xf32> to vector<8x32xf32>
    %c0_3 = arith.constant 0 : index
    %c0_4 = arith.constant 0 : index
    %c0_5 = arith.constant 0 : index
    %5 = vector.load %arg3[%c0_3, %c0_4, %c0_5] : memref<1x18x32xf32, #tpu.memory_space<vmem>>, vector<1x18x32xf32>
    %6 = vector.shape_cast %5 : vector<1x18x32xf32> to vector<18x32xf32>
    %c0_6 = arith.constant 0 : index
    %c0_7 = arith.constant 0 : index
    %7 = vector.load %arg4[%c0_6, %c0_7] : memref<18x32xf32, #tpu.memory_space<vmem>>, vector<18x32xf32>
    %c0_8 = arith.constant 0 : index
    %c0_9 = arith.constant 0 : index
    %8 = vector.load %arg5[%c0_8, %c0_9] : memref<8x32xf32, #tpu.memory_space<vmem>>, vector<8x32xf32>
    %c0_10 = arith.constant 0 : index
    %c0_11 = arith.constant 0 : index
    %c0_12 = arith.constant 0 : index
    %9 = vector.load %arg6[%c0_10, %c0_11, %c0_12] : memref<1x256x32xbf16, #tpu.memory_space<vmem>>, vector<1x256x32xbf16>
    %10 = vector.shape_cast %9 : vector<1x256x32xbf16> to vector<256x32xbf16>
    %c0_13 = arith.constant 0 : index
    %c0_14 = arith.constant 0 : index
    %c0_15 = arith.constant 0 : index
    %11 = vector.load %arg7[%c0_13, %c0_14, %c0_15] : memref<1x128x32xbf16, #tpu.memory_space<vmem>>, vector<1x128x32xbf16>
    %12 = vector.shape_cast %11 : vector<1x128x32xbf16> to vector<128x32xbf16>
    %c0_16 = arith.constant 0 : index
    %c0_17 = arith.constant 0 : index
    %c0_18 = arith.constant 0 : index
    %13 = vector.load %arg8[%c0_16, %c0_17, %c0_18] : memref<1x15x32xf32, #tpu.memory_space<vmem>>, vector<1x15x32xf32>
    %14 = vector.shape_cast %13 : vector<1x15x32xf32> to vector<15x32xf32>
    %15 = arith.addf %4, %8 : vector<8x32xf32>
    %16 = arith.truncf %15 : vector<8x32xf32> to vector<8x32xbf16>
    %17 = arith.truncf %4 : vector<8x32xf32> to vector<8x32xbf16>
    %18 = vector.extract_strided_slice %10 {offsets = [0, 0], sizes = [64, 32], strides = [1, 1]} : vector<256x32xbf16> to vector<64x32xbf16>
    %cst = arith.constant dense<0.000000e+00> : vector<8x64xf32>
    %19 = tpu.matmul %16, %18, %cst {dimension_numbers = #tpu.dot_dimension_numbers<[1], [1], [0], [0], [0, 0, 1, 0], [], []>} : vector<8x32xbf16>, vector<64x32xbf16>, vector<8x64xf32> -> vector<8x64xf32>
    %20 = vector.extract_strided_slice %19 {offsets = [0, 0], sizes = [8, 32], strides = [1, 1]} : vector<8x64xf32> to vector<8x32xf32>
    %21 = vector.extract_strided_slice %14 {offsets = [0, 0], sizes = [1, 32], strides = [1, 1]} : vector<15x32xf32> to vector<1x32xf32>
    %22 = vector.broadcast %21 : vector<1x32xf32> to vector<8x32xf32>
    %23 = arith.addf %20, %22 : vector<8x32xf32>
    %24 = vector.extract_strided_slice %19 {offsets = [0, 32], sizes = [8, 32], strides = [1, 1]} : vector<8x64xf32> to vector<8x32xf32>
    %25 = vector.extract_strided_slice %14 {offsets = [1, 0], sizes = [1, 32], strides = [1, 1]} : vector<15x32xf32> to vector<1x32xf32>
    %26 = vector.broadcast %25 : vector<1x32xf32> to vector<8x32xf32>
    %27 = arith.addf %24, %26 : vector<8x32xf32>
    %28 = vector.extract_strided_slice %10 {offsets = [64, 0], sizes = [32, 32], strides = [1, 1]} : vector<256x32xbf16> to vector<32x32xbf16>
    %cst_19 = arith.constant dense<0.000000e+00> : vector<8x32xf32>
    %29 = tpu.matmul %17, %28, %cst_19 {dimension_numbers = #tpu.dot_dimension_numbers<[1], [1], [0], [0], [0, 0, 1, 0], [], []>} : vector<8x32xbf16>, vector<32x32xbf16>, vector<8x32xf32> -> vector<8x32xf32>
    %30 = vector.extract_strided_slice %14 {offsets = [2, 0], sizes = [1, 32], strides = [1, 1]} : vector<15x32xf32> to vector<1x32xf32>
    %31 = vector.broadcast %30 : vector<1x32xf32> to vector<8x32xf32>
    %32 = arith.addf %29, %31 : vector<8x32xf32>
    %33 = vector.extract_strided_slice %10 {offsets = [96, 0], sizes = [32, 32], strides = [1, 1]} : vector<256x32xbf16> to vector<32x32xbf16>
    %34 = vector.extract_strided_slice %14 {offsets = [3, 0], sizes = [1, 32], strides = [1, 1]} : vector<15x32xf32> to vector<1x32xf32>
    %35 = arith.truncf %23 : vector<8x32xf32> to vector<8x32xbf16>
    %36 = arith.truncf %27 : vector<8x32xf32> to vector<8x32xbf16>
    %37 = arith.truncf %32 : vector<8x32xf32> to vector<8x32xbf16>
    %38 = vector.extract_strided_slice %35 {offsets = [0, 0], sizes = [8, 8], strides = [1, 1]} : vector<8x32xbf16> to vector<8x8xbf16>
    %39 = vector.extract_strided_slice %36 {offsets = [0, 0], sizes = [8, 8], strides = [1, 1]} : vector<8x32xbf16> to vector<8x8xbf16>
    %cst_20 = arith.constant dense<0.000000e+00> : vector<8x8xf32>
    %40 = tpu.matmul %38, %39, %cst_20 {dimension_numbers = #tpu.dot_dimension_numbers<[1], [1], [0], [0], [0, 0, 1, 0], [], []>} : vector<8x8xbf16>, vector<8x8xbf16>, vector<8x8xf32> -> vector<8x8xf32>
    %cst_21 = arith.constant 0.353553385 : f32
    %41 = vector.broadcast %cst_21 : f32 to vector<8x8xf32>
    %42 = arith.mulf %40, %41 : vector<8x8xf32>
    %cst_22 = arith.constant dense<0xFF800000> : vector<8xf32>
    %43 = vector.multi_reduction <maximumf>, %42, %cst_22 [1] : vector<8x8xf32> to vector<8xf32>
    %44 = vector.shape_cast %43 : vector<8xf32> to vector<8x1xf32>
    %45 = vector.broadcast %44 : vector<8x1xf32> to vector<8x8xf32>
    %46 = arith.subf %42, %45 : vector<8x8xf32>
    %47 = math.exp %46 : vector<8x8xf32>
    %cst_23 = arith.constant dense<0.000000e+00> : vector<8xf32>
    %48 = vector.multi_reduction <add>, %47, %cst_23 [1] : vector<8x8xf32> to vector<8xf32>
    %49 = vector.shape_cast %48 : vector<8xf32> to vector<8x1xf32>
    %50 = tpu.reciprocal %49 {approx = true} : vector<8x1xf32> -> vector<8x1xf32>
    %51 = vector.broadcast %50 : vector<8x1xf32> to vector<8x8xf32>
    %52 = arith.mulf %47, %51 : vector<8x8xf32>
    %53 = arith.truncf %52 : vector<8x8xf32> to vector<8x8xbf16>
    %54 = vector.extract_strided_slice %37 {offsets = [0, 0], sizes = [8, 8], strides = [1, 1]} : vector<8x32xbf16> to vector<8x8xbf16>
    %cst_24 = arith.constant dense<0.000000e+00> : vector<8x8xf32>
    %55 = tpu.matmul %53, %54, %cst_24 {dimension_numbers = #tpu.dot_dimension_numbers<[1], [0], [0], [1], [0, 0, 1, 1], [], []>} : vector<8x8xbf16>, vector<8x8xbf16>, vector<8x8xf32> -> vector<8x8xf32>
    %56 = vector.extract_strided_slice %35 {offsets = [0, 8], sizes = [8, 8], strides = [1, 1]} : vector<8x32xbf16> to vector<8x8xbf16>
    %57 = vector.extract_strided_slice %36 {offsets = [0, 8], sizes = [8, 8], strides = [1, 1]} : vector<8x32xbf16> to vector<8x8xbf16>
    %cst_25 = arith.constant dense<0.000000e+00> : vector<8x8xf32>
    %58 = tpu.matmul %56, %57, %cst_25 {dimension_numbers = #tpu.dot_dimension_numbers<[1], [1], [0], [0], [0, 0, 1, 0], [], []>} : vector<8x8xbf16>, vector<8x8xbf16>, vector<8x8xf32> -> vector<8x8xf32>
    %cst_26 = arith.constant 0.353553385 : f32
    %59 = vector.broadcast %cst_26 : f32 to vector<8x8xf32>
    %60 = arith.mulf %58, %59 : vector<8x8xf32>
    %cst_27 = arith.constant dense<0xFF800000> : vector<8xf32>
    %61 = vector.multi_reduction <maximumf>, %60, %cst_27 [1] : vector<8x8xf32> to vector<8xf32>
    %62 = vector.shape_cast %61 : vector<8xf32> to vector<8x1xf32>
    %63 = vector.broadcast %62 : vector<8x1xf32> to vector<8x8xf32>
    %64 = arith.subf %60, %63 : vector<8x8xf32>
    %65 = math.exp %64 : vector<8x8xf32>
    %cst_28 = arith.constant dense<0.000000e+00> : vector<8xf32>
    %66 = vector.multi_reduction <add>, %65, %cst_28 [1] : vector<8x8xf32> to vector<8xf32>
    %67 = vector.shape_cast %66 : vector<8xf32> to vector<8x1xf32>
    %68 = tpu.reciprocal %67 {approx = true} : vector<8x1xf32> -> vector<8x1xf32>
    %69 = vector.broadcast %68 : vector<8x1xf32> to vector<8x8xf32>
    %70 = arith.mulf %65, %69 : vector<8x8xf32>
    %71 = arith.truncf %70 : vector<8x8xf32> to vector<8x8xbf16>
    %72 = vector.extract_strided_slice %37 {offsets = [0, 8], sizes = [8, 8], strides = [1, 1]} : vector<8x32xbf16> to vector<8x8xbf16>
    %cst_29 = arith.constant dense<0.000000e+00> : vector<8x8xf32>
    %73 = tpu.matmul %71, %72, %cst_29 {dimension_numbers = #tpu.dot_dimension_numbers<[1], [0], [0], [1], [0, 0, 1, 1], [], []>} : vector<8x8xbf16>, vector<8x8xbf16>, vector<8x8xf32> -> vector<8x8xf32>
    %74 = vector.extract_strided_slice %35 {offsets = [0, 16], sizes = [8, 8], strides = [1, 1]} : vector<8x32xbf16> to vector<8x8xbf16>
    %75 = vector.extract_strided_slice %36 {offsets = [0, 16], sizes = [8, 8], strides = [1, 1]} : vector<8x32xbf16> to vector<8x8xbf16>
    %cst_30 = arith.constant dense<0.000000e+00> : vector<8x8xf32>
    %76 = tpu.matmul %74, %75, %cst_30 {dimension_numbers = #tpu.dot_dimension_numbers<[1], [1], [0], [0], [0, 0, 1, 0], [], []>} : vector<8x8xbf16>, vector<8x8xbf16>, vector<8x8xf32> -> vector<8x8xf32>
    %cst_31 = arith.constant 0.353553385 : f32
    %77 = vector.broadcast %cst_31 : f32 to vector<8x8xf32>
    %78 = arith.mulf %76, %77 : vector<8x8xf32>
    %cst_32 = arith.constant dense<0xFF800000> : vector<8xf32>
    %79 = vector.multi_reduction <maximumf>, %78, %cst_32 [1] : vector<8x8xf32> to vector<8xf32>
    %80 = vector.shape_cast %79 : vector<8xf32> to vector<8x1xf32>
    %81 = vector.broadcast %80 : vector<8x1xf32> to vector<8x8xf32>
    %82 = arith.subf %78, %81 : vector<8x8xf32>
    %83 = math.exp %82 : vector<8x8xf32>
    %cst_33 = arith.constant dense<0.000000e+00> : vector<8xf32>
    %84 = vector.multi_reduction <add>, %83, %cst_33 [1] : vector<8x8xf32> to vector<8xf32>
    %85 = vector.shape_cast %84 : vector<8xf32> to vector<8x1xf32>
    %86 = tpu.reciprocal %85 {approx = true} : vector<8x1xf32> -> vector<8x1xf32>
    %87 = vector.broadcast %86 : vector<8x1xf32> to vector<8x8xf32>
    %88 = arith.mulf %83, %87 : vector<8x8xf32>
    %89 = arith.truncf %88 : vector<8x8xf32> to vector<8x8xbf16>
    %90 = vector.extract_strided_slice %37 {offsets = [0, 16], sizes = [8, 8], strides = [1, 1]} : vector<8x32xbf16> to vector<8x8xbf16>
    %cst_34 = arith.constant dense<0.000000e+00> : vector<8x8xf32>
    %91 = tpu.matmul %89, %90, %cst_34 {dimension_numbers = #tpu.dot_dimension_numbers<[1], [0], [0], [1], [0, 0, 1, 1], [], []>} : vector<8x8xbf16>, vector<8x8xbf16>, vector<8x8xf32> -> vector<8x8xf32>
    %92 = vector.extract_strided_slice %35 {offsets = [0, 24], sizes = [8, 8], strides = [1, 1]} : vector<8x32xbf16> to vector<8x8xbf16>
    %93 = vector.extract_strided_slice %36 {offsets = [0, 24], sizes = [8, 8], strides = [1, 1]} : vector<8x32xbf16> to vector<8x8xbf16>
    %cst_35 = arith.constant dense<0.000000e+00> : vector<8x8xf32>
    %94 = tpu.matmul %92, %93, %cst_35 {dimension_numbers = #tpu.dot_dimension_numbers<[1], [1], [0], [0], [0, 0, 1, 0], [], []>} : vector<8x8xbf16>, vector<8x8xbf16>, vector<8x8xf32> -> vector<8x8xf32>
    %cst_36 = arith.constant 0.353553385 : f32
    %95 = vector.broadcast %cst_36 : f32 to vector<8x8xf32>
    %96 = arith.mulf %94, %95 : vector<8x8xf32>
    %cst_37 = arith.constant dense<0xFF800000> : vector<8xf32>
    %97 = vector.multi_reduction <maximumf>, %96, %cst_37 [1] : vector<8x8xf32> to vector<8xf32>
    %98 = vector.shape_cast %97 : vector<8xf32> to vector<8x1xf32>
    %99 = vector.broadcast %98 : vector<8x1xf32> to vector<8x8xf32>
    %100 = arith.subf %96, %99 : vector<8x8xf32>
    %101 = math.exp %100 : vector<8x8xf32>
    %cst_38 = arith.constant dense<0.000000e+00> : vector<8xf32>
    %102 = vector.multi_reduction <add>, %101, %cst_38 [1] : vector<8x8xf32> to vector<8xf32>
    %103 = vector.shape_cast %102 : vector<8xf32> to vector<8x1xf32>
    %104 = tpu.reciprocal %103 {approx = true} : vector<8x1xf32> -> vector<8x1xf32>
    %105 = vector.broadcast %104 : vector<8x1xf32> to vector<8x8xf32>
    %106 = arith.mulf %101, %105 : vector<8x8xf32>
    %107 = arith.truncf %106 : vector<8x8xf32> to vector<8x8xbf16>
    %108 = vector.extract_strided_slice %37 {offsets = [0, 24], sizes = [8, 8], strides = [1, 1]} : vector<8x32xbf16> to vector<8x8xbf16>
    %cst_39 = arith.constant dense<0.000000e+00> : vector<8x8xf32>
    %109 = tpu.matmul %107, %108, %cst_39 {dimension_numbers = #tpu.dot_dimension_numbers<[1], [0], [0], [1], [0, 0, 1, 1], [], []>} : vector<8x8xbf16>, vector<8x8xbf16>, vector<8x8xf32> -> vector<8x8xf32>
    %110 = tpu.concatenate %55, %73, %91, %109 in 1 : vector<8x8xf32>, vector<8x8xf32>, vector<8x8xf32>, vector<8x8xf32> -> vector<8x32xf32>
    %111 = arith.truncf %110 : vector<8x32xf32> to vector<8x32xbf16>
    %cst_40 = arith.constant dense<0.000000e+00> : vector<8x32xf32>
    %112 = tpu.matmul %111, %33, %cst_40 {dimension_numbers = #tpu.dot_dimension_numbers<[1], [1], [0], [0], [0, 0, 1, 0], [], []>} : vector<8x32xbf16>, vector<32x32xbf16>, vector<8x32xf32> -> vector<8x32xf32>
    %113 = vector.broadcast %34 : vector<1x32xf32> to vector<8x32xf32>
    %114 = arith.addf %112, %113 : vector<8x32xf32>
    %115 = arith.addf %4, %114 : vector<8x32xf32>
    %116 = vector.extract_strided_slice %14 {offsets = [8, 0], sizes = [1, 32], strides = [1, 1]} : vector<15x32xf32> to vector<1x32xf32>
    %117 = vector.extract_strided_slice %14 {offsets = [9, 0], sizes = [1, 32], strides = [1, 1]} : vector<15x32xf32> to vector<1x32xf32>
    %cst_41 = arith.constant dense<0.000000e+00> : vector<8xf32>
    %118 = vector.multi_reduction <add>, %115, %cst_41 [1] : vector<8x32xf32> to vector<8xf32>
    %119 = vector.shape_cast %118 : vector<8xf32> to vector<8x1xf32>
    %cst_42 = arith.constant 3.200000e+01 : f32
    %120 = vector.broadcast %cst_42 : f32 to vector<8x1xf32>
    %121 = arith.divf %119, %120 : vector<8x1xf32>
    %122 = vector.broadcast %121 : vector<8x1xf32> to vector<8x32xf32>
    %123 = arith.subf %115, %122 : vector<8x32xf32>
    %124 = arith.mulf %123, %123 : vector<8x32xf32>
    %cst_43 = arith.constant dense<0.000000e+00> : vector<8xf32>
    %125 = vector.multi_reduction <add>, %124, %cst_43 [1] : vector<8x32xf32> to vector<8xf32>
    %126 = vector.shape_cast %125 : vector<8xf32> to vector<8x1xf32>
    %cst_44 = arith.constant 3.200000e+01 : f32
    %127 = vector.broadcast %cst_44 : f32 to vector<8x1xf32>
    %128 = arith.divf %126, %127 : vector<8x1xf32>
    %cst_45 = arith.constant 9.99999974E-6 : f32
    %129 = vector.broadcast %cst_45 : f32 to vector<8x1xf32>
    %130 = arith.addf %128, %129 : vector<8x1xf32>
    %131 = math.rsqrt %130 : vector<8x1xf32>
    %132 = vector.broadcast %131 : vector<8x1xf32> to vector<8x32xf32>
    %133 = arith.mulf %123, %132 : vector<8x32xf32>
    %134 = vector.broadcast %116 : vector<1x32xf32> to vector<8x32xf32>
    %135 = arith.mulf %133, %134 : vector<8x32xf32>
    %136 = vector.broadcast %117 : vector<1x32xf32> to vector<8x32xf32>
    %137 = arith.addf %135, %136 : vector<8x32xf32>
    %138 = arith.addf %137, %8 : vector<8x32xf32>
    %139 = arith.truncf %138 : vector<8x32xf32> to vector<8x32xbf16>
    %140 = vector.extract_strided_slice %10 {offsets = [128, 0], sizes = [32, 32], strides = [1, 1]} : vector<256x32xbf16> to vector<32x32xbf16>
    %cst_46 = arith.constant dense<0.000000e+00> : vector<8x32xf32>
    %141 = tpu.matmul %139, %140, %cst_46 {dimension_numbers = #tpu.dot_dimension_numbers<[1], [1], [0], [0], [0, 0, 1, 0], [], []>} : vector<8x32xbf16>, vector<32x32xbf16>, vector<8x32xf32> -> vector<8x32xf32>
    %142 = vector.extract_strided_slice %14 {offsets = [4, 0], sizes = [1, 32], strides = [1, 1]} : vector<15x32xf32> to vector<1x32xf32>
    %143 = vector.broadcast %142 : vector<1x32xf32> to vector<8x32xf32>
    %144 = arith.addf %141, %143 : vector<8x32xf32>
    %145 = arith.addf %6, %7 : vector<18x32xf32>
    %146 = arith.truncf %145 : vector<18x32xf32> to vector<18x32xbf16>
    %147 = vector.extract_strided_slice %10 {offsets = [160, 0], sizes = [32, 32], strides = [1, 1]} : vector<256x32xbf16> to vector<32x32xbf16>
    %cst_47 = arith.constant dense<0.000000e+00> : vector<18x32xf32>
    %148 = tpu.matmul %146, %147, %cst_47 {dimension_numbers = #tpu.dot_dimension_numbers<[1], [1], [0], [0], [0, 0, 1, 0], [], []>} : vector<18x32xbf16>, vector<32x32xbf16>, vector<18x32xf32> -> vector<18x32xf32>
    %149 = vector.extract_strided_slice %14 {offsets = [5, 0], sizes = [1, 32], strides = [1, 1]} : vector<15x32xf32> to vector<1x32xf32>
    %150 = vector.broadcast %149 : vector<1x32xf32> to vector<18x32xf32>
    %151 = arith.addf %148, %150 : vector<18x32xf32>
    %152 = arith.truncf %6 : vector<18x32xf32> to vector<18x32xbf16>
    %153 = vector.extract_strided_slice %10 {offsets = [192, 0], sizes = [32, 32], strides = [1, 1]} : vector<256x32xbf16> to vector<32x32xbf16>
    %cst_48 = arith.constant dense<0.000000e+00> : vector<18x32xf32>
    %154 = tpu.matmul %152, %153, %cst_48 {dimension_numbers = #tpu.dot_dimension_numbers<[1], [1], [0], [0], [0, 0, 1, 0], [], []>} : vector<18x32xbf16>, vector<32x32xbf16>, vector<18x32xf32> -> vector<18x32xf32>
    %155 = vector.extract_strided_slice %14 {offsets = [6, 0], sizes = [1, 32], strides = [1, 1]} : vector<15x32xf32> to vector<1x32xf32>
    %156 = vector.broadcast %155 : vector<1x32xf32> to vector<18x32xf32>
    %157 = arith.addf %154, %156 : vector<18x32xf32>
    %158 = vector.extract_strided_slice %10 {offsets = [224, 0], sizes = [32, 32], strides = [1, 1]} : vector<256x32xbf16> to vector<32x32xbf16>
    %159 = vector.extract_strided_slice %14 {offsets = [7, 0], sizes = [1, 32], strides = [1, 1]} : vector<15x32xf32> to vector<1x32xf32>
    %160 = arith.truncf %144 : vector<8x32xf32> to vector<8x32xbf16>
    %161 = arith.truncf %151 : vector<18x32xf32> to vector<18x32xbf16>
    %162 = arith.truncf %157 : vector<18x32xf32> to vector<18x32xbf16>
    %163 = vector.extract_strided_slice %160 {offsets = [0, 0], sizes = [8, 8], strides = [1, 1]} : vector<8x32xbf16> to vector<8x8xbf16>
    %164 = vector.extract_strided_slice %161 {offsets = [0, 0], sizes = [18, 8], strides = [1, 1]} : vector<18x32xbf16> to vector<18x8xbf16>
    %cst_49 = arith.constant dense<0.000000e+00> : vector<8x18xf32>
    %165 = tpu.matmul %163, %164, %cst_49 {dimension_numbers = #tpu.dot_dimension_numbers<[1], [1], [0], [0], [0, 0, 1, 0], [], []>} : vector<8x8xbf16>, vector<18x8xbf16>, vector<8x18xf32> -> vector<8x18xf32>
    %cst_50 = arith.constant 0.353553385 : f32
    %166 = vector.broadcast %cst_50 : f32 to vector<8x18xf32>
    %167 = arith.mulf %165, %166 : vector<8x18xf32>
    %cst_51 = arith.constant dense<0xFF800000> : vector<8xf32>
    %168 = vector.multi_reduction <maximumf>, %167, %cst_51 [1] : vector<8x18xf32> to vector<8xf32>
    %169 = vector.shape_cast %168 : vector<8xf32> to vector<8x1xf32>
    %170 = vector.broadcast %169 : vector<8x1xf32> to vector<8x18xf32>
    %171 = arith.subf %167, %170 : vector<8x18xf32>
    %172 = math.exp %171 : vector<8x18xf32>
    %cst_52 = arith.constant dense<0.000000e+00> : vector<8xf32>
    %173 = vector.multi_reduction <add>, %172, %cst_52 [1] : vector<8x18xf32> to vector<8xf32>
    %174 = vector.shape_cast %173 : vector<8xf32> to vector<8x1xf32>
    %175 = tpu.reciprocal %174 {approx = true} : vector<8x1xf32> -> vector<8x1xf32>
    %176 = vector.broadcast %175 : vector<8x1xf32> to vector<8x18xf32>
    %177 = arith.mulf %172, %176 : vector<8x18xf32>
    %178 = arith.truncf %177 : vector<8x18xf32> to vector<8x18xbf16>
    %179 = vector.extract_strided_slice %162 {offsets = [0, 0], sizes = [18, 8], strides = [1, 1]} : vector<18x32xbf16> to vector<18x8xbf16>
    %cst_53 = arith.constant dense<0.000000e+00> : vector<8x8xf32>
    %180 = tpu.matmul %178, %179, %cst_53 {dimension_numbers = #tpu.dot_dimension_numbers<[1], [0], [0], [1], [0, 0, 1, 1], [], []>} : vector<8x18xbf16>, vector<18x8xbf16>, vector<8x8xf32> -> vector<8x8xf32>
    %181 = vector.extract_strided_slice %160 {offsets = [0, 8], sizes = [8, 8], strides = [1, 1]} : vector<8x32xbf16> to vector<8x8xbf16>
    %182 = vector.extract_strided_slice %161 {offsets = [0, 8], sizes = [18, 8], strides = [1, 1]} : vector<18x32xbf16> to vector<18x8xbf16>
    %cst_54 = arith.constant dense<0.000000e+00> : vector<8x18xf32>
    %183 = tpu.matmul %181, %182, %cst_54 {dimension_numbers = #tpu.dot_dimension_numbers<[1], [1], [0], [0], [0, 0, 1, 0], [], []>} : vector<8x8xbf16>, vector<18x8xbf16>, vector<8x18xf32> -> vector<8x18xf32>
    %cst_55 = arith.constant 0.353553385 : f32
    %184 = vector.broadcast %cst_55 : f32 to vector<8x18xf32>
    %185 = arith.mulf %183, %184 : vector<8x18xf32>
    %cst_56 = arith.constant dense<0xFF800000> : vector<8xf32>
    %186 = vector.multi_reduction <maximumf>, %185, %cst_56 [1] : vector<8x18xf32> to vector<8xf32>
    %187 = vector.shape_cast %186 : vector<8xf32> to vector<8x1xf32>
    %188 = vector.broadcast %187 : vector<8x1xf32> to vector<8x18xf32>
    %189 = arith.subf %185, %188 : vector<8x18xf32>
    %190 = math.exp %189 : vector<8x18xf32>
    %cst_57 = arith.constant dense<0.000000e+00> : vector<8xf32>
    %191 = vector.multi_reduction <add>, %190, %cst_57 [1] : vector<8x18xf32> to vector<8xf32>
    %192 = vector.shape_cast %191 : vector<8xf32> to vector<8x1xf32>
    %193 = tpu.reciprocal %192 {approx = true} : vector<8x1xf32> -> vector<8x1xf32>
    %194 = vector.broadcast %193 : vector<8x1xf32> to vector<8x18xf32>
    %195 = arith.mulf %190, %194 : vector<8x18xf32>
    %196 = arith.truncf %195 : vector<8x18xf32> to vector<8x18xbf16>
    %197 = vector.extract_strided_slice %162 {offsets = [0, 8], sizes = [18, 8], strides = [1, 1]} : vector<18x32xbf16> to vector<18x8xbf16>
    %cst_58 = arith.constant dense<0.000000e+00> : vector<8x8xf32>
    %198 = tpu.matmul %196, %197, %cst_58 {dimension_numbers = #tpu.dot_dimension_numbers<[1], [0], [0], [1], [0, 0, 1, 1], [], []>} : vector<8x18xbf16>, vector<18x8xbf16>, vector<8x8xf32> -> vector<8x8xf32>
    %199 = vector.extract_strided_slice %160 {offsets = [0, 16], sizes = [8, 8], strides = [1, 1]} : vector<8x32xbf16> to vector<8x8xbf16>
    %200 = vector.extract_strided_slice %161 {offsets = [0, 16], sizes = [18, 8], strides = [1, 1]} : vector<18x32xbf16> to vector<18x8xbf16>
    %cst_59 = arith.constant dense<0.000000e+00> : vector<8x18xf32>
    %201 = tpu.matmul %199, %200, %cst_59 {dimension_numbers = #tpu.dot_dimension_numbers<[1], [1], [0], [0], [0, 0, 1, 0], [], []>} : vector<8x8xbf16>, vector<18x8xbf16>, vector<8x18xf32> -> vector<8x18xf32>
    %cst_60 = arith.constant 0.353553385 : f32
    %202 = vector.broadcast %cst_60 : f32 to vector<8x18xf32>
    %203 = arith.mulf %201, %202 : vector<8x18xf32>
    %cst_61 = arith.constant dense<0xFF800000> : vector<8xf32>
    %204 = vector.multi_reduction <maximumf>, %203, %cst_61 [1] : vector<8x18xf32> to vector<8xf32>
    %205 = vector.shape_cast %204 : vector<8xf32> to vector<8x1xf32>
    %206 = vector.broadcast %205 : vector<8x1xf32> to vector<8x18xf32>
    %207 = arith.subf %203, %206 : vector<8x18xf32>
    %208 = math.exp %207 : vector<8x18xf32>
    %cst_62 = arith.constant dense<0.000000e+00> : vector<8xf32>
    %209 = vector.multi_reduction <add>, %208, %cst_62 [1] : vector<8x18xf32> to vector<8xf32>
    %210 = vector.shape_cast %209 : vector<8xf32> to vector<8x1xf32>
    %211 = tpu.reciprocal %210 {approx = true} : vector<8x1xf32> -> vector<8x1xf32>
    %212 = vector.broadcast %211 : vector<8x1xf32> to vector<8x18xf32>
    %213 = arith.mulf %208, %212 : vector<8x18xf32>
    %214 = arith.truncf %213 : vector<8x18xf32> to vector<8x18xbf16>
    %215 = vector.extract_strided_slice %162 {offsets = [0, 16], sizes = [18, 8], strides = [1, 1]} : vector<18x32xbf16> to vector<18x8xbf16>
    %cst_63 = arith.constant dense<0.000000e+00> : vector<8x8xf32>
    %216 = tpu.matmul %214, %215, %cst_63 {dimension_numbers = #tpu.dot_dimension_numbers<[1], [0], [0], [1], [0, 0, 1, 1], [], []>} : vector<8x18xbf16>, vector<18x8xbf16>, vector<8x8xf32> -> vector<8x8xf32>
    %217 = vector.extract_strided_slice %160 {offsets = [0, 24], sizes = [8, 8], strides = [1, 1]} : vector<8x32xbf16> to vector<8x8xbf16>
    %218 = vector.extract_strided_slice %161 {offsets = [0, 24], sizes = [18, 8], strides = [1, 1]} : vector<18x32xbf16> to vector<18x8xbf16>
    %cst_64 = arith.constant dense<0.000000e+00> : vector<8x18xf32>
    %219 = tpu.matmul %217, %218, %cst_64 {dimension_numbers = #tpu.dot_dimension_numbers<[1], [1], [0], [0], [0, 0, 1, 0], [], []>} : vector<8x8xbf16>, vector<18x8xbf16>, vector<8x18xf32> -> vector<8x18xf32>
    %cst_65 = arith.constant 0.353553385 : f32
    %220 = vector.broadcast %cst_65 : f32 to vector<8x18xf32>
    %221 = arith.mulf %219, %220 : vector<8x18xf32>
    %cst_66 = arith.constant dense<0xFF800000> : vector<8xf32>
    %222 = vector.multi_reduction <maximumf>, %221, %cst_66 [1] : vector<8x18xf32> to vector<8xf32>
    %223 = vector.shape_cast %222 : vector<8xf32> to vector<8x1xf32>
    %224 = vector.broadcast %223 : vector<8x1xf32> to vector<8x18xf32>
    %225 = arith.subf %221, %224 : vector<8x18xf32>
    %226 = math.exp %225 : vector<8x18xf32>
    %cst_67 = arith.constant dense<0.000000e+00> : vector<8xf32>
    %227 = vector.multi_reduction <add>, %226, %cst_67 [1] : vector<8x18xf32> to vector<8xf32>
    %228 = vector.shape_cast %227 : vector<8xf32> to vector<8x1xf32>
    %229 = tpu.reciprocal %228 {approx = true} : vector<8x1xf32> -> vector<8x1xf32>
    %230 = vector.broadcast %229 : vector<8x1xf32> to vector<8x18xf32>
    %231 = arith.mulf %226, %230 : vector<8x18xf32>
    %232 = arith.truncf %231 : vector<8x18xf32> to vector<8x18xbf16>
    %233 = vector.extract_strided_slice %162 {offsets = [0, 24], sizes = [18, 8], strides = [1, 1]} : vector<18x32xbf16> to vector<18x8xbf16>
    %cst_68 = arith.constant dense<0.000000e+00> : vector<8x8xf32>
    %234 = tpu.matmul %232, %233, %cst_68 {dimension_numbers = #tpu.dot_dimension_numbers<[1], [0], [0], [1], [0, 0, 1, 1], [], []>} : vector<8x18xbf16>, vector<18x8xbf16>, vector<8x8xf32> -> vector<8x8xf32>
    %235 = tpu.concatenate %180, %198, %216, %234 in 1 : vector<8x8xf32>, vector<8x8xf32>, vector<8x8xf32>, vector<8x8xf32> -> vector<8x32xf32>
    %236 = arith.truncf %235 : vector<8x32xf32> to vector<8x32xbf16>
    %cst_69 = arith.constant dense<0.000000e+00> : vector<8x32xf32>
    %237 = tpu.matmul %236, %158, %cst_69 {dimension_numbers = #tpu.dot_dimension_numbers<[1], [1], [0], [0], [0, 0, 1, 0], [], []>} : vector<8x32xbf16>, vector<32x32xbf16>, vector<8x32xf32> -> vector<8x32xf32>
    %238 = vector.broadcast %159 : vector<1x32xf32> to vector<8x32xf32>
    %239 = arith.addf %237, %238 : vector<8x32xf32>
    %240 = arith.addf %137, %239 : vector<8x32xf32>
    %241 = vector.extract_strided_slice %14 {offsets = [10, 0], sizes = [1, 32], strides = [1, 1]} : vector<15x32xf32> to vector<1x32xf32>
    %242 = vector.extract_strided_slice %14 {offsets = [11, 0], sizes = [1, 32], strides = [1, 1]} : vector<15x32xf32> to vector<1x32xf32>
    %cst_70 = arith.constant dense<0.000000e+00> : vector<8xf32>
    %243 = vector.multi_reduction <add>, %240, %cst_70 [1] : vector<8x32xf32> to vector<8xf32>
    %244 = vector.shape_cast %243 : vector<8xf32> to vector<8x1xf32>
    %cst_71 = arith.constant 3.200000e+01 : f32
    %245 = vector.broadcast %cst_71 : f32 to vector<8x1xf32>
    %246 = arith.divf %244, %245 : vector<8x1xf32>
    %247 = vector.broadcast %246 : vector<8x1xf32> to vector<8x32xf32>
    %248 = arith.subf %240, %247 : vector<8x32xf32>
    %249 = arith.mulf %248, %248 : vector<8x32xf32>
    %cst_72 = arith.constant dense<0.000000e+00> : vector<8xf32>
    %250 = vector.multi_reduction <add>, %249, %cst_72 [1] : vector<8x32xf32> to vector<8xf32>
    %251 = vector.shape_cast %250 : vector<8xf32> to vector<8x1xf32>
    %cst_73 = arith.constant 3.200000e+01 : f32
    %252 = vector.broadcast %cst_73 : f32 to vector<8x1xf32>
    %253 = arith.divf %251, %252 : vector<8x1xf32>
    %cst_74 = arith.constant 9.99999974E-6 : f32
    %254 = vector.broadcast %cst_74 : f32 to vector<8x1xf32>
    %255 = arith.addf %253, %254 : vector<8x1xf32>
    %256 = math.rsqrt %255 : vector<8x1xf32>
    %257 = vector.broadcast %256 : vector<8x1xf32> to vector<8x32xf32>
    %258 = arith.mulf %248, %257 : vector<8x32xf32>
    %259 = vector.broadcast %241 : vector<1x32xf32> to vector<8x32xf32>
    %260 = arith.mulf %258, %259 : vector<8x32xf32>
    %261 = vector.broadcast %242 : vector<1x32xf32> to vector<8x32xf32>
    %262 = arith.addf %260, %261 : vector<8x32xf32>
    %263 = arith.truncf %262 : vector<8x32xf32> to vector<8x32xbf16>
    %264 = vector.extract_strided_slice %12 {offsets = [0, 0], sizes = [64, 32], strides = [1, 1]} : vector<128x32xbf16> to vector<64x32xbf16>
    %cst_75 = arith.constant dense<0.000000e+00> : vector<8x64xf32>
    %265 = tpu.matmul %263, %264, %cst_75 {dimension_numbers = #tpu.dot_dimension_numbers<[1], [1], [0], [0], [0, 0, 1, 0], [], []>} : vector<8x32xbf16>, vector<64x32xbf16>, vector<8x64xf32> -> vector<8x64xf32>
    %c0_76 = arith.constant 0 : index
    %c0_77 = arith.constant 0 : index
    %c0_78 = arith.constant 0 : index
    %266 = vector.load %arg9[%c0_76, %c0_77, %c0_78] : memref<1x1x64xf32, #tpu.memory_space<vmem>>, vector<1x1x64xf32>
    %267 = vector.shape_cast %266 : vector<1x1x64xf32> to vector<1x64xf32>
    %268 = vector.broadcast %267 : vector<1x64xf32> to vector<8x64xf32>
    %269 = arith.addf %265, %268 : vector<8x64xf32>
    %cst_79 = arith.constant 0.000000e+00 : f32
    %270 = vector.broadcast %cst_79 : f32 to vector<8x64xf32>
    %271 = arith.maximumf %269, %270 : vector<8x64xf32>
    %272 = arith.truncf %271 : vector<8x64xf32> to vector<8x64xbf16>
    %273 = vector.extract_strided_slice %12 {offsets = [64, 0], sizes = [64, 32], strides = [1, 1]} : vector<128x32xbf16> to vector<64x32xbf16>
    %cst_80 = arith.constant dense<0.000000e+00> : vector<8x32xf32>
    %274 = tpu.matmul %272, %273, %cst_80 {dimension_numbers = #tpu.dot_dimension_numbers<[1], [0], [0], [1], [0, 0, 1, 1], [], []>} : vector<8x64xbf16>, vector<64x32xbf16>, vector<8x32xf32> -> vector<8x32xf32>
    %275 = vector.extract_strided_slice %14 {offsets = [14, 0], sizes = [1, 32], strides = [1, 1]} : vector<15x32xf32> to vector<1x32xf32>
    %276 = vector.broadcast %275 : vector<1x32xf32> to vector<8x32xf32>
    %277 = arith.addf %274, %276 : vector<8x32xf32>
    %278 = arith.addf %262, %277 : vector<8x32xf32>
    %279 = vector.extract_strided_slice %14 {offsets = [12, 0], sizes = [1, 32], strides = [1, 1]} : vector<15x32xf32> to vector<1x32xf32>
    %280 = vector.extract_strided_slice %14 {offsets = [13, 0], sizes = [1, 32], strides = [1, 1]} : vector<15x32xf32> to vector<1x32xf32>
    %cst_81 = arith.constant dense<0.000000e+00> : vector<8xf32>
    %281 = vector.multi_reduction <add>, %278, %cst_81 [1] : vector<8x32xf32> to vector<8xf32>
    %282 = vector.shape_cast %281 : vector<8xf32> to vector<8x1xf32>
    %cst_82 = arith.constant 3.200000e+01 : f32
    %283 = vector.broadcast %cst_82 : f32 to vector<8x1xf32>
    %284 = arith.divf %282, %283 : vector<8x1xf32>
    %285 = vector.broadcast %284 : vector<8x1xf32> to vector<8x32xf32>
    %286 = arith.subf %278, %285 : vector<8x32xf32>
    %287 = arith.mulf %286, %286 : vector<8x32xf32>
    %cst_83 = arith.constant dense<0.000000e+00> : vector<8xf32>
    %288 = vector.multi_reduction <add>, %287, %cst_83 [1] : vector<8x32xf32> to vector<8xf32>
    %289 = vector.shape_cast %288 : vector<8xf32> to vector<8x1xf32>
    %cst_84 = arith.constant 3.200000e+01 : f32
    %290 = vector.broadcast %cst_84 : f32 to vector<8x1xf32>
    %291 = arith.divf %289, %290 : vector<8x1xf32>
    %cst_85 = arith.constant 9.99999974E-6 : f32
    %292 = vector.broadcast %cst_85 : f32 to vector<8x1xf32>
    %293 = arith.addf %291, %292 : vector<8x1xf32>
    %294 = math.rsqrt %293 : vector<8x1xf32>
    %295 = vector.broadcast %294 : vector<8x1xf32> to vector<8x32xf32>
    %296 = arith.mulf %286, %295 : vector<8x32xf32>
    %297 = vector.broadcast %279 : vector<1x32xf32> to vector<8x32xf32>
    %298 = arith.mulf %296, %297 : vector<8x32xf32>
    %299 = vector.broadcast %280 : vector<1x32xf32> to vector<8x32xf32>
    %300 = arith.addf %298, %299 : vector<8x32xf32>
    %c0_86 = arith.constant 0 : index
    %c0_87 = arith.constant 0 : index
    %c0_88 = arith.constant 0 : index
    %301 = vector.load %arg10[%c0_86, %c0_87, %c0_88] : memref<1x8x32xf32, #tpu.memory_space<vmem>>, vector<1x8x32xf32>
    %302 = vector.shape_cast %301 : vector<1x8x32xf32> to vector<8x32xf32>
    %303 = vector.shape_cast %300 : vector<8x32xf32> to vector<1x8x32xf32>
    tpu.vector_store %arg10[%c0_86, %c0_87, %c0_88], %303 {strides = array<i32>} : memref<1x8x32xf32, #tpu.memory_space<vmem>>, vector<1x8x32xf32>,
    return
  }
  func.func @transform_0(%arg0: i32, %arg1: i32) -> (i32, i32, i32) {
    %c0_i32 = arith.constant 0 : i32
    %c0_i32_0 = arith.constant 0 : i32
    %c0_i32_1 = arith.constant 0 : i32
    return %arg0, %c0_i32, %c0_i32_0 : i32, i32, i32
  }
  func.func @transform_1(%arg0: i32, %arg1: i32) -> (i32, i32, i32) {
    %c0_i32 = arith.constant 0 : i32
    %c0_i32_0 = arith.constant 0 : i32
    %c0_i32_1 = arith.constant 0 : i32
    return %arg0, %c0_i32, %c0_i32_0 : i32, i32, i32
  }
  func.func @transform_2(%arg0: i32, %arg1: i32) -> (i32, i32) {
    %c0_i32 = arith.constant 0 : i32
    %c0_i32_0 = arith.constant 0 : i32
    %c0_i32_1 = arith.constant 0 : i32
    return %c0_i32, %c0_i32_0 : i32, i32
  }
  func.func @transform_3(%arg0: i32, %arg1: i32) -> (i32, i32) {
    %c0_i32 = arith.constant 0 : i32
    %c0_i32_0 = arith.constant 0 : i32
    %c0_i32_1 = arith.constant 0 : i32
    return %c0_i32, %c0_i32_0 : i32, i32
  }
  func.func @transform_4(%arg0: i32, %arg1: i32) -> (i32, i32, i32) {
    %c0_i32 = arith.constant 0 : i32
    %c0_i32_0 = arith.constant 0 : i32
    %c0_i32_1 = arith.constant 0 : i32
    return %arg1, %c0_i32, %c0_i32_0 : i32, i32, i32
  }
  func.func @transform_5(%arg0: i32, %arg1: i32) -> (i32, i32, i32) {
    %c0_i32 = arith.constant 0 : i32
    %c0_i32_0 = arith.constant 0 : i32
    %c0_i32_1 = arith.constant 0 : i32
    return %arg1, %c0_i32, %c0_i32_0 : i32, i32, i32
  }
  func.func @transform_6(%arg0: i32, %arg1: i32) -> (i32, i32, i32) {
    %c0_i32 = arith.constant 0 : i32
    %c0_i32_0 = arith.constant 0 : i32
    %c0_i32_1 = arith.constant 0 : i32
    return %arg1, %c0_i32, %c0_i32_0 : i32, i32, i32
  }
  func.func @transform_7(%arg0: i32, %arg1: i32) -> (i32, i32, i32) {
    %c0_i32 = arith.constant 0 : i32
    %c0_i32_0 = arith.constant 0 : i32
    %c0_i32_1 = arith.constant 0 : i32
    return %arg1, %c0_i32, %c0_i32_0 : i32, i32, i32
  }
  func.func @transform_8(%arg0: i32, %arg1: i32) -> (i32, i32, i32) {
    %c0_i32 = arith.constant 0 : i32
    %c0_i32_0 = arith.constant 0 : i32
    %c0_i32_1 = arith.constant 0 : i32
    return %arg0, %c0_i32, %c0_i32_0 : i32, i32, i32
  }
}

</mosaic_0001>

<llo_original>
// kernel: act_forward.7
$region0: #{act_forward.7}
  #allocation0 [shape = 'u32[]', space=smem, size = 0x4, offset = 0x4, fixed_abs, tag = 'smem constant byte address 0x4 - core index']
  #allocation1 [shape = 'u32[72,128]{1,0:T(1,128)}', space=vmem, size = 0x9000, scoped, tag = 'internal scratch']
  %s0 = inlined_call_operand.vmem [shape: f32[32,48], index: 0, kind: input, shape index: {}]
  %s1 = inlined_call_operand.vmem [shape: bf16[32,48], index: 1, kind: input, shape index: {}]
  %s2 = inlined_call_operand.vmem [shape: f32[1,32], index: 2, kind: input, shape index: {}]
  %s3 = inlined_call_operand.vmem [shape: f32[32,32], index: 3, kind: output, shape index: {}]
  %s4 = sld [smem:[#allocation0]]
  $region22: #{act_forward.7} parent=0
    _
  %s6 = ssub.s32 1, %s4
  %s7 = scalar_select 0, %s6, %s4
  // Predicated region
  $region2: #{act_forward.7} parent=0 // pred_check
    _
  $region3: #{act_forward.7} parent=0 // pred_check_branch
    %9 = sbr.rel (0) target = $region5
  $region4: #{act_forward.7} parent=0 // pred_region
    _
  $region5: #{act_forward.7} parent=0 // pred_fallthru
    _
  // Predicated region
  $region6: #{act_forward.7} parent=0 // pred_check
    _
  $region7: #{act_forward.7} parent=0 // pred_check_branch
    %11 = sbr.rel (0) target = $region9
  $region8: #{act_forward.7} parent=0 // pred_region
    _
  $region9: #{act_forward.7} parent=0 // pred_fallthru
    _
  // Predicated region
  $region10: #{act_forward.7} parent=0 // pred_check
    _
  $region11: #{act_forward.7} parent=0 // pred_check_branch
    %13 = sbr.rel (0) target = $region13
  $region12: #{act_forward.7} parent=0 // pred_region
    _
  $region13: #{act_forward.7} parent=0 // pred_fallthru
    _
  %v15 = vld [vmem:[%s0] sm:$0xff]
  %v16 = vld [vmem:[%s0 + $0x8] sm:$0xff]
  %v17 = vld [vmem:[%s0 + $0x10] sm:$0xff]
  %v18 = vld [vmem:[%s0 + $0x18] sm:$0xff]
  %v19 = vpack.c.bf16 %v16, %v15
  %v20 = vpack.c.bf16 %v18, %v17
  %v21 = vld [vmem:[%s1] sm:$0xf]
  %v22 = vld [vmem:[%s1 + $0x4] sm:$0xf]
  %v23 = vld [vmem:[%s1 + $0x8] sm:$0xf]
  %v24 = vld [vmem:[%s1 + $0xc] sm:$0xf]
  %v25 = vld [vmem:[%s2] sm:$0x1]
  %v27 = vperm.slane %v25, 0
  %v33 = vunpack.c.l.b16 %v21
  %v34 = vunpack.c.l.b16 %v22
  %v35 = vunpack.c.l.b16 %v23
  %v36 = vunpack.c.l.b16 %v24
  %v37 = vpack.c.b16 %v34, %v33
  %v38 = vpack.c.b16 %v36, %v35
  %vm39 = vcmask 392192
  %v41 = vsel %vm39, %v19, 0
  %v44 = vsel %vm39, %v20, 0
  %v47 = vsel %vm39, %v37, 0
  %v50 = vsel %vm39, %v38, 0
  %52 = vmatpush.bf16.xpose.msra.mxu0 0
  %53 = vmatpush.bf16.xpose.msra.mxu0 0
  %54 = vmatpush.bf16.xpose.msra.mxu0 0
  %55 = vmatpush.bf16.xpose.msra.mxu0 0
  %56 = vmatpush.bf16.xpose.msra.mxu0 0
  %57 = vmatpush.bf16.xpose.msra.mxu0 0
  %58 = vmatpush.bf16.xpose.msra.mxu0 %v50
  %59 = vmatpush.bf16.xpose.msra.mxu0 %v47
  %60 = vmatmul.bf16.gmra.mxu0 %v41
  %v61 = vpop.f32.mrf.mxu0
  %v62 = vadd.f32 %v27, %v61
  %v63 = vpop.f32.mrf.mxu0
  %v64 = vadd.f32 %v27, %v63
  %65 = vmatmul.bf16.gmra.mxu0 %v44
  %v66 = vpop.f32.mrf.mxu0
  %v67 = vadd.f32 %v27, %v66
  %v68 = vpop.f32.mrf.mxu0
  %v69 = vadd.f32 %v27, %v68
  %70 = vdwg.mxu0
  %vm71 = vcmask 261120
  %72 = vst.msk [vmem:[%s3] sm:$0xff] %vm71, %v62
  %73 = vst.msk [vmem:[%s3 + $0x8] sm:$0xff] %vm71, %v64
  %74 = vst.msk [vmem:[%s3 + $0x10] sm:$0xff] %vm71, %v67
  %75 = vst.msk [vmem:[%s3 + $0x18] sm:$0xff] %vm71, %v69
  // Predicated region
  $region14: #{act_forward.7} parent=0 // pred_check
    _
  $region15: #{act_forward.7} parent=0 // pred_check_branch
    %77 = sbr.rel (0) target = $region17
  $region16: #{act_forward.7} parent=0 // pred_region
    _
  $region17: #{act_forward.7} parent=0 // pred_fallthru
    _
  // Predicated region
  $region18: #{act_forward.7} parent=0 // pred_check
    _
  $region19: #{act_forward.7} parent=0 // pred_check_branch
    %79 = sbr.rel (0) target = $region21
  $region20: #{act_forward.7} parent=0 // pred_region
    _
  $region21: #{act_forward.7} parent=0 // pred_fallthru
    _

// kernel: act_forward.6
$region0: #{act_forward.6}
  #allocation0 [shape = 'u32[]', space=smem, size = 0x4, offset = 0x4, fixed_abs, tag = 'smem constant byte address 0x4 - core index']
  #allocation1 [shape = 'u32[72,128]{1,0:T(1,128)}', space=vmem, size = 0x9000, scoped, tag = 'internal scratch']
  %s0 = inlined_call_operand.vmem [shape: f32[2,10,32], index: 0, kind: input, shape index: {}]
  %s1 = inlined_call_operand.vmem [shape: f32[10,32], index: 1, kind: input, shape index: {}]
  %s2 = inlined_call_operand.vmem [shape: bf16[1,128,32], index: 2, kind: input, shape index: {}]
  %s3 = inlined_call_operand.vmem [shape: bf16[1,128,32], index: 3, kind: input, shape index: {}]
  %s4 = inlined_call_operand.vmem [shape: f32[1,9,32], index: 4, kind: input, shape index: {}]
  %s5 = inlined_call_operand.vmem [shape: f32[1,1,64], index: 5, kind: input, shape index: {}]
  %s6 = inlined_call_operand.vmem [shape: f32[2,10,32], index: 6, kind: output, shape index: {}]
  %s7 = sld [smem:[#allocation0]]
  $region61: #{act_forward.6} parent=0
    _
  %s9 = ssub.s32 1, %s7
  %s10 = scalar_select 0, %s9, %s7
  loop: start=0, step=1, limit=4
  $region2: #{act_forward.6} parent=0 // loop_pre_header
    _
  $region3: #{act_forward.6} parent=0 // loop_header
    %s12 = sphi 0, %s16
    %p13 = scmp.ge.s32.totalorder %s12, 4
    %s19 = sphi 0, %s31
    %s20 = sphi 0, %s27
    %s21 = sphi 0, %s19
    %s22 = sphi 0, %s20
    %s23 = sphi 0, %s21
    %s24 = sphi 0, %s22
    %s34 = sphi 0, %s36
    %s37 = sphi 0, %s34
    %s38 = sphi 0, %s37
    %s54 = sphi 0, %s38
    %s58 = sphi 0, %s58
    %s60 = sphi 0, %s58
    %s61 = sphi 0, %s60
    %s75 = sphi 0, %s61
    %s81 = sphi 0, %s83
    %s84 = sphi 0, %s81
    %s85 = sphi 0, %s84
    %s101 = sphi 0, %s85
    %s107 = sphi 0, %s109
    %s110 = sphi 0, %s107
    %s111 = sphi 0, %s110
    %s127 = sphi 0, %s111
    %s133 = sphi 0, %s135
    %s136 = sphi 0, %s133
    %s137 = sphi 0, %s136
    %s153 = sphi 0, %s137
    %s159 = sphi 0, %s161
    %s162 = sphi 0, %s159
    %s163 = sphi 0, %s162
    %s179 = sphi 0, %s163
    %s185 = sphi 0, %s187
    %s188 = sphi 0, %s185
    %s189 = sphi 0, %s188
    %s205 = sphi 0, %s189
  $region4: #{act_forward.6} parent=0 // loop_header_branch
    %15 = sbr.rel (%p13) target = $region8
  $region5: #{act_forward.6} parent=0 // loop_body
    %s17 = ssub.s32 %s12, 1
    %s18 = ssub.s32 %s12, 2
    %s25 = sadd.s32 1, %s20
    %p26 = scmp.ge.s32.totalorder %s25, 1
    %s27 = scalar_select %p26, 0, %s25
    %s28 = sadd.s32 1, %s19
    %s29 = scalar_select %p26, %s28, %s19
    %p30 = scmp.ge.s32.totalorder %s29, 2
    %s31 = scalar_select %p30, 0, %s29
    %s32 = ssub.s32 %s19, %s31
    %p33 = scmp.eq.s32.totalorder %s32, 0
    %s35 = sadd.s32 %s34, 1
    %s36 = scalar_select %p33, %s34, %s35
    %p39 = pneg %p33
    %p40 = scmp.eq.s32.totalorder %s12, 1
    %p41 = por %p39, %p40
    %p42 = scmp.ne.s32.totalorder %s34, %s37
    %p43 = scmp.eq.s32.totalorder %s12, 0
    %p44 = por %p42, %p43
    %p45 = scmp.ne.s32.totalorder %s34, %s37
    %p46 = scmp.eq.s32.totalorder %s17, 1
    %p47 = por %p45, %p46
    %p48 = scmp.ne.s32.totalorder %s37, %s38
    %p49 = scmp.eq.s32.totalorder %s17, 0
    %p50 = por %p48, %p49
    %p51 = scmp.ne.s32.totalorder %s37, %s38
    %p52 = scmp.eq.s32.totalorder %s18, 1
    %p53 = por %p51, %p52
    %p55 = scmp.ne.s32.totalorder %s38, %s54
    %p56 = scmp.eq.s32.totalorder %s18, 0
    %p57 = por %p55, %p56
    %s59 = sadd.s32 %s58, 1
    %p62 = scmp.eq.s32.totalorder %s12, 1
    %p63 = scmp.ne.s32.totalorder %s58, %s60
    %p64 = scmp.eq.s32.totalorder %s12, 0
    %p65 = por %p63, %p64
    %p66 = scmp.ne.s32.totalorder %s58, %s60
    %p67 = scmp.eq.s32.totalorder %s17, 1
    %p68 = por %p66, %p67
    %p69 = scmp.ne.s32.totalorder %s60, %s61
    %p70 = scmp.eq.s32.totalorder %s17, 0
    %p71 = por %p69, %p70
    %p72 = scmp.ne.s32.totalorder %s60, %s61
    %p73 = scmp.eq.s32.totalorder %s18, 1
    %p74 = por %p72, %p73
    %p76 = scmp.ne.s32.totalorder %s61, %s75
    %p77 = scmp.eq.s32.totalorder %s18, 0
    %p78 = por %p76, %p77
    %s79 = ssub.s32 %s20, %s27
    %p80 = scmp.eq.s32.totalorder %s79, 0
    %s82 = sadd.s32 %s81, 1
    %s83 = scalar_select %p80, %s81, %s82
    %p86 = pneg %p80
    %p87 = scmp.eq.s32.totalorder %s12, 1
    %p88 = por %p86, %p87
    %p89 = scmp.ne.s32.totalorder %s81, %s84
    %p90 = scmp.eq.s32.totalorder %s12, 0
    %p91 = por %p89, %p90
    %p92 = scmp.ne.s32.totalorder %s81, %s84
    %p93 = scmp.eq.s32.totalorder %s17, 1
    %p94 = por %p92, %p93
    %p95 = scmp.ne.s32.totalorder %s84, %s85
    %p96 = scmp.eq.s32.totalorder %s17, 0
    %p97 = por %p95, %p96
    %p98 = scmp.ne.s32.totalorder %s84, %s85
    %p99 = scmp.eq.s32.totalorder %s18, 1
    %p100 = por %p98, %p99
    %p102 = scmp.ne.s32.totalorder %s85, %s101
    %p103 = scmp.eq.s32.totalorder %s18, 0
    %p104 = por %p102, %p103
    %s105 = ssub.s32 %s20, %s27
    %p106 = scmp.eq.s32.totalorder %s105, 0
    %s108 = sadd.s32 %s107, 1
    %s109 = scalar_select %p106, %s107, %s108
    %p112 = pneg %p106
    %p113 = scmp.eq.s32.totalorder %s12, 1
    %p114 = por %p112, %p113
    %p115 = scmp.ne.s32.totalorder %s107, %s110
    %p116 = scmp.eq.s32.totalorder %s12, 0
    %p117 = por %p115, %p116
    %p118 = scmp.ne.s32.totalorder %s107, %s110
    %p119 = scmp.eq.s32.totalorder %s17, 1
    %p120 = por %p118, %p119
    %p121 = scmp.ne.s32.totalorder %s110, %s111
    %p122 = scmp.eq.s32.totalorder %s17, 0
    %p123 = por %p121, %p122
    %p124 = scmp.ne.s32.totalorder %s110, %s111
    %p125 = scmp.eq.s32.totalorder %s18, 1
    %p126 = por %p124, %p125
    %p128 = scmp.ne.s32.totalorder %s111, %s127
    %p129 = scmp.eq.s32.totalorder %s18, 0
    %p130 = por %p128, %p129
    %s131 = ssub.s32 %s20, %s27
    %p132 = scmp.eq.s32.totalorder %s131, 0
    %s134 = sadd.s32 %s133, 1
    %s135 = scalar_select %p132, %s133, %s134
    %p138 = pneg %p132
    %p139 = scmp.eq.s32.totalorder %s12, 1
    %p140 = por %p138, %p139
    %p141 = scmp.ne.s32.totalorder %s133, %s136
    %p142 = scmp.eq.s32.totalorder %s12, 0
    %p143 = por %p141, %p142
    %p144 = scmp.ne.s32.totalorder %s133, %s136
    %p145 = scmp.eq.s32.totalorder %s17, 1
    %p146 = por %p144, %p145
    %p147 = scmp.ne.s32.totalorder %s136, %s137
    %p148 = scmp.eq.s32.totalorder %s17, 0
    %p149 = por %p147, %p148
    %p150 = scmp.ne.s32.totalorder %s136, %s137
    %p151 = scmp.eq.s32.totalorder %s18, 1
    %p152 = por %p150, %p151
    %p154 = scmp.ne.s32.totalorder %s137, %s153
    %p155 = scmp.eq.s32.totalorder %s18, 0
    %p156 = por %p154, %p155
    %s157 = ssub.s32 %s20, %s27
    %p158 = scmp.eq.s32.totalorder %s157, 0
    %s160 = sadd.s32 %s159, 1
    %s161 = scalar_select %p158, %s159, %s160
    %p164 = pneg %p158
    %p165 = scmp.eq.s32.totalorder %s12, 1
    %p166 = por %p164, %p165
    %p167 = scmp.ne.s32.totalorder %s159, %s162
    %p168 = scmp.eq.s32.totalorder %s12, 0
    %p169 = por %p167, %p168
    %p170 = scmp.ne.s32.totalorder %s159, %s162
    %p171 = scmp.eq.s32.totalorder %s17, 1
    %p172 = por %p170, %p171
    %p173 = scmp.ne.s32.totalorder %s162, %s163
    %p174 = scmp.eq.s32.totalorder %s17, 0
    %p175 = por %p173, %p174
    %p176 = scmp.ne.s32.totalorder %s162, %s163
    %p177 = scmp.eq.s32.totalorder %s18, 1
    %p178 = por %p176, %p177
    %p180 = scmp.ne.s32.totalorder %s163, %s179
    %p181 = scmp.eq.s32.totalorder %s18, 0
    %p182 = por %p180, %p181
    %s183 = ssub.s32 %s19, %s31
    %p184 = scmp.eq.s32.totalorder %s183, 0
    %s186 = sadd.s32 %s185, 1
    %s187 = scalar_select %p184, %s185, %s186
    %p190 = pneg %p184
    %p191 = scmp.eq.s32.totalorder %s12, 1
    %p192 = por %p190, %p191
    %p193 = scmp.ne.s32.totalorder %s185, %s188
    %p194 = scmp.eq.s32.totalorder %s12, 0
    %p195 = por %p193, %p194
    %p196 = scmp.ne.s32.totalorder %s185, %s188
    %p197 = scmp.eq.s32.totalorder %s17, 1
    %p198 = por %p196, %p197
    %p199 = scmp.ne.s32.totalorder %s188, %s189
    %p200 = scmp.eq.s32.totalorder %s17, 0
    %p201 = por %p199, %p200
    %p202 = scmp.ne.s32.totalorder %s188, %s189
    %p203 = scmp.eq.s32.totalorder %s18, 1
    %p204 = por %p202, %p203
    %p206 = scmp.ne.s32.totalorder %s189, %s205
    %p207 = scmp.eq.s32.totalorder %s18, 0
    %p208 = por %p206, %p207
    %p209 = scmp.le.s32.totalorder 1, %s12
    %p210 = scmp.lt.s32.totalorder %s12, 3
    %p211 = pnand %p209, %p210
    %p212 = pneg %p211
    // Predicated region
    $region9: #{act_forward.6} parent=5 // pred_check
      _
    $region10: #{act_forward.6} parent=5 // pred_check_branch
      %214 = sbr.rel (%p211) target = $region12
    $region11: #{act_forward.6} parent=5 // pred_region
      %s215 = ssub.s32 %s12, 1
      // Predicated region
      $region13: #{act_forward.6} parent=11 // pred_check
        %p216 = pneg %p71
      $region14: #{act_forward.6} parent=11 // pred_check_branch
        %218 = sbr.rel (%p216) target = $region16
      $region15: #{act_forward.6} parent=11 // pred_region
        _
      $region16: #{act_forward.6} parent=11 // pred_fallthru
        _
      // Predicated region
      $region17: #{act_forward.6} parent=11 // pred_check
        %p219 = pneg %p97
      $region18: #{act_forward.6} parent=11 // pred_check_branch
        %221 = sbr.rel (%p219) target = $region20
      $region19: #{act_forward.6} parent=11 // pred_region
        %p222 = scmp.lt.s32.totalorder %s22, 0
        %s223 = scalar_select %p222, %s22, 0
        %s224 = smul.addr %s223, 16
        %s225 = smul.addr %s224, 4
        %s226 = scalar_lea.vmem %s2, %s225
      $region20: #{act_forward.6} parent=11 // pred_fallthru
        _
      // Predicated region
      $region21: #{act_forward.6} parent=11 // pred_check
        %p227 = pneg %p123
      $region22: #{act_forward.6} parent=11 // pred_check_branch
        %229 = sbr.rel (%p227) target = $region24
      $region23: #{act_forward.6} parent=11 // pred_region
        %p230 = scmp.lt.s32.totalorder %s22, 0
        %s231 = scalar_select %p230, %s22, 0
        %s232 = smul.addr %s231, 16
        %s233 = smul.addr %s232, 4
        %s234 = scalar_lea.vmem %s3, %s233
      $region24: #{act_forward.6} parent=11 // pred_fallthru
        _
      // Predicated region
      $region25: #{act_forward.6} parent=11 // pred_check
        %p235 = pneg %p149
      $region26: #{act_forward.6} parent=11 // pred_check_branch
        %237 = sbr.rel (%p235) target = $region28
      $region27: #{act_forward.6} parent=11 // pred_region
        %p238 = scmp.lt.s32.totalorder %s22, 0
        %s239 = scalar_select %p238, %s22, 0
        %s240 = smul.addr %s239, 2
        %s241 = smul.addr %s240, 8
        %s242 = scalar_lea.vmem %s4, %s241
      $region28: #{act_forward.6} parent=11 // pred_fallthru
        _
      // Predicated region
      $region29: #{act_forward.6} parent=11 // pred_check
        %p243 = pneg %p175
      $region30: #{act_forward.6} parent=11 // pred_check_branch
        %245 = sbr.rel (%p243) target = $region32
      $region31: #{act_forward.6} parent=11 // pred_region
        %p246 = scmp.lt.s32.totalorder %s22, 0
        %s247 = scalar_select %p246, %s22, 0
        %s248 = scalar_lea.vmem %s5, %s247
      $region32: #{act_forward.6} parent=11 // pred_fallthru
        _
    $region12: #{act_forward.6} parent=5 // pred_fallthru
      _
    %p249 = scmp.lt.s32.totalorder %s12, 2
    // Predicated region
    $region33: #{act_forward.6} parent=5 // pred_check
      %p250 = pneg %p249
    $region34: #{act_forward.6} parent=5 // pred_check_branch
      %252 = sbr.rel (%p250) target = $region36
    $region35: #{act_forward.6} parent=5 // pred_region
      // Predicated region
      $region37: #{act_forward.6} parent=35 // pred_check
        %p253 = pneg %p44
      $region38: #{act_forward.6} parent=35 // pred_check_branch
        %255 = sbr.rel (%p253) target = $region40
      $region39: #{act_forward.6} parent=35 // pred_region
        %p256 = scmp.lt.s32.totalorder %s19, 1
        %s257 = scalar_select %p256, %s19, 1
        %s258 = smul.addr %s257, 2
        %s259 = smul.addr %s258, 8
        %s260 = scalar_lea.vmem %s0, %s259
      $region40: #{act_forward.6} parent=35 // pred_fallthru
        _
    $region36: #{act_forward.6} parent=5 // pred_fallthru
      _
    %p261 = scmp.le.s32.totalorder 1, %s12
    %p262 = scmp.lt.s32.totalorder %s12, 3
    %p263 = pnand %p261, %p262
    %p264 = pneg %p263
    // Predicated region
    $region41: #{act_forward.6} parent=5 // pred_check
      _
    $region42: #{act_forward.6} parent=5 // pred_check_branch
      %266 = sbr.rel (%p263) target = $region44
    $region43: #{act_forward.6} parent=5 // pred_region
      %s267 = ssub.s32 %s12, 1
      %p268 = scmp.lt.s32.totalorder %s21, 1
      %s269 = scalar_select %p268, %s21, 1
      %s270 = smul.addr %s269, 2
      %s271 = smul.addr %s270, 8
      %s272 = scalar_lea.vmem %s0, %s271
      %p273 = pneg %p50
      %p274 = pneg %p47
      %p275 = pneg %p71
      %p276 = pneg %p68
      %p277 = scmp.lt.s32.totalorder %s22, 0
      %s278 = scalar_select %p277, %s22, 0
      %s279 = smul.addr %s278, 16
      %s280 = smul.addr %s279, 4
      %s281 = scalar_lea.vmem %s2, %s280
      %p282 = pneg %p97
      %p283 = pneg %p94
      %p284 = scmp.lt.s32.totalorder %s22, 0
      %s285 = scalar_select %p284, %s22, 0
      %s286 = smul.addr %s285, 16
      %s287 = smul.addr %s286, 4
      %s288 = scalar_lea.vmem %s3, %s287
      %p289 = pneg %p123
      %p290 = pneg %p120
      %p291 = scmp.lt.s32.totalorder %s22, 0
      %s292 = scalar_select %p291, %s22, 0
      %s293 = smul.addr %s292, 2
      %s294 = smul.addr %s293, 8
      %s295 = scalar_lea.vmem %s4, %s294
      %p296 = pneg %p149
      %p297 = pneg %p146
      %p298 = scmp.lt.s32.totalorder %s22, 0
      %s299 = scalar_select %p298, %s22, 0
      %s300 = scalar_lea.vmem %s5, %s299
      %p301 = pneg %p175
      %p302 = pneg %p172
      %p303 = pneg %p201
      %p304 = pneg %p198
      %p305 = scmp.lt.s32.totalorder %s21, 1
      %s306 = scalar_select %p305, %s21, 1
      %s307 = smul.addr %s306, 2
      %s308 = smul.addr %s307, 8
      %s309 = scalar_lea.vmem %s6, %s308
      %p310 = scmp.lt.s32.totalorder %s21, 1
      %s311 = scalar_select %p310, %s21, 1
      %s312 = smul.addr %s311, 2
      %s313 = smul.addr %s312, 8
      %s314 = scalar_lea.vmem %s0, %s313
      %p315 = scmp.lt.s32.totalorder %s22, 0
      %s316 = scalar_select %p315, %s22, 0
      %s317 = smul.addr %s316, 16
      %s318 = smul.addr %s317, 4
      %s319 = scalar_lea.vmem %s2, %s318
      %p320 = scmp.lt.s32.totalorder %s22, 0
      %s321 = scalar_select %p320, %s22, 0
      %s322 = smul.addr %s321, 16
      %s323 = smul.addr %s322, 4
      %s324 = scalar_lea.vmem %s3, %s323
      %p325 = scmp.lt.s32.totalorder %s22, 0
      %s326 = scalar_select %p325, %s22, 0
      %s327 = smul.addr %s326, 2
      %s328 = smul.addr %s327, 8
      %s329 = scalar_lea.vmem %s4, %s328
      %p330 = scmp.lt.s32.totalorder %s22, 0
      %s331 = scalar_select %p330, %s22, 0
      %s332 = scalar_lea.vmem %s5, %s331
      %p333 = scmp.lt.s32.totalorder %s21, 1
      %s334 = scalar_select %p333, %s21, 1
      %s335 = smul.addr %s334, 2
      %s336 = smul.addr %s335, 8
      %s337 = scalar_lea.vmem %s6, %s336
      %p339 = scmp.eq.s32.totalorder %s22, 0
      // Predicated region
      $region45: #{act_forward.6} parent=43 // pred_check
        %p340 = pneg %p339
      $region46: #{act_forward.6} parent=43 // pred_check_branch
        %342 = sbr.rel (%p340) target = $region48
      $region47: #{act_forward.6} parent=43 // pred_region
        %v343 = vld [vmem:[%s314] sm:$0xff]
        %v344 = vld [vmem:[%s314 + $0x8] sm:$0x3]
        %vm345 = vcmask 261120
        %346 = vst.msk [vmem:[%s337] sm:$0xff] %vm345, %v343
        %vm347 = vcmask 254976
        %348 = vst.msk [vmem:[%s337 + $0x8] sm:$0x3] %vm347, %v344
      $region48: #{act_forward.6} parent=43 // pred_fallthru
        _
      %v349 = vld [vmem:[%s337] sm:$0xff]
      %v350 = vld [vmem:[%s337 + $0x8] sm:$0x3]
      %v351 = vld [vmem:[%s1] sm:$0xff]
      %v352 = vld [vmem:[%s1 + $0x8] sm:$0x3]
      %v353 = vld [vmem:[%s319] sm:$0xf]
      %v354 = vld [vmem:[%s319 + $0x4] sm:$0xf]
      %v355 = vld [vmem:[%s319 + $0x8] sm:$0xf]
      %v356 = vld [vmem:[%s319 + $0xc] sm:$0xf]
      %v357 = vld [vmem:[%s319 + $0x10] sm:$0xf]
      %v358 = vld [vmem:[%s319 + $0x14] sm:$0xf]
      %v359 = vld [vmem:[%s319 + $0x18] sm:$0xf]
      %v360 = vld [vmem:[%s319 + $0x1c] sm:$0xf]
      %v361 = vld [vmem:[%s319 + $0x20] sm:$0xf]
      %v362 = vld [vmem:[%s319 + $0x24] sm:$0xf]
      %v363 = vld [vmem:[%s319 + $0x28] sm:$0xf]
      %v364 = vld [vmem:[%s319 + $0x2c] sm:$0xf]
      %v365 = vld [vmem:[%s319 + $0x30] sm:$0xf]
      %v366 = vld [vmem:[%s319 + $0x34] sm:$0xf]
      %v367 = vld [vmem:[%s319 + $0x38] sm:$0xf]
      %v368 = vld [vmem:[%s319 + $0x3c] sm:$0xf]
      %v369 = vld [vmem:[%s324] sm:$0xf]
      %v370 = vld [vmem:[%s324 + $0x4] sm:$0xf]
      %v371 = vld [vmem:[%s324 + $0x8] sm:$0xf]
      %v372 = vld [vmem:[%s324 + $0xc] sm:$0xf]
      %v373 = vld [vmem:[%s324 + $0x10] sm:$0xf]
      %v374 = vld [vmem:[%s324 + $0x14] sm:$0xf]
      %v375 = vld [vmem:[%s324 + $0x18] sm:$0xf]
      %v376 = vld [vmem:[%s324 + $0x1c] sm:$0xf]
      %v377 = vld [vmem:[%s324 + $0x20] sm:$0xf]
      %v378 = vld [vmem:[%s324 + $0x24] sm:$0xf]
      %v379 = vld [vmem:[%s324 + $0x28] sm:$0xf]
      %v380 = vld [vmem:[%s324 + $0x2c] sm:$0xf]
      %v381 = vld [vmem:[%s324 + $0x30] sm:$0xf]
      %v382 = vld [vmem:[%s324 + $0x34] sm:$0xf]
      %v383 = vld [vmem:[%s324 + $0x38] sm:$0xf]
      %v384 = vld [vmem:[%s324 + $0x3c] sm:$0xf]
      %v385 = vld [vmem:[%s329] sm:$0xff]
      %v386 = vld [vmem:[%s329 + $0x8] sm:$0x1]
      %v387 = vadd.f32 %v349, %v351
      %v388 = vadd.f32 %v350, %v352
      %v389 = vpack.c.bf16 %v388, %v387
      %v390 = vpack.c.bf16 %v350, %v349
      %v399 = vunpack.c.l.b16 %v353
      %v400 = vunpack.c.l.b16 %v354
      %v401 = vunpack.c.l.b16 %v355
      %v402 = vunpack.c.l.b16 %v356
      %v403 = vunpack.c.l.b16 %v357
      %v404 = vunpack.c.l.b16 %v358
      %v405 = vunpack.c.l.b16 %v359
      %v406 = vunpack.c.l.b16 %v360
      %v407 = vpack.c.b16 %v400, %v399
      %v408 = vpack.c.b16 %v402, %v401
      %v409 = vpack.c.b16 %v404, %v403
      %v410 = vpack.c.b16 %v406, %v405
      %vm411 = vcmask 261120
      %v413 = vsel %vm411, %v389, 0
      %v416 = vsel %vm411, %v407, 0
      %v419 = vsel %vm411, %v408, 0
      %v422 = vsel %vm411, %v409, 0
      %v425 = vsel %vm411, %v410, 0
      %427 = vmatpush.bf16.xpose.msra.mxu0 0
      %428 = vmatpush.bf16.xpose.msra.mxu0 0
      %429 = vmatpush.bf16.xpose.msra.mxu0 0
      %430 = vmatpush.bf16.xpose.msra.mxu0 0
      %431 = vmatpush.bf16.xpose.msra.mxu0 %v425
      %432 = vmatpush.bf16.xpose.msra.mxu0 %v422
      %433 = vmatpush.bf16.xpose.msra.mxu0 %v419
      %434 = vmatpush.bf16.xpose.msra.mxu0 %v416
      %435 = vmatmul.bf16.gmra.mxu0 %v413
      %v436 = vpop.f32.mrf.mxu0
      %v437 = vadd.f32 0.0, %v436
      %v438 = vpop.f32.mrf.mxu0
      %v439 = vadd.f32 0.0, %v438
      %440 = vdwg.mxu0
      %v441 = vperm.slane %v385, 0
      %v442 = vadd.f32 %v437, %v441
      %v443 = vadd.f32 %v439, %v441
      %v444 = vperm.slane %v385, 1
      %446 = vrot.lane.b32.xlu0 %v444, 32
      %v447 = vpop.permute.xlu0 %446
      %v449 = vadd.f32 %v437, %v447
      %v450 = vadd.f32 %v439, %v447
      %v451 = vperm.slane %v385, 2
      %v456 = vunpack.c.l.b16 %v361
      %v457 = vunpack.c.l.b16 %v362
      %v458 = vunpack.c.l.b16 %v363
      %v459 = vunpack.c.l.b16 %v364
      %v460 = vpack.c.b16 %v457, %v456
      %v461 = vpack.c.b16 %v459, %v458
      %v463 = vsel %vm411, %v390, 0
      %v466 = vsel %vm411, %v460, 0
      %v469 = vsel %vm411, %v461, 0
      %471 = vmatpush.bf16.xpose.msra.mxu0 0
      %472 = vmatpush.bf16.xpose.msra.mxu0 0
      %473 = vmatpush.bf16.xpose.msra.mxu0 0
      %474 = vmatpush.bf16.xpose.msra.mxu0 0
      %475 = vmatpush.bf16.xpose.msra.mxu0 0
      %476 = vmatpush.bf16.xpose.msra.mxu0 0
      %477 = vmatpush.bf16.xpose.msra.mxu0 %v469
      %478 = vmatpush.bf16.xpose.msra.mxu0 %v466
      %479 = vmatmul.bf16.gmra.mxu0 %v463
      %v480 = vpop.f32.mrf.mxu0
      %v481 = vadd.f32 %v451, %v480
      %v482 = vpop.f32.mrf.mxu0
      %v483 = vadd.f32 %v451, %v482
      %484 = vdwg.mxu0
      %v485 = vpack.c.bf16 %v442, %v442
      %v486 = vpack.c.bf16 %v443, %v443
      %v487 = vpack.c.bf16 %v449, %v449
      %v488 = vpack.c.bf16 %v450, %v450
      %v489 = vpack.c.bf16 %v481, %v481
      %v490 = vpack.c.bf16 %v483, %v483
      %v493 = vunpack.c.l.b16 %v485
      %v494 = vunpack.c.l.b16 %v486
      %v495 = vpack.c.b16 %v494, %v493
      %v498 = vunpack.c.l.b16 %v487
      %v499 = vunpack.c.l.b16 %v488
      %v500 = vpack.c.b16 %v499, %v498
      %501 = vrot.lane.b32.xlu0 %v500, 96
      %v502 = vpop.permute.xlu0 %501
      %vm503 = vcmask 64512
      %v505 = vsel %vm503, %v495, 0
      %v508 = vsel %vm503, %v502, 0
      %510 = vmatpush.bf16.xpose.msra.mxu0 0
      %511 = vmatpush.bf16.xpose.msra.mxu0 0
      %512 = vmatpush.bf16.xpose.msra.mxu0 0
      %513 = vmatpush.bf16.xpose.msra.mxu0 0
      %514 = vmatpush.bf16.xpose.msra.mxu0 0
      %515 = vmatpush.bf16.xpose.msra.mxu0 0
      %516 = vmatpush.bf16.xpose.msra.mxu0 0
      %517 = vmatpush.bf16.xpose.msra.mxu0 %v508
      %518 = vmatmul.bf16.gmra.mxu0 %v505
      %v519 = vpop.f32.mrf.mxu0
      %v520 = vadd.f32 0.0, %v519
      %v521 = vpop.f32.mrf.mxu0
      %v522 = vadd.f32 0.0, %v521
      %523 = vdwg.mxu0
      %v524 = vmul.f32 %v520, 0.35355338
      %v525 = vmul.f32 %v522, 0.35355338
      %vm526 = vcmask 80896
      %v527 = vsel %vm526, %v524, -inf
      %528 = vmax.xlane.f32.xlu0 %v527
      %v529 = vpop.xlane.xlu0 %528
      %vm530 = vcmask 74752
      %v531 = vsel %vm530, %v525, -inf
      %532 = vmax.xlane.f32.xlu0 %v531
      %v533 = vpop.xlane.xlu0 %532
      %v534 = vsub.f32 %v524, %v529
      %v535 = vsub.f32 %v525, %v533
      %v536 = vmul.f32 %v534, 1.442695
      %v537 = vpow.pop %v536
      %v538 = vmul.f32 %v535, 1.442695
      %v539 = vpow.pop %v538
      %v540 = vsel %vm526, %v537, 0.0
      %541 = vadd.xlane.f32.xlu0 %v540
      %v542 = vpop.xlane.xlu0 %541
      %v543 = vsel %vm530, %v539, 0.0
      %544 = vadd.xlane.f32.xlu0 %v543
      %v545 = vpop.xlane.xlu0 %544
      %v546 = vrcp.pop %v542
      %v547 = vrcp.pop %v545
      %v548 = vmul.f32 %v537, %v546
      %v549 = vmul.f32 %v539, %v547
      %v550 = vpack.c.bf16 %v549, %v548
      %v553 = vunpack.c.l.b16 %v489
      %v554 = vunpack.c.l.b16 %v490
      %v555 = vpack.c.b16 %v554, %v553
      %v557 = vsel %vm526, %v550, 0
      %vm559 = vcmask 1044480
      %v561 = vsel %vm559, %v555, 0
      %563 = vmatpush.bf16.msra.mxu0 0
      %564 = vmatpush.bf16.msra.mxu0 0
      %565 = vmatpush.bf16.msra.mxu0 0
      %566 = vmatpush.bf16.msra.mxu0 0
      %567 = vmatpush.bf16.msra.mxu0 0
      %568 = vmatpush.bf16.msra.mxu0 0
      %569 = vmatpush.bf16.msra.mxu0 0
      %570 = vmatpush.bf16.msra.mxu0 %v561
      %571 = vmatmul.bf16.gmra.mxu0 %v557
      %v572 = vpop.f32.mrf.mxu0
      %v573 = vadd.f32 0.0, %v572
      %v574 = vpop.f32.mrf.mxu0
      %v575 = vadd.f32 0.0, %v574
      %576 = vdwg.mxu0
      %577 = vrot.lane.b32.xlu0 %v495, 120
      %v578 = vpop.permute.xlu0 %577
      %579 = vrot.lane.b32.xlu0 %v500, 88
      %v580 = vpop.permute.xlu0 %579
      %v582 = vsel %vm503, %v578, 0
      %v585 = vsel %vm503, %v580, 0
      %587 = vmatpush.bf16.xpose.msra.mxu0 0
      %588 = vmatpush.bf16.xpose.msra.mxu0 0
      %589 = vmatpush.bf16.xpose.msra.mxu0 0
      %590 = vmatpush.bf16.xpose.msra.mxu0 0
      %591 = vmatpush.bf16.xpose.msra.mxu0 0
      %592 = vmatpush.bf16.xpose.msra.mxu0 0
      %593 = vmatpush.bf16.xpose.msra.mxu0 0
      %594 = vmatpush.bf16.xpose.msra.mxu0 %v585
      %595 = vmatmul.bf16.gmra.mxu0 %v582
      %v596 = vpop.f32.mrf.mxu0
      %v597 = vadd.f32 0.0, %v596
      %v598 = vpop.f32.mrf.mxu0
      %v599 = vadd.f32 0.0, %v598
      %600 = vdwg.mxu0
      %v601 = vmul.f32 %v597, 0.35355338
      %v602 = vmul.f32 %v599, 0.35355338
      %v603 = vsel %vm526, %v601, -inf
      %604 = vmax.xlane.f32.xlu0 %v603
      %v605 = vpop.xlane.xlu0 %604
      %v606 = vsel %vm530, %v602, -inf
      %607 = vmax.xlane.f32.xlu0 %v606
      %v608 = vpop.xlane.xlu0 %607
      %v609 = vsub.f32 %v601, %v605
      %v610 = vsub.f32 %v602, %v608
      %v611 = vmul.f32 %v609, 1.442695
      %v612 = vpow.pop %v611
      %v613 = vmul.f32 %v610, 1.442695
      %v614 = vpow.pop %v613
      %v615 = vsel %vm526, %v612, 0.0
      %616 = vadd.xlane.f32.xlu0 %v615
      %v617 = vpop.xlane.xlu0 %616
      %v618 = vsel %vm530, %v614, 0.0
      %619 = vadd.xlane.f32.xlu0 %v618
      %v620 = vpop.xlane.xlu0 %619
      %v621 = vrcp.pop %v617
      %v622 = vrcp.pop %v620
      %v623 = vmul.f32 %v612, %v621
      %v624 = vmul.f32 %v614, %v622
      %v625 = vpack.c.bf16 %v624, %v623
      %626 = vrot.lane.b32.xlu0 %v555, 120
      %v627 = vpop.permute.xlu0 %626
      %v629 = vsel %vm526, %v625, 0
      %v632 = vsel %vm559, %v627, 0
      %634 = vmatpush.bf16.msra.mxu0 0
      %635 = vmatpush.bf16.msra.mxu0 0
      %636 = vmatpush.bf16.msra.mxu0 0
      %637 = vmatpush.bf16.msra.mxu0 0
      %638 = vmatpush.bf16.msra.mxu0 0
      %639 = vmatpush.bf16.msra.mxu0 0
      %640 = vmatpush.bf16.msra.mxu0 0
      %641 = vmatpush.bf16.msra.mxu0 %v632
      %642 = vmatmul.bf16.gmra.mxu0 %v629
      %v643 = vpop.f32.mrf.mxu0
      %v644 = vadd.f32 0.0, %v643
      %v645 = vpop.f32.mrf.mxu0
      %v646 = vadd.f32 0.0, %v645
      %647 = vdwg.mxu0
      %648 = vrot.lane.b32.xlu0 %v495, 112
      %v649 = vpop.permute.xlu0 %648
      %650 = vrot.lane.b32.xlu0 %v500, 80
      %v651 = vpop.permute.xlu0 %650
      %v653 = vsel %vm503, %v649, 0
      %v656 = vsel %vm503, %v651, 0
      %658 = vmatpush.bf16.xpose.msra.mxu0 0
      %659 = vmatpush.bf16.xpose.msra.mxu0 0
      %660 = vmatpush.bf16.xpose.msra.mxu0 0
      %661 = vmatpush.bf16.xpose.msra.mxu0 0
      %662 = vmatpush.bf16.xpose.msra.mxu0 0
      %663 = vmatpush.bf16.xpose.msra.mxu0 0
      %664 = vmatpush.bf16.xpose.msra.mxu0 0
      %665 = vmatpush.bf16.xpose.msra.mxu0 %v656
      %666 = vmatmul.bf16.gmra.mxu0 %v653
      %v667 = vpop.f32.mrf.mxu0
      %v668 = vadd.f32 0.0, %v667
      %v669 = vpop.f32.mrf.mxu0
      %v670 = vadd.f32 0.0, %v669
      %671 = vdwg.mxu0
      %v672 = vmul.f32 %v668, 0.35355338
      %v673 = vmul.f32 %v670, 0.35355338
      %v674 = vsel %vm526, %v672, -inf
      %675 = vmax.xlane.f32.xlu0 %v674
      %v676 = vpop.xlane.xlu0 %675
      %v677 = vsel %vm530, %v673, -inf
      %678 = vmax.xlane.f32.xlu0 %v677
      %v679 = vpop.xlane.xlu0 %678
      %v680 = vsub.f32 %v672, %v676
      %v681 = vsub.f32 %v673, %v679
      %v682 = vmul.f32 %v680, 1.442695
      %v683 = vpow.pop %v682
      %v684 = vmul.f32 %v681, 1.442695
      %v685 = vpow.pop %v684
      %v686 = vsel %vm526, %v683, 0.0
      %687 = vadd.xlane.f32.xlu0 %v686
      %v688 = vpop.xlane.xlu0 %687
      %v689 = vsel %vm530, %v685, 0.0
      %690 = vadd.xlane.f32.xlu0 %v689
      %v691 = vpop.xlane.xlu0 %690
      %v692 = vrcp.pop %v688
      %v693 = vrcp.pop %v691
      %v694 = vmul.f32 %v683, %v692
      %v695 = vmul.f32 %v685, %v693
      %v696 = vpack.c.bf16 %v695, %v694
      %697 = vrot.lane.b32.xlu0 %v555, 112
      %v698 = vpop.permute.xlu0 %697
      %v700 = vsel %vm526, %v696, 0
      %v703 = vsel %vm559, %v698, 0
      %705 = vmatpush.bf16.msra.mxu0 0
      %706 = vmatpush.bf16.msra.mxu0 0
      %707 = vmatpush.bf16.msra.mxu0 0
      %708 = vmatpush.bf16.msra.mxu0 0
      %709 = vmatpush.bf16.msra.mxu0 0
      %710 = vmatpush.bf16.msra.mxu0 0
      %711 = vmatpush.bf16.msra.mxu0 0
      %712 = vmatpush.bf16.msra.mxu0 %v703
      %713 = vmatmul.bf16.gmra.mxu0 %v700
      %v714 = vpop.f32.mrf.mxu0
      %v715 = vadd.f32 0.0, %v714
      %v716 = vpop.f32.mrf.mxu0
      %v717 = vadd.f32 0.0, %v716
      %718 = vdwg.mxu0
      %719 = vrot.lane.b32.xlu0 %v495, 104
      %v720 = vpop.permute.xlu0 %719
      %721 = vrot.lane.b32.xlu0 %v500, 72
      %v722 = vpop.permute.xlu0 %721
      %v724 = vsel %vm503, %v720, 0
      %v727 = vsel %vm503, %v722, 0
      %729 = vmatpush.bf16.xpose.msra.mxu0 0
      %730 = vmatpush.bf16.xpose.msra.mxu0 0
      %731 = vmatpush.bf16.xpose.msra.mxu0 0
      %732 = vmatpush.bf16.xpose.msra.mxu0 0
      %733 = vmatpush.bf16.xpose.msra.mxu0 0
      %734 = vmatpush.bf16.xpose.msra.mxu0 0
      %735 = vmatpush.bf16.xpose.msra.mxu0 0
      %736 = vmatpush.bf16.xpose.msra.mxu0 %v727
      %737 = vmatmul.bf16.gmra.mxu0 %v724
      %v738 = vpop.f32.mrf.mxu0
      %v739 = vadd.f32 0.0, %v738
      %v740 = vpop.f32.mrf.mxu0
      %v741 = vadd.f32 0.0, %v740
      %742 = vdwg.mxu0
      %v743 = vmul.f32 %v739, 0.35355338
      %v744 = vmul.f32 %v741, 0.35355338
      %v745 = vsel %vm526, %v743, -inf
      %746 = vmax.xlane.f32.xlu0 %v745
      %v747 = vpop.xlane.xlu0 %746
      %v748 = vsel %vm530, %v744, -inf
      %749 = vmax.xlane.f32.xlu0 %v748
      %v750 = vpop.xlane.xlu0 %749
      %v751 = vsub.f32 %v743, %v747
      %v752 = vsub.f32 %v744, %v750
      %v753 = vmul.f32 %v751, 1.442695
      %v754 = vpow.pop %v753
      %v755 = vmul.f32 %v752, 1.442695
      %v756 = vpow.pop %v755
      %v757 = vsel %vm526, %v754, 0.0
      %758 = vadd.xlane.f32.xlu0 %v757
      %v759 = vpop.xlane.xlu0 %758
      %v760 = vsel %vm530, %v756, 0.0
      %761 = vadd.xlane.f32.xlu0 %v760
      %v762 = vpop.xlane.xlu0 %761
      %v763 = vrcp.pop %v759
      %v764 = vrcp.pop %v762
      %v765 = vmul.f32 %v754, %v763
      %v766 = vmul.f32 %v756, %v764
      %v767 = vpack.c.bf16 %v766, %v765
      %768 = vrot.lane.b32.xlu0 %v555, 104
      %v769 = vpop.permute.xlu0 %768
      %v771 = vsel %vm526, %v767, 0
      %v774 = vsel %vm559, %v769, 0
      %776 = vmatpush.bf16.msra.mxu0 0
      %777 = vmatpush.bf16.msra.mxu0 0
      %778 = vmatpush.bf16.msra.mxu0 0
      %779 = vmatpush.bf16.msra.mxu0 0
      %780 = vmatpush.bf16.msra.mxu0 0
      %781 = vmatpush.bf16.msra.mxu0 0
      %782 = vmatpush.bf16.msra.mxu0 0
      %783 = vmatpush.bf16.msra.mxu0 %v774
      %784 = vmatmul.bf16.gmra.mxu0 %v771
      %v785 = vpop.f32.mrf.mxu0
      %v786 = vadd.f32 0.0, %v785
      %v787 = vpop.f32.mrf.mxu0
      %v788 = vadd.f32 0.0, %v787
      %789 = vdwg.mxu0
      %792 = vrot.lane.b32.xlu0 %v644, 8
      %v793 = vpop.permute.xlu0 %792
      %794 = vrot.lane.b32.xlu0 %v646, 8
      %v795 = vpop.permute.xlu0 %794
      %800 = vrot.lane.b32.xlu0 %v715, 16
      %v801 = vpop.permute.xlu0 %800
      %802 = vrot.lane.b32.xlu0 %v717, 16
      %v803 = vpop.permute.xlu0 %802
      %808 = vrot.lane.b32.xlu0 %v786, 24
      %v809 = vpop.permute.xlu0 %808
      %810 = vrot.lane.b32.xlu0 %v788, 24
      %v811 = vpop.permute.xlu0 %810
      %v814 = vsel %vm503, %v573, %v793
      %v815 = vsel %vm503, %v575, %v795
      %vm816 = vcmask 130048
      %v817 = vsel %vm816, %v814, %v801
      %v818 = vsel %vm816, %v815, %v803
      %vm819 = vcmask 195584
      %v820 = vsel %vm819, %v817, %v809
      %v821 = vsel %vm819, %v818, %v811
      %v822 = vpack.c.bf16 %v821, %v820
      %v823 = vperm.slane %v385, 3
      %v828 = vunpack.c.l.b16 %v365
      %v829 = vunpack.c.l.b16 %v366
      %v830 = vunpack.c.l.b16 %v367
      %v831 = vunpack.c.l.b16 %v368
      %v832 = vpack.c.b16 %v829, %v828
      %v833 = vpack.c.b16 %v831, %v830
      %v835 = vsel %vm411, %v822, 0
      %v838 = vsel %vm411, %v832, 0
      %v841 = vsel %vm411, %v833, 0
      %843 = vmatpush.bf16.xpose.msra.mxu0 0
      %844 = vmatpush.bf16.xpose.msra.mxu0 0
      %845 = vmatpush.bf16.xpose.msra.mxu0 0
      %846 = vmatpush.bf16.xpose.msra.mxu0 0
      %847 = vmatpush.bf16.xpose.msra.mxu0 0
      %848 = vmatpush.bf16.xpose.msra.mxu0 0
      %849 = vmatpush.bf16.xpose.msra.mxu0 %v841
      %850 = vmatpush.bf16.xpose.msra.mxu0 %v838
      %851 = vmatmul.bf16.gmra.mxu0 %v835
      %v852 = vpop.f32.mrf.mxu0
      %v853 = vadd.f32 %v823, %v852
      %v854 = vpop.f32.mrf.mxu0
      %v855 = vadd.f32 %v823, %v854
      %856 = vdwg.mxu0
      %v857 = vadd.f32 %v349, %v853
      %v858 = vadd.f32 %v350, %v855
      %v859 = vsel %vm411, %v857, 0.0
      %860 = vadd.xlane.f32.xlu0 %v859
      %v861 = vpop.xlane.xlu0 %860
      %vm862 = vcmask 254976
      %v863 = vsel %vm862, %v858, 0.0
      %864 = vadd.xlane.f32.xlu0 %v863
      %v865 = vpop.xlane.xlu0 %864
      %v866 = vrcp.pop 32.0
      %v867 = vmul.f32 32.0, %v866
      %v868 = vsub.f32 1.0, %v867
      %v869 = vmul.f32 %v866, %v868
      %v870 = vadd.f32 %v866, %v869
      %vm871 = vweird.f32 %v866
      %v872 = vsel %vm871, %v866, %v870
      %v873 = vmul.f32 %v861, %v872
      %v874 = vmul.f32 %v865, %v872
      %v875 = vsub.f32 %v857, %v873
      %v876 = vsub.f32 %v858, %v874
      %v877 = vmul.f32 %v875, %v875
      %v878 = vmul.f32 %v876, %v876
      %v879 = vsel %vm411, %v877, 0.0
      %880 = vadd.xlane.f32.xlu0 %v879
      %v881 = vpop.xlane.xlu0 %880
      %v882 = vsel %vm862, %v878, 0.0
      %883 = vadd.xlane.f32.xlu0 %v882
      %v884 = vpop.xlane.xlu0 %883
      %v885 = vmul.f32 %v881, %v872
      %v886 = vmul.f32 %v884, %v872
      %v887 = vadd.f32 %v885, 1e-05
      %v888 = vadd.f32 %v886, 1e-05
      %v889 = vrsqrt.pop %v887
      %v890 = vmul.f32 %v889, %v887
      %v891 = vmul.f32 %v890, %v889
      %v892 = vmul.f32 0.5, %v891
      %v893 = vsub.f32 1.5, %v892
      %v894 = vmul.f32 %v889, %v893
      %vm895 = vweird.f32 %v887
      %vm896 = vweird.f32 %v889
      %vm897 = vmor %vm895, %vm896
      %v898 = vsel %vm897, %v889, %v894
      %v899 = vrsqrt.pop %v888
      %v900 = vmul.f32 %v899, %v888
      %v901 = vmul.f32 %v900, %v899
      %v902 = vmul.f32 0.5, %v901
      %v903 = vsub.f32 1.5, %v902
      %v904 = vmul.f32 %v899, %v903
      %vm905 = vweird.f32 %v888
      %vm906 = vweird.f32 %v899
      %vm907 = vmor %vm905, %vm906
      %v908 = vsel %vm907, %v899, %v904
      %v909 = vmul.f32 %v875, %v898
      %v910 = vmul.f32 %v876, %v908
      %v911 = vperm.slane %v385, 4
      %v912 = vmul.f32 %v909, %v911
      %v913 = vmul.f32 %v910, %v911
      %v914 = vperm.slane %v385, 5
      %v915 = vadd.f32 %v912, %v914
      %v916 = vadd.f32 %v913, %v914
      %v917 = vpack.c.bf16 %v916, %v915
      %v918 = vld [vmem:[%s332] sm:$0x1]
      %v920 = vperm.slane %v918, 0
      %v930 = vunpack.c.l.b16 %v369
      %v931 = vunpack.c.l.b16 %v370
      %v932 = vunpack.c.l.b16 %v371
      %v933 = vunpack.c.l.b16 %v372
      %v934 = vunpack.c.l.b16 %v373
      %v935 = vunpack.c.l.b16 %v374
      %v936 = vunpack.c.l.b16 %v375
      %v937 = vunpack.c.l.b16 %v376
      %v938 = vpack.c.b16 %v931, %v930
      %v939 = vpack.c.b16 %v933, %v932
      %v940 = vpack.c.b16 %v935, %v934
      %v941 = vpack.c.b16 %v937, %v936
      %v943 = vsel %vm411, %v917, 0
      %v946 = vsel %vm411, %v938, 0
      %v949 = vsel %vm411, %v939, 0
      %v952 = vsel %vm411, %v940, 0
      %v955 = vsel %vm411, %v941, 0
      %957 = vmatpush.bf16.xpose.msra.mxu0 0
      %958 = vmatpush.bf16.xpose.msra.mxu0 0
      %959 = vmatpush.bf16.xpose.msra.mxu0 0
      %960 = vmatpush.bf16.xpose.msra.mxu0 0
      %961 = vmatpush.bf16.xpose.msra.mxu0 %v955
      %962 = vmatpush.bf16.xpose.msra.mxu0 %v952
      %963 = vmatpush.bf16.xpose.msra.mxu0 %v949
      %964 = vmatpush.bf16.xpose.msra.mxu0 %v946
      %965 = vmatmul.bf16.gmra.mxu0 %v943
      %v966 = vpop.f32.mrf.mxu0
      %v967 = vadd.f32 %v920, %v966
      %v968 = vpop.f32.mrf.mxu0
      %v969 = vadd.f32 %v920, %v968
      %970 = vdwg.mxu0
      %v971 = vmax.f32 %v967, 0.0
      %v972 = vmax.f32 %v969, 0.0
      %v973 = vpack.c.bf16 %v972, %v971
      %v974 = vperm.slane %v386, 0
      %v983 = vunpack.c.l.b16 %v377
      %v984 = vunpack.c.l.b16 %v378
      %v985 = vunpack.c.l.b16 %v379
      %v986 = vunpack.c.l.b16 %v380
      %v987 = vunpack.c.l.b16 %v381
      %v988 = vunpack.c.l.b16 %v382
      %v989 = vunpack.c.l.b16 %v383
      %v990 = vunpack.c.l.b16 %v384
      %v991 = vpack.c.b16 %v984, %v983
      %v992 = vpack.c.b16 %v986, %v985
      %v993 = vpack.c.b16 %v988, %v987
      %v994 = vpack.c.b16 %v990, %v989
      %vm999 = vcmask 523264
      %v1001 = vsel %vm999, %v973, 0
      %1003 = vmatpush.bf16.msra.mxu0 0
      %1004 = vmatpush.bf16.msra.mxu0 0
      %1005 = vmatpush.bf16.msra.mxu0 0
      %1006 = vmatpush.bf16.msra.mxu0 0
      %1007 = vmatpush.bf16.msra.mxu0 %v994
      %1008 = vmatpush.bf16.msra.mxu0 %v993
      %1009 = vmatpush.bf16.msra.mxu0 %v992
      %1010 = vmatpush.bf16.msra.mxu0 %v991
      %1011 = vmatmul.bf16.gmra.mxu0 %v1001
      %v1012 = vpop.f32.mrf.mxu0
      %v1013 = vadd.f32 %v974, %v1012
      %v1014 = vpop.f32.mrf.mxu0
      %v1015 = vadd.f32 %v974, %v1014
      %1016 = vdwg.mxu0
      %v1017 = vadd.f32 %v915, %v1013
      %v1018 = vadd.f32 %v916, %v1015
      %v1019 = vsel %vm411, %v1017, 0.0
      %1020 = vadd.xlane.f32.xlu0 %v1019
      %v1021 = vpop.xlane.xlu0 %1020
      %v1022 = vsel %vm862, %v1018, 0.0
      %1023 = vadd.xlane.f32.xlu0 %v1022
      %v1024 = vpop.xlane.xlu0 %1023
      %v1025 = vmul.f32 %v1021, %v872
      %v1026 = vmul.f32 %v1024, %v872
      %v1027 = vsub.f32 %v1017, %v1025
      %v1028 = vsub.f32 %v1018, %v1026
      %v1029 = vmul.f32 %v1027, %v1027
      %v1030 = vmul.f32 %v1028, %v1028
      %v1031 = vsel %vm411, %v1029, 0.0
      %1032 = vadd.xlane.f32.xlu0 %v1031
      %v1033 = vpop.xlane.xlu0 %1032
      %v1034 = vsel %vm862, %v1030, 0.0
      %1035 = vadd.xlane.f32.xlu0 %v1034
      %v1036 = vpop.xlane.xlu0 %1035
      %v1037 = vmul.f32 %v1033, %v872
      %v1038 = vmul.f32 %v1036, %v872
      %v1039 = vadd.f32 %v1037, 1e-05
      %v1040 = vadd.f32 %v1038, 1e-05
      %v1041 = vrsqrt.pop %v1039
      %v1042 = vmul.f32 %v1041, %v1039
      %v1043 = vmul.f32 %v1042, %v1041
      %v1044 = vmul.f32 0.5, %v1043
      %v1045 = vsub.f32 1.5, %v1044
      %v1046 = vmul.f32 %v1041, %v1045
      %vm1047 = vweird.f32 %v1039
      %vm1048 = vweird.f32 %v1041
      %vm1049 = vmor %vm1047, %vm1048
      %v1050 = vsel %vm1049, %v1041, %v1046
      %v1051 = vrsqrt.pop %v1040
      %v1052 = vmul.f32 %v1051, %v1040
      %v1053 = vmul.f32 %v1052, %v1051
      %v1054 = vmul.f32 0.5, %v1053
      %v1055 = vsub.f32 1.5, %v1054
      %v1056 = vmul.f32 %v1051, %v1055
      %vm1057 = vweird.f32 %v1040
      %vm1058 = vweird.f32 %v1051
      %vm1059 = vmor %vm1057, %vm1058
      %v1060 = vsel %vm1059, %v1051, %v1056
      %v1061 = vmul.f32 %v1027, %v1050
      %v1062 = vmul.f32 %v1028, %v1060
      %v1063 = vperm.slane %v385, 6
      %v1064 = vmul.f32 %v1061, %v1063
      %v1065 = vmul.f32 %v1062, %v1063
      %v1066 = vperm.slane %v385, 7
      %v1067 = vadd.f32 %v1064, %v1066
      %v1068 = vadd.f32 %v1065, %v1066
      %1069 = vst.msk [vmem:[%s337] sm:$0xff] %vm411, %v1067
      %1070 = vst.msk [vmem:[%s337 + $0x8] sm:$0x3] %vm862, %v1068
      %p1071 = scmp.lt.s32.totalorder %s21, 1
      %s1072 = scalar_select %p1071, %s21, 1
      %s1073 = smul.addr %s1072, 2
      %s1074 = smul.addr %s1073, 8
      %s1075 = scalar_lea.vmem %s6, %s1074
      // Predicated region
      $region49: #{act_forward.6} parent=43 // pred_check
        %p1076 = pneg %p198
      $region50: #{act_forward.6} parent=43 // pred_check_branch
        %1078 = sbr.rel (%p1076) target = $region52
      $region51: #{act_forward.6} parent=43 // pred_region
        _
      $region52: #{act_forward.6} parent=43 // pred_fallthru
        _
    $region44: #{act_forward.6} parent=5 // pred_fallthru
      _
    %p1079 = scmp.le.s32.totalorder 2, %s12
    // Predicated region
    $region53: #{act_forward.6} parent=5 // pred_check
      %p1080 = pneg %p1079
    $region54: #{act_forward.6} parent=5 // pred_check_branch
      %1082 = sbr.rel (%p1080) target = $region56
    $region55: #{act_forward.6} parent=5 // pred_region
      %s1083 = ssub.s32 %s12, 2
      // Predicated region
      $region57: #{act_forward.6} parent=55 // pred_check
        %p1084 = pneg %p204
      $region58: #{act_forward.6} parent=55 // pred_check_branch
        %1086 = sbr.rel (%p1084) target = $region60
      $region59: #{act_forward.6} parent=55 // pred_region
        %p1087 = scmp.lt.s32.totalorder %s23, 1
        %s1088 = scalar_select %p1087, %s23, 1
        %s1089 = smul.addr %s1088, 2
        %s1090 = smul.addr %s1089, 8
        %s1091 = scalar_lea.vmem %s6, %s1090
      $region60: #{act_forward.6} parent=55 // pred_fallthru
        _
    $region56: #{act_forward.6} parent=5 // pred_fallthru
      _
  $region6: #{act_forward.6} parent=0 // loop_footer
    %s16 = sadd.s32 1, %s12
  $region7: #{act_forward.6} parent=0 // loop_footer_branch
    %11 = sbr.rel target = $region3
  $region8: #{act_forward.6} parent=0 // loop_exit
    _

// kernel: act_forward.8
$region0: #{act_forward.8}
  #allocation0 [shape = 'u32[]', space=smem, size = 0x4, offset = 0x4, fixed_abs, tag = 'smem constant byte address 0x4 - core index']
  #allocation1 [shape = 'u32[72,128]{1,0:T(1,128)}', space=vmem, size = 0x9000, scoped, tag = 'internal scratch']
  %s0 = inlined_call_operand.vmem [shape: f32[2,18,32], index: 0, kind: input, shape index: {}]
  %s1 = inlined_call_operand.vmem [shape: f32[18,32], index: 1, kind: input, shape index: {}]
  %s2 = inlined_call_operand.vmem [shape: bf16[1,128,32], index: 2, kind: input, shape index: {}]
  %s3 = inlined_call_operand.vmem [shape: bf16[1,128,32], index: 3, kind: input, shape index: {}]
  %s4 = inlined_call_operand.vmem [shape: f32[1,9,32], index: 4, kind: input, shape index: {}]
  %s5 = inlined_call_operand.vmem [shape: f32[1,1,64], index: 5, kind: input, shape index: {}]
  %s6 = inlined_call_operand.vmem [shape: f32[2,18,32], index: 6, kind: output, shape index: {}]
  %s7 = sld [smem:[#allocation0]]
  $region61: #{act_forward.8} parent=0
    _
  %s9 = ssub.s32 1, %s7
  %s10 = scalar_select 0, %s9, %s7
  loop: start=0, step=1, limit=4
  $region2: #{act_forward.8} parent=0 // loop_pre_header
    _
  $region3: #{act_forward.8} parent=0 // loop_header
    %s12 = sphi 0, %s16
    %p13 = scmp.ge.s32.totalorder %s12, 4
    %s19 = sphi 0, %s31
    %s20 = sphi 0, %s27
    %s21 = sphi 0, %s19
    %s22 = sphi 0, %s20
    %s23 = sphi 0, %s21
    %s24 = sphi 0, %s22
    %s34 = sphi 0, %s36
    %s37 = sphi 0, %s34
    %s38 = sphi 0, %s37
    %s54 = sphi 0, %s38
    %s58 = sphi 0, %s58
    %s60 = sphi 0, %s58
    %s61 = sphi 0, %s60
    %s75 = sphi 0, %s61
    %s81 = sphi 0, %s83
    %s84 = sphi 0, %s81
    %s85 = sphi 0, %s84
    %s101 = sphi 0, %s85
    %s107 = sphi 0, %s109
    %s110 = sphi 0, %s107
    %s111 = sphi 0, %s110
    %s127 = sphi 0, %s111
    %s133 = sphi 0, %s135
    %s136 = sphi 0, %s133
    %s137 = sphi 0, %s136
    %s153 = sphi 0, %s137
    %s159 = sphi 0, %s161
    %s162 = sphi 0, %s159
    %s163 = sphi 0, %s162
    %s179 = sphi 0, %s163
    %s185 = sphi 0, %s187
    %s188 = sphi 0, %s185
    %s189 = sphi 0, %s188
    %s205 = sphi 0, %s189
  $region4: #{act_forward.8} parent=0 // loop_header_branch
    %15 = sbr.rel (%p13) target = $region8
  $region5: #{act_forward.8} parent=0 // loop_body
    %s17 = ssub.s32 %s12, 1
    %s18 = ssub.s32 %s12, 2
    %s25 = sadd.s32 1, %s20
    %p26 = scmp.ge.s32.totalorder %s25, 1
    %s27 = scalar_select %p26, 0, %s25
    %s28 = sadd.s32 1, %s19
    %s29 = scalar_select %p26, %s28, %s19
    %p30 = scmp.ge.s32.totalorder %s29, 2
    %s31 = scalar_select %p30, 0, %s29
    %s32 = ssub.s32 %s19, %s31
    %p33 = scmp.eq.s32.totalorder %s32, 0
    %s35 = sadd.s32 %s34, 1
    %s36 = scalar_select %p33, %s34, %s35
    %p39 = pneg %p33
    %p40 = scmp.eq.s32.totalorder %s12, 1
    %p41 = por %p39, %p40
    %p42 = scmp.ne.s32.totalorder %s34, %s37
    %p43 = scmp.eq.s32.totalorder %s12, 0
    %p44 = por %p42, %p43
    %p45 = scmp.ne.s32.totalorder %s34, %s37
    %p46 = scmp.eq.s32.totalorder %s17, 1
    %p47 = por %p45, %p46
    %p48 = scmp.ne.s32.totalorder %s37, %s38
    %p49 = scmp.eq.s32.totalorder %s17, 0
    %p50 = por %p48, %p49
    %p51 = scmp.ne.s32.totalorder %s37, %s38
    %p52 = scmp.eq.s32.totalorder %s18, 1
    %p53 = por %p51, %p52
    %p55 = scmp.ne.s32.totalorder %s38, %s54
    %p56 = scmp.eq.s32.totalorder %s18, 0
    %p57 = por %p55, %p56
    %s59 = sadd.s32 %s58, 1
    %p62 = scmp.eq.s32.totalorder %s12, 1
    %p63 = scmp.ne.s32.totalorder %s58, %s60
    %p64 = scmp.eq.s32.totalorder %s12, 0
    %p65 = por %p63, %p64
    %p66 = scmp.ne.s32.totalorder %s58, %s60
    %p67 = scmp.eq.s32.totalorder %s17, 1
    %p68 = por %p66, %p67
    %p69 = scmp.ne.s32.totalorder %s60, %s61
    %p70 = scmp.eq.s32.totalorder %s17, 0
    %p71 = por %p69, %p70
    %p72 = scmp.ne.s32.totalorder %s60, %s61
    %p73 = scmp.eq.s32.totalorder %s18, 1
    %p74 = por %p72, %p73
    %p76 = scmp.ne.s32.totalorder %s61, %s75
    %p77 = scmp.eq.s32.totalorder %s18, 0
    %p78 = por %p76, %p77
    %s79 = ssub.s32 %s20, %s27
    %p80 = scmp.eq.s32.totalorder %s79, 0
    %s82 = sadd.s32 %s81, 1
    %s83 = scalar_select %p80, %s81, %s82
    %p86 = pneg %p80
    %p87 = scmp.eq.s32.totalorder %s12, 1
    %p88 = por %p86, %p87
    %p89 = scmp.ne.s32.totalorder %s81, %s84
    %p90 = scmp.eq.s32.totalorder %s12, 0
    %p91 = por %p89, %p90
    %p92 = scmp.ne.s32.totalorder %s81, %s84
    %p93 = scmp.eq.s32.totalorder %s17, 1
    %p94 = por %p92, %p93
    %p95 = scmp.ne.s32.totalorder %s84, %s85
    %p96 = scmp.eq.s32.totalorder %s17, 0
    %p97 = por %p95, %p96
    %p98 = scmp.ne.s32.totalorder %s84, %s85
    %p99 = scmp.eq.s32.totalorder %s18, 1
    %p100 = por %p98, %p99
    %p102 = scmp.ne.s32.totalorder %s85, %s101
    %p103 = scmp.eq.s32.totalorder %s18, 0
    %p104 = por %p102, %p103
    %s105 = ssub.s32 %s20, %s27
    %p106 = scmp.eq.s32.totalorder %s105, 0
    %s108 = sadd.s32 %s107, 1
    %s109 = scalar_select %p106, %s107, %s108
    %p112 = pneg %p106
    %p113 = scmp.eq.s32.totalorder %s12, 1
    %p114 = por %p112, %p113
    %p115 = scmp.ne.s32.totalorder %s107, %s110
    %p116 = scmp.eq.s32.totalorder %s12, 0
    %p117 = por %p115, %p116
    %p118 = scmp.ne.s32.totalorder %s107, %s110
    %p119 = scmp.eq.s32.totalorder %s17, 1
    %p120 = por %p118, %p119
    %p121 = scmp.ne.s32.totalorder %s110, %s111
    %p122 = scmp.eq.s32.totalorder %s17, 0
    %p123 = por %p121, %p122
    %p124 = scmp.ne.s32.totalorder %s110, %s111
    %p125 = scmp.eq.s32.totalorder %s18, 1
    %p126 = por %p124, %p125
    %p128 = scmp.ne.s32.totalorder %s111, %s127
    %p129 = scmp.eq.s32.totalorder %s18, 0
    %p130 = por %p128, %p129
    %s131 = ssub.s32 %s20, %s27
    %p132 = scmp.eq.s32.totalorder %s131, 0
    %s134 = sadd.s32 %s133, 1
    %s135 = scalar_select %p132, %s133, %s134
    %p138 = pneg %p132
    %p139 = scmp.eq.s32.totalorder %s12, 1
    %p140 = por %p138, %p139
    %p141 = scmp.ne.s32.totalorder %s133, %s136
    %p142 = scmp.eq.s32.totalorder %s12, 0
    %p143 = por %p141, %p142
    %p144 = scmp.ne.s32.totalorder %s133, %s136
    %p145 = scmp.eq.s32.totalorder %s17, 1
    %p146 = por %p144, %p145
    %p147 = scmp.ne.s32.totalorder %s136, %s137
    %p148 = scmp.eq.s32.totalorder %s17, 0
    %p149 = por %p147, %p148
    %p150 = scmp.ne.s32.totalorder %s136, %s137
    %p151 = scmp.eq.s32.totalorder %s18, 1
    %p152 = por %p150, %p151
    %p154 = scmp.ne.s32.totalorder %s137, %s153
    %p155 = scmp.eq.s32.totalorder %s18, 0
    %p156 = por %p154, %p155
    %s157 = ssub.s32 %s20, %s27
    %p158 = scmp.eq.s32.totalorder %s157, 0
    %s160 = sadd.s32 %s159, 1
    %s161 = scalar_select %p158, %s159, %s160
    %p164 = pneg %p158
    %p165 = scmp.eq.s32.totalorder %s12, 1
    %p166 = por %p164, %p165
    %p167 = scmp.ne.s32.totalorder %s159, %s162
    %p168 = scmp.eq.s32.totalorder %s12, 0
    %p169 = por %p167, %p168
    %p170 = scmp.ne.s32.totalorder %s159, %s162
    %p171 = scmp.eq.s32.totalorder %s17, 1
    %p172 = por %p170, %p171
    %p173 = scmp.ne.s32.totalorder %s162, %s163
    %p174 = scmp.eq.s32.totalorder %s17, 0
    %p175 = por %p173, %p174
    %p176 = scmp.ne.s32.totalorder %s162, %s163
    %p177 = scmp.eq.s32.totalorder %s18, 1
    %p178 = por %p176, %p177
    %p180 = scmp.ne.s32.totalorder %s163, %s179
    %p181 = scmp.eq.s32.totalorder %s18, 0
    %p182 = por %p180, %p181
    %s183 = ssub.s32 %s19, %s31
    %p184 = scmp.eq.s32.totalorder %s183, 0
    %s186 = sadd.s32 %s185, 1
    %s187 = scalar_select %p184, %s185, %s186
    %p190 = pneg %p184
    %p191 = scmp.eq.s32.totalorder %s12, 1
    %p192 = por %p190, %p191
    %p193 = scmp.ne.s32.totalorder %s185, %s188
    %p194 = scmp.eq.s32.totalorder %s12, 0
    %p195 = por %p193, %p194
    %p196 = scmp.ne.s32.totalorder %s185, %s188
    %p197 = scmp.eq.s32.totalorder %s17, 1
    %p198 = por %p196, %p197
    %p199 = scmp.ne.s32.totalorder %s188, %s189
    %p200 = scmp.eq.s32.totalorder %s17, 0
    %p201 = por %p199, %p200
    %p202 = scmp.ne.s32.totalorder %s188, %s189
    %p203 = scmp.eq.s32.totalorder %s18, 1
    %p204 = por %p202, %p203
    %p206 = scmp.ne.s32.totalorder %s189, %s205
    %p207 = scmp.eq.s32.totalorder %s18, 0
    %p208 = por %p206, %p207
    %p209 = scmp.le.s32.totalorder 1, %s12
    %p210 = scmp.lt.s32.totalorder %s12, 3
    %p211 = pnand %p209, %p210
    %p212 = pneg %p211
    // Predicated region
    $region9: #{act_forward.8} parent=5 // pred_check
      _
    $region10: #{act_forward.8} parent=5 // pred_check_branch
      %214 = sbr.rel (%p211) target = $region12
    $region11: #{act_forward.8} parent=5 // pred_region
      %s215 = ssub.s32 %s12, 1
      // Predicated region
      $region13: #{act_forward.8} parent=11 // pred_check
        %p216 = pneg %p71
      $region14: #{act_forward.8} parent=11 // pred_check_branch
        %218 = sbr.rel (%p216) target = $region16
      $region15: #{act_forward.8} parent=11 // pred_region
        _
      $region16: #{act_forward.8} parent=11 // pred_fallthru
        _
      // Predicated region
      $region17: #{act_forward.8} parent=11 // pred_check
        %p219 = pneg %p97
      $region18: #{act_forward.8} parent=11 // pred_check_branch
        %221 = sbr.rel (%p219) target = $region20
      $region19: #{act_forward.8} parent=11 // pred_region
        %p222 = scmp.lt.s32.totalorder %s22, 0
        %s223 = scalar_select %p222, %s22, 0
        %s224 = smul.addr %s223, 16
        %s225 = smul.addr %s224, 4
        %s226 = scalar_lea.vmem %s2, %s225
      $region20: #{act_forward.8} parent=11 // pred_fallthru
        _
      // Predicated region
      $region21: #{act_forward.8} parent=11 // pred_check
        %p227 = pneg %p123
      $region22: #{act_forward.8} parent=11 // pred_check_branch
        %229 = sbr.rel (%p227) target = $region24
      $region23: #{act_forward.8} parent=11 // pred_region
        %p230 = scmp.lt.s32.totalorder %s22, 0
        %s231 = scalar_select %p230, %s22, 0
        %s232 = smul.addr %s231, 16
        %s233 = smul.addr %s232, 4
        %s234 = scalar_lea.vmem %s3, %s233
      $region24: #{act_forward.8} parent=11 // pred_fallthru
        _
      // Predicated region
      $region25: #{act_forward.8} parent=11 // pred_check
        %p235 = pneg %p149
      $region26: #{act_forward.8} parent=11 // pred_check_branch
        %237 = sbr.rel (%p235) target = $region28
      $region27: #{act_forward.8} parent=11 // pred_region
        %p238 = scmp.lt.s32.totalorder %s22, 0
        %s239 = scalar_select %p238, %s22, 0
        %s240 = smul.addr %s239, 2
        %s241 = smul.addr %s240, 8
        %s242 = scalar_lea.vmem %s4, %s241
      $region28: #{act_forward.8} parent=11 // pred_fallthru
        _
      // Predicated region
      $region29: #{act_forward.8} parent=11 // pred_check
        %p243 = pneg %p175
      $region30: #{act_forward.8} parent=11 // pred_check_branch
        %245 = sbr.rel (%p243) target = $region32
      $region31: #{act_forward.8} parent=11 // pred_region
        %p246 = scmp.lt.s32.totalorder %s22, 0
        %s247 = scalar_select %p246, %s22, 0
        %s248 = scalar_lea.vmem %s5, %s247
      $region32: #{act_forward.8} parent=11 // pred_fallthru
        _
    $region12: #{act_forward.8} parent=5 // pred_fallthru
      _
    %p249 = scmp.lt.s32.totalorder %s12, 2
    // Predicated region
    $region33: #{act_forward.8} parent=5 // pred_check
      %p250 = pneg %p249
    $region34: #{act_forward.8} parent=5 // pred_check_branch
      %252 = sbr.rel (%p250) target = $region36
    $region35: #{act_forward.8} parent=5 // pred_region
      // Predicated region
      $region37: #{act_forward.8} parent=35 // pred_check
        %p253 = pneg %p44
      $region38: #{act_forward.8} parent=35 // pred_check_branch
        %255 = sbr.rel (%p253) target = $region40
      $region39: #{act_forward.8} parent=35 // pred_region
        %p256 = scmp.lt.s32.totalorder %s19, 1
        %s257 = scalar_select %p256, %s19, 1
        %s258 = smul.addr %s257, 3
        %s259 = smul.addr %s258, 8
        %s260 = scalar_lea.vmem %s0, %s259
      $region40: #{act_forward.8} parent=35 // pred_fallthru
        _
    $region36: #{act_forward.8} parent=5 // pred_fallthru
      _
    %p261 = scmp.le.s32.totalorder 1, %s12
    %p262 = scmp.lt.s32.totalorder %s12, 3
    %p263 = pnand %p261, %p262
    %p264 = pneg %p263
    // Predicated region
    $region41: #{act_forward.8} parent=5 // pred_check
      _
    $region42: #{act_forward.8} parent=5 // pred_check_branch
      %266 = sbr.rel (%p263) target = $region44
    $region43: #{act_forward.8} parent=5 // pred_region
      %s267 = ssub.s32 %s12, 1
      %p268 = scmp.lt.s32.totalorder %s21, 1
      %s269 = scalar_select %p268, %s21, 1
      %s270 = smul.addr %s269, 3
      %s271 = smul.addr %s270, 8
      %s272 = scalar_lea.vmem %s0, %s271
      %p273 = pneg %p50
      %p274 = pneg %p47
      %p275 = pneg %p71
      %p276 = pneg %p68
      %p277 = scmp.lt.s32.totalorder %s22, 0
      %s278 = scalar_select %p277, %s22, 0
      %s279 = smul.addr %s278, 16
      %s280 = smul.addr %s279, 4
      %s281 = scalar_lea.vmem %s2, %s280
      %p282 = pneg %p97
      %p283 = pneg %p94
      %p284 = scmp.lt.s32.totalorder %s22, 0
      %s285 = scalar_select %p284, %s22, 0
      %s286 = smul.addr %s285, 16
      %s287 = smul.addr %s286, 4
      %s288 = scalar_lea.vmem %s3, %s287
      %p289 = pneg %p123
      %p290 = pneg %p120
      %p291 = scmp.lt.s32.totalorder %s22, 0
      %s292 = scalar_select %p291, %s22, 0
      %s293 = smul.addr %s292, 2
      %s294 = smul.addr %s293, 8
      %s295 = scalar_lea.vmem %s4, %s294
      %p296 = pneg %p149
      %p297 = pneg %p146
      %p298 = scmp.lt.s32.totalorder %s22, 0
      %s299 = scalar_select %p298, %s22, 0
      %s300 = scalar_lea.vmem %s5, %s299
      %p301 = pneg %p175
      %p302 = pneg %p172
      %p303 = pneg %p201
      %p304 = pneg %p198
      %p305 = scmp.lt.s32.totalorder %s21, 1
      %s306 = scalar_select %p305, %s21, 1
      %s307 = smul.addr %s306, 3
      %s308 = smul.addr %s307, 8
      %s309 = scalar_lea.vmem %s6, %s308
      %p310 = scmp.lt.s32.totalorder %s21, 1
      %s311 = scalar_select %p310, %s21, 1
      %s312 = smul.addr %s311, 3
      %s313 = smul.addr %s312, 8
      %s314 = scalar_lea.vmem %s0, %s313
      %p315 = scmp.lt.s32.totalorder %s22, 0
      %s316 = scalar_select %p315, %s22, 0
      %s317 = smul.addr %s316, 16
      %s318 = smul.addr %s317, 4
      %s319 = scalar_lea.vmem %s2, %s318
      %p320 = scmp.lt.s32.totalorder %s22, 0
      %s321 = scalar_select %p320, %s22, 0
      %s322 = smul.addr %s321, 16
      %s323 = smul.addr %s322, 4
      %s324 = scalar_lea.vmem %s3, %s323
      %p325 = scmp.lt.s32.totalorder %s22, 0
      %s326 = scalar_select %p325, %s22, 0
      %s327 = smul.addr %s326, 2
      %s328 = smul.addr %s327, 8
      %s329 = scalar_lea.vmem %s4, %s328
      %p330 = scmp.lt.s32.totalorder %s22, 0
      %s331 = scalar_select %p330, %s22, 0
      %s332 = scalar_lea.vmem %s5, %s331
      %p333 = scmp.lt.s32.totalorder %s21, 1
      %s334 = scalar_select %p333, %s21, 1
      %s335 = smul.addr %s334, 3
      %s336 = smul.addr %s335, 8
      %s337 = scalar_lea.vmem %s6, %s336
      %p339 = scmp.eq.s32.totalorder %s22, 0
      // Predicated region
      $region45: #{act_forward.8} parent=43 // pred_check
        %p340 = pneg %p339
      $region46: #{act_forward.8} parent=43 // pred_check_branch
        %342 = sbr.rel (%p340) target = $region48
      $region47: #{act_forward.8} parent=43 // pred_region
        %v343 = vld [vmem:[%s314] sm:$0xff]
        %v344 = vld [vmem:[%s314 + $0x8] sm:$0xff]
        %v345 = vld [vmem:[%s314 + $0x10] sm:$0x3]
        %vm346 = vcmask 261120
        %347 = vst.msk [vmem:[%s337] sm:$0xff] %vm346, %v343
        %348 = vst.msk [vmem:[%s337 + $0x8] sm:$0xff] %vm346, %v344
        %vm349 = vcmask 254976
        %350 = vst.msk [vmem:[%s337 + $0x10] sm:$0x3] %vm349, %v345
      $region48: #{act_forward.8} parent=43 // pred_fallthru
        _
      %v351 = vld [vmem:[%s337] sm:$0xff]
      %v352 = vld [vmem:[%s337 + $0x8] sm:$0xff]
      %v353 = vld [vmem:[%s337 + $0x10] sm:$0x3]
      %v354 = vld [vmem:[%s1] sm:$0xff]
      %v355 = vld [vmem:[%s1 + $0x8] sm:$0xff]
      %v356 = vld [vmem:[%s1 + $0x10] sm:$0x3]
      %v357 = vld [vmem:[%s319] sm:$0xf]
      %v358 = vld [vmem:[%s319 + $0x4] sm:$0xf]
      %v359 = vld [vmem:[%s319 + $0x8] sm:$0xf]
      %v360 = vld [vmem:[%s319 + $0xc] sm:$0xf]
      %v361 = vld [vmem:[%s319 + $0x10] sm:$0xf]
      %v362 = vld [vmem:[%s319 + $0x14] sm:$0xf]
      %v363 = vld [vmem:[%s319 + $0x18] sm:$0xf]
      %v364 = vld [vmem:[%s319 + $0x1c] sm:$0xf]
      %v365 = vld [vmem:[%s319 + $0x20] sm:$0xf]
      %v366 = vld [vmem:[%s319 + $0x24] sm:$0xf]
      %v367 = vld [vmem:[%s319 + $0x28] sm:$0xf]
      %v368 = vld [vmem:[%s319 + $0x2c] sm:$0xf]
      %v369 = vld [vmem:[%s319 + $0x30] sm:$0xf]
      %v370 = vld [vmem:[%s319 + $0x34] sm:$0xf]
      %v371 = vld [vmem:[%s319 + $0x38] sm:$0xf]
      %v372 = vld [vmem:[%s319 + $0x3c] sm:$0xf]
      %v373 = vld [vmem:[%s324] sm:$0xf]
      %v374 = vld [vmem:[%s324 + $0x4] sm:$0xf]
      %v375 = vld [vmem:[%s324 + $0x8] sm:$0xf]
      %v376 = vld [vmem:[%s324 + $0xc] sm:$0xf]
      %v377 = vld [vmem:[%s324 + $0x10] sm:$0xf]
      %v378 = vld [vmem:[%s324 + $0x14] sm:$0xf]
      %v379 = vld [vmem:[%s324 + $0x18] sm:$0xf]
      %v380 = vld [vmem:[%s324 + $0x1c] sm:$0xf]
      %v381 = vld [vmem:[%s324 + $0x20] sm:$0xf]
      %v382 = vld [vmem:[%s324 + $0x24] sm:$0xf]
      %v383 = vld [vmem:[%s324 + $0x28] sm:$0xf]
      %v384 = vld [vmem:[%s324 + $0x2c] sm:$0xf]
      %v385 = vld [vmem:[%s324 + $0x30] sm:$0xf]
      %v386 = vld [vmem:[%s324 + $0x34] sm:$0xf]
      %v387 = vld [vmem:[%s324 + $0x38] sm:$0xf]
      %v388 = vld [vmem:[%s324 + $0x3c] sm:$0xf]
      %v389 = vld [vmem:[%s329] sm:$0xff]
      %v390 = vld [vmem:[%s329 + $0x8] sm:$0x1]
      %v391 = vadd.f32 %v351, %v354
      %v392 = vadd.f32 %v352, %v355
      %v393 = vadd.f32 %v353, %v356
      %v394 = vpack.c.bf16 %v392, %v391
      %v395 = vpack.c.bf16 %v393, %v393
      %v396 = vpack.c.bf16 %v352, %v351
      %v397 = vpack.c.bf16 %v353, %v353
      %v406 = vunpack.c.l.b16 %v357
      %v407 = vunpack.c.l.b16 %v358
      %v408 = vunpack.c.l.b16 %v359
      %v409 = vunpack.c.l.b16 %v360
      %v410 = vunpack.c.l.b16 %v361
      %v411 = vunpack.c.l.b16 %v362
      %v412 = vunpack.c.l.b16 %v363
      %v413 = vunpack.c.l.b16 %v364
      %v414 = vpack.c.b16 %v407, %v406
      %v415 = vpack.c.b16 %v409, %v408
      %v416 = vpack.c.b16 %v411, %v410
      %v417 = vpack.c.b16 %v413, %v412
      %vm418 = vcmask 261120
      %v420 = vsel %vm418, %v394, 0
      %v423 = vsel %vm418, %v395, 0
      %v426 = vsel %vm418, %v414, 0
      %v429 = vsel %vm418, %v415, 0
      %v432 = vsel %vm418, %v416, 0
      %v435 = vsel %vm418, %v417, 0
      %437 = vmatpush.bf16.xpose.msra.mxu0 0
      %438 = vmatpush.bf16.xpose.msra.mxu0 0
      %439 = vmatpush.bf16.xpose.msra.mxu0 0
      %440 = vmatpush.bf16.xpose.msra.mxu0 0
      %441 = vmatpush.bf16.xpose.msra.mxu0 %v435
      %442 = vmatpush.bf16.xpose.msra.mxu0 %v432
      %443 = vmatpush.bf16.xpose.msra.mxu0 %v429
      %444 = vmatpush.bf16.xpose.msra.mxu0 %v426
      %445 = vmatmul.bf16.gmra.mxu0 %v420
      %v446 = vpop.f32.mrf.mxu0
      %v447 = vadd.f32 0.0, %v446
      %v448 = vpop.f32.mrf.mxu0
      %v449 = vadd.f32 0.0, %v448
      %450 = vmatmul.bf16.gmra.mxu0 %v423
      %v451 = vpop.f32.mrf.mxu0
      %v452 = vadd.f32 0.0, %v451
      %v453 = vpop.f32.mrf.mxu0
      %454 = vdwg.mxu0
      %v455 = vperm.slane %v389, 0
      %v456 = vadd.f32 %v447, %v455
      %v457 = vadd.f32 %v449, %v455
      %v458 = vadd.f32 %v452, %v455
      %v459 = vperm.slane %v389, 1
      %461 = vrot.lane.b32.xlu0 %v459, 32
      %v462 = vpop.permute.xlu0 %461
      %v464 = vadd.f32 %v447, %v462
      %v465 = vadd.f32 %v449, %v462
      %v466 = vadd.f32 %v452, %v462
      %v467 = vperm.slane %v389, 2
      %v472 = vunpack.c.l.b16 %v365
      %v473 = vunpack.c.l.b16 %v366
      %v474 = vunpack.c.l.b16 %v367
      %v475 = vunpack.c.l.b16 %v368
      %v476 = vpack.c.b16 %v473, %v472
      %v477 = vpack.c.b16 %v475, %v474
      %v479 = vsel %vm418, %v396, 0
      %v482 = vsel %vm418, %v397, 0
      %v485 = vsel %vm418, %v476, 0
      %v488 = vsel %vm418, %v477, 0
      %490 = vmatpush.bf16.xpose.msra.mxu0 0
      %491 = vmatpush.bf16.xpose.msra.mxu0 0
      %492 = vmatpush.bf16.xpose.msra.mxu0 0
      %493 = vmatpush.bf16.xpose.msra.mxu0 0
      %494 = vmatpush.bf16.xpose.msra.mxu0 0
      %495 = vmatpush.bf16.xpose.msra.mxu0 0
      %496 = vmatpush.bf16.xpose.msra.mxu0 %v488
      %497 = vmatpush.bf16.xpose.msra.mxu0 %v485
      %498 = vmatmul.bf16.gmra.mxu0 %v479
      %v499 = vpop.f32.mrf.mxu0
      %v500 = vadd.f32 %v467, %v499
      %v501 = vpop.f32.mrf.mxu0
      %v502 = vadd.f32 %v467, %v501
      %503 = vmatmul.bf16.gmra.mxu0 %v482
      %v504 = vpop.f32.mrf.mxu0
      %v505 = vadd.f32 %v467, %v504
      %v506 = vpop.f32.mrf.mxu0
      %507 = vdwg.mxu0
      %v508 = vpack.c.bf16 %v456, %v456
      %v509 = vpack.c.bf16 %v457, %v457
      %v510 = vpack.c.bf16 %v458, %v458
      %v511 = vpack.c.bf16 %v464, %v464
      %v512 = vpack.c.bf16 %v465, %v465
      %v513 = vpack.c.bf16 %v466, %v466
      %v514 = vpack.c.bf16 %v500, %v500
      %v515 = vpack.c.bf16 %v502, %v502
      %v516 = vpack.c.bf16 %v505, %v505
      %v520 = vunpack.c.l.b16 %v508
      %v521 = vunpack.c.l.b16 %v509
      %v522 = vunpack.c.l.b16 %v510
      %v523 = vpack.c.b16 %v521, %v520
      %v524 = vpack.c.b16 %v522, %v522
      %v528 = vunpack.c.l.b16 %v511
      %v529 = vunpack.c.l.b16 %v512
      %v530 = vunpack.c.l.b16 %v513
      %v531 = vpack.c.b16 %v529, %v528
      %v532 = vpack.c.b16 %v530, %v530
      %533 = vrot.lane.b32.xlu0 %v531, 96
      %v534 = vpop.permute.xlu0 %533
      %535 = vrot.lane.b32.xlu0 %v532, 96
      %v536 = vpop.permute.xlu0 %535
      %vm537 = vcmask 64512
      %v539 = vsel %vm537, %v523, 0
      %v542 = vsel %vm537, %v524, 0
      %v545 = vsel %vm537, %v534, 0
      %v548 = vsel %vm537, %v536, 0
      %550 = vmatpush.bf16.xpose.msra.mxu0 0
      %551 = vmatpush.bf16.xpose.msra.mxu0 0
      %552 = vmatpush.bf16.xpose.msra.mxu0 0
      %553 = vmatpush.bf16.xpose.msra.mxu0 0
      %554 = vmatpush.bf16.xpose.msra.mxu0 0
      %555 = vmatpush.bf16.xpose.msra.mxu0 0
      %556 = vmatpush.bf16.xpose.msra.mxu0 %v548
      %557 = vmatpush.bf16.xpose.msra.mxu0 %v545
      %558 = vmatmul.bf16.gmra.mxu0 %v539
      %v559 = vpop.f32.mrf.mxu0
      %v560 = vadd.f32 0.0, %v559
      %v561 = vpop.f32.mrf.mxu0
      %v562 = vadd.f32 0.0, %v561
      %563 = vmatmul.bf16.gmra.mxu0 %v542
      %v564 = vpop.f32.mrf.mxu0
      %v565 = vadd.f32 0.0, %v564
      %v566 = vpop.f32.mrf.mxu0
      %567 = vdwg.mxu0
      %v568 = vmul.f32 %v560, 0.35355338
      %v569 = vmul.f32 %v562, 0.35355338
      %v570 = vmul.f32 %v565, 0.35355338
      %vm571 = vcmask 146432
      %v572 = vsel %vm571, %v568, -inf
      %573 = vmax.xlane.f32.xlu0 %v572
      %v574 = vpop.xlane.xlu0 %573
      %v575 = vsel %vm571, %v569, -inf
      %576 = vmax.xlane.f32.xlu0 %v575
      %v577 = vpop.xlane.xlu0 %576
      %vm578 = vcmask 140288
      %v579 = vsel %vm578, %v570, -inf
      %580 = vmax.xlane.f32.xlu0 %v579
      %v581 = vpop.xlane.xlu0 %580
      %v582 = vsub.f32 %v568, %v574
      %v583 = vsub.f32 %v569, %v577
      %v584 = vsub.f32 %v570, %v581
      %v585 = vmul.f32 %v582, 1.442695
      %v586 = vpow.pop %v585
      %v587 = vmul.f32 %v583, 1.442695
      %v588 = vpow.pop %v587
      %v589 = vmul.f32 %v584, 1.442695
      %v590 = vpow.pop %v589
      %v591 = vsel %vm571, %v586, 0.0
      %592 = vadd.xlane.f32.xlu0 %v591
      %v593 = vpop.xlane.xlu0 %592
      %v594 = vsel %vm571, %v588, 0.0
      %595 = vadd.xlane.f32.xlu0 %v594
      %v596 = vpop.xlane.xlu0 %595
      %v597 = vsel %vm578, %v590, 0.0
      %598 = vadd.xlane.f32.xlu0 %v597
      %v599 = vpop.xlane.xlu0 %598
      %v600 = vrcp.pop %v593
      %v601 = vrcp.pop %v596
      %v602 = vrcp.pop %v599
      %v603 = vmul.f32 %v586, %v600
      %v604 = vmul.f32 %v588, %v601
      %v605 = vmul.f32 %v590, %v602
      %v606 = vpack.c.bf16 %v604, %v603
      %v607 = vpack.c.bf16 %v605, %v605
      %v611 = vunpack.c.l.b16 %v514
      %v612 = vunpack.c.l.b16 %v515
      %v613 = vunpack.c.l.b16 %v516
      %v614 = vpack.c.b16 %v612, %v611
      %v615 = vpack.c.b16 %v613, %v613
      %v618 = vsel %vm571, %v606, 0
      %v621 = vsel %vm571, %v607, 0
      %vm623 = vcmask 1040384
      %v625 = vsel %vm623, %v615, 0
      %627 = vmatpush.bf16.msra.mxu0 0
      %628 = vmatpush.bf16.msra.mxu0 0
      %629 = vmatpush.bf16.msra.mxu0 0
      %630 = vmatpush.bf16.msra.mxu0 0
      %631 = vmatpush.bf16.msra.mxu0 0
      %632 = vmatpush.bf16.msra.mxu0 0
      %633 = vmatpush.bf16.msra.mxu0 %v625
      %634 = vmatpush.bf16.msra.mxu0 %v614
      %635 = vmatmul.bf16.gmra.mxu0 %v618
      %v636 = vpop.f32.mrf.mxu0
      %v637 = vadd.f32 0.0, %v636
      %v638 = vpop.f32.mrf.mxu0
      %v639 = vadd.f32 0.0, %v638
      %640 = vmatmul.bf16.gmra.mxu0 %v621
      %v641 = vpop.f32.mrf.mxu0
      %v642 = vadd.f32 0.0, %v641
      %v643 = vpop.f32.mrf.mxu0
      %644 = vdwg.mxu0
      %645 = vrot.lane.b32.xlu0 %v523, 120
      %v646 = vpop.permute.xlu0 %645
      %647 = vrot.lane.b32.xlu0 %v524, 120
      %v648 = vpop.permute.xlu0 %647
      %649 = vrot.lane.b32.xlu0 %v531, 88
      %v650 = vpop.permute.xlu0 %649
      %651 = vrot.lane.b32.xlu0 %v532, 88
      %v652 = vpop.permute.xlu0 %651
      %v654 = vsel %vm537, %v646, 0
      %v657 = vsel %vm537, %v648, 0
      %v660 = vsel %vm537, %v650, 0
      %v663 = vsel %vm537, %v652, 0
      %665 = vmatpush.bf16.xpose.msra.mxu0 0
      %666 = vmatpush.bf16.xpose.msra.mxu0 0
      %667 = vmatpush.bf16.xpose.msra.mxu0 0
      %668 = vmatpush.bf16.xpose.msra.mxu0 0
      %669 = vmatpush.bf16.xpose.msra.mxu0 0
      %670 = vmatpush.bf16.xpose.msra.mxu0 0
      %671 = vmatpush.bf16.xpose.msra.mxu0 %v663
      %672 = vmatpush.bf16.xpose.msra.mxu0 %v660
      %673 = vmatmul.bf16.gmra.mxu0 %v654
      %v674 = vpop.f32.mrf.mxu0
      %v675 = vadd.f32 0.0, %v674
      %v676 = vpop.f32.mrf.mxu0
      %v677 = vadd.f32 0.0, %v676
      %678 = vmatmul.bf16.gmra.mxu0 %v657
      %v679 = vpop.f32.mrf.mxu0
      %v680 = vadd.f32 0.0, %v679
      %v681 = vpop.f32.mrf.mxu0
      %682 = vdwg.mxu0
      %v683 = vmul.f32 %v675, 0.35355338
      %v684 = vmul.f32 %v677, 0.35355338
      %v685 = vmul.f32 %v680, 0.35355338
      %v686 = vsel %vm571, %v683, -inf
      %687 = vmax.xlane.f32.xlu0 %v686
      %v688 = vpop.xlane.xlu0 %687
      %v689 = vsel %vm571, %v684, -inf
      %690 = vmax.xlane.f32.xlu0 %v689
      %v691 = vpop.xlane.xlu0 %690
      %v692 = vsel %vm578, %v685, -inf
      %693 = vmax.xlane.f32.xlu0 %v692
      %v694 = vpop.xlane.xlu0 %693
      %v695 = vsub.f32 %v683, %v688
      %v696 = vsub.f32 %v684, %v691
      %v697 = vsub.f32 %v685, %v694
      %v698 = vmul.f32 %v695, 1.442695
      %v699 = vpow.pop %v698
      %v700 = vmul.f32 %v696, 1.442695
      %v701 = vpow.pop %v700
      %v702 = vmul.f32 %v697, 1.442695
      %v703 = vpow.pop %v702
      %v704 = vsel %vm571, %v699, 0.0
      %705 = vadd.xlane.f32.xlu0 %v704
      %v706 = vpop.xlane.xlu0 %705
      %v707 = vsel %vm571, %v701, 0.0
      %708 = vadd.xlane.f32.xlu0 %v707
      %v709 = vpop.xlane.xlu0 %708
      %v710 = vsel %vm578, %v703, 0.0
      %711 = vadd.xlane.f32.xlu0 %v710
      %v712 = vpop.xlane.xlu0 %711
      %v713 = vrcp.pop %v706
      %v714 = vrcp.pop %v709
      %v715 = vrcp.pop %v712
      %v716 = vmul.f32 %v699, %v713
      %v717 = vmul.f32 %v701, %v714
      %v718 = vmul.f32 %v703, %v715
      %v719 = vpack.c.bf16 %v717, %v716
      %v720 = vpack.c.bf16 %v718, %v718
      %721 = vrot.lane.b32.xlu0 %v614, 120
      %v722 = vpop.permute.xlu0 %721
      %723 = vrot.lane.b32.xlu0 %v615, 120
      %v724 = vpop.permute.xlu0 %723
      %v727 = vsel %vm571, %v719, 0
      %v730 = vsel %vm571, %v720, 0
      %v733 = vsel %vm623, %v724, 0
      %735 = vmatpush.bf16.msra.mxu0 0
      %736 = vmatpush.bf16.msra.mxu0 0
      %737 = vmatpush.bf16.msra.mxu0 0
      %738 = vmatpush.bf16.msra.mxu0 0
      %739 = vmatpush.bf16.msra.mxu0 0
      %740 = vmatpush.bf16.msra.mxu0 0
      %741 = vmatpush.bf16.msra.mxu0 %v733
      %742 = vmatpush.bf16.msra.mxu0 %v722
      %743 = vmatmul.bf16.gmra.mxu0 %v727
      %v744 = vpop.f32.mrf.mxu0
      %v745 = vadd.f32 0.0, %v744
      %v746 = vpop.f32.mrf.mxu0
      %v747 = vadd.f32 0.0, %v746
      %748 = vmatmul.bf16.gmra.mxu0 %v730
      %v749 = vpop.f32.mrf.mxu0
      %v750 = vadd.f32 0.0, %v749
      %v751 = vpop.f32.mrf.mxu0
      %752 = vdwg.mxu0
      %753 = vrot.lane.b32.xlu0 %v523, 112
      %v754 = vpop.permute.xlu0 %753
      %755 = vrot.lane.b32.xlu0 %v524, 112
      %v756 = vpop.permute.xlu0 %755
      %757 = vrot.lane.b32.xlu0 %v531, 80
      %v758 = vpop.permute.xlu0 %757
      %759 = vrot.lane.b32.xlu0 %v532, 80
      %v760 = vpop.permute.xlu0 %759
      %v762 = vsel %vm537, %v754, 0
      %v765 = vsel %vm537, %v756, 0
      %v768 = vsel %vm537, %v758, 0
      %v771 = vsel %vm537, %v760, 0
      %773 = vmatpush.bf16.xpose.msra.mxu0 0
      %774 = vmatpush.bf16.xpose.msra.mxu0 0
      %775 = vmatpush.bf16.xpose.msra.mxu0 0
      %776 = vmatpush.bf16.xpose.msra.mxu0 0
      %777 = vmatpush.bf16.xpose.msra.mxu0 0
      %778 = vmatpush.bf16.xpose.msra.mxu0 0
      %779 = vmatpush.bf16.xpose.msra.mxu0 %v771
      %780 = vmatpush.bf16.xpose.msra.mxu0 %v768
      %781 = vmatmul.bf16.gmra.mxu0 %v762
      %v782 = vpop.f32.mrf.mxu0
      %v783 = vadd.f32 0.0, %v782
      %v784 = vpop.f32.mrf.mxu0
      %v785 = vadd.f32 0.0, %v784
      %786 = vmatmul.bf16.gmra.mxu0 %v765
      %v787 = vpop.f32.mrf.mxu0
      %v788 = vadd.f32 0.0, %v787
      %v789 = vpop.f32.mrf.mxu0
      %790 = vdwg.mxu0
      %v791 = vmul.f32 %v783, 0.35355338
      %v792 = vmul.f32 %v785, 0.35355338
      %v793 = vmul.f32 %v788, 0.35355338
      %v794 = vsel %vm571, %v791, -inf
      %795 = vmax.xlane.f32.xlu0 %v794
      %v796 = vpop.xlane.xlu0 %795
      %v797 = vsel %vm571, %v792, -inf
      %798 = vmax.xlane.f32.xlu0 %v797
      %v799 = vpop.xlane.xlu0 %798
      %v800 = vsel %vm578, %v793, -inf
      %801 = vmax.xlane.f32.xlu0 %v800
      %v802 = vpop.xlane.xlu0 %801
      %v803 = vsub.f32 %v791, %v796
      %v804 = vsub.f32 %v792, %v799
      %v805 = vsub.f32 %v793, %v802
      %v806 = vmul.f32 %v803, 1.442695
      %v807 = vpow.pop %v806
      %v808 = vmul.f32 %v804, 1.442695
      %v809 = vpow.pop %v808
      %v810 = vmul.f32 %v805, 1.442695
      %v811 = vpow.pop %v810
      %v812 = vsel %vm571, %v807, 0.0
      %813 = vadd.xlane.f32.xlu0 %v812
      %v814 = vpop.xlane.xlu0 %813
      %v815 = vsel %vm571, %v809, 0.0
      %816 = vadd.xlane.f32.xlu0 %v815
      %v817 = vpop.xlane.xlu0 %816
      %v818 = vsel %vm578, %v811, 0.0
      %819 = vadd.xlane.f32.xlu0 %v818
      %v820 = vpop.xlane.xlu0 %819
      %v821 = vrcp.pop %v814
      %v822 = vrcp.pop %v817
      %v823 = vrcp.pop %v820
      %v824 = vmul.f32 %v807, %v821
      %v825 = vmul.f32 %v809, %v822
      %v826 = vmul.f32 %v811, %v823
      %v827 = vpack.c.bf16 %v825, %v824
      %v828 = vpack.c.bf16 %v826, %v826
      %829 = vrot.lane.b32.xlu0 %v614, 112
      %v830 = vpop.permute.xlu0 %829
      %831 = vrot.lane.b32.xlu0 %v615, 112
      %v832 = vpop.permute.xlu0 %831
      %v835 = vsel %vm571, %v827, 0
      %v838 = vsel %vm571, %v828, 0
      %v841 = vsel %vm623, %v832, 0
      %843 = vmatpush.bf16.msra.mxu0 0
      %844 = vmatpush.bf16.msra.mxu0 0
      %845 = vmatpush.bf16.msra.mxu0 0
      %846 = vmatpush.bf16.msra.mxu0 0
      %847 = vmatpush.bf16.msra.mxu0 0
      %848 = vmatpush.bf16.msra.mxu0 0
      %849 = vmatpush.bf16.msra.mxu0 %v841
      %850 = vmatpush.bf16.msra.mxu0 %v830
      %851 = vmatmul.bf16.gmra.mxu0 %v835
      %v852 = vpop.f32.mrf.mxu0
      %v853 = vadd.f32 0.0, %v852
      %v854 = vpop.f32.mrf.mxu0
      %v855 = vadd.f32 0.0, %v854
      %856 = vmatmul.bf16.gmra.mxu0 %v838
      %v857 = vpop.f32.mrf.mxu0
      %v858 = vadd.f32 0.0, %v857
      %v859 = vpop.f32.mrf.mxu0
      %860 = vdwg.mxu0
      %861 = vrot.lane.b32.xlu0 %v523, 104
      %v862 = vpop.permute.xlu0 %861
      %863 = vrot.lane.b32.xlu0 %v524, 104
      %v864 = vpop.permute.xlu0 %863
      %865 = vrot.lane.b32.xlu0 %v531, 72
      %v866 = vpop.permute.xlu0 %865
      %867 = vrot.lane.b32.xlu0 %v532, 72
      %v868 = vpop.permute.xlu0 %867
      %v870 = vsel %vm537, %v862, 0
      %v873 = vsel %vm537, %v864, 0
      %v876 = vsel %vm537, %v866, 0
      %v879 = vsel %vm537, %v868, 0
      %881 = vmatpush.bf16.xpose.msra.mxu0 0
      %882 = vmatpush.bf16.xpose.msra.mxu0 0
      %883 = vmatpush.bf16.xpose.msra.mxu0 0
      %884 = vmatpush.bf16.xpose.msra.mxu0 0
      %885 = vmatpush.bf16.xpose.msra.mxu0 0
      %886 = vmatpush.bf16.xpose.msra.mxu0 0
      %887 = vmatpush.bf16.xpose.msra.mxu0 %v879
      %888 = vmatpush.bf16.xpose.msra.mxu0 %v876
      %889 = vmatmul.bf16.gmra.mxu0 %v870
      %v890 = vpop.f32.mrf.mxu0
      %v891 = vadd.f32 0.0, %v890
      %v892 = vpop.f32.mrf.mxu0
      %v893 = vadd.f32 0.0, %v892
      %894 = vmatmul.bf16.gmra.mxu0 %v873
      %v895 = vpop.f32.mrf.mxu0
      %v896 = vadd.f32 0.0, %v895
      %v897 = vpop.f32.mrf.mxu0
      %898 = vdwg.mxu0
      %v899 = vmul.f32 %v891, 0.35355338
      %v900 = vmul.f32 %v893, 0.35355338
      %v901 = vmul.f32 %v896, 0.35355338
      %v902 = vsel %vm571, %v899, -inf
      %903 = vmax.xlane.f32.xlu0 %v902
      %v904 = vpop.xlane.xlu0 %903
      %v905 = vsel %vm571, %v900, -inf
      %906 = vmax.xlane.f32.xlu0 %v905
      %v907 = vpop.xlane.xlu0 %906
      %v908 = vsel %vm578, %v901, -inf
      %909 = vmax.xlane.f32.xlu0 %v908
      %v910 = vpop.xlane.xlu0 %909
      %v911 = vsub.f32 %v899, %v904
      %v912 = vsub.f32 %v900, %v907
      %v913 = vsub.f32 %v901, %v910
      %v914 = vmul.f32 %v911, 1.442695
      %v915 = vpow.pop %v914
      %v916 = vmul.f32 %v912, 1.442695
      %v917 = vpow.pop %v916
      %v918 = vmul.f32 %v913, 1.442695
      %v919 = vpow.pop %v918
      %v920 = vsel %vm571, %v915, 0.0
      %921 = vadd.xlane.f32.xlu0 %v920
      %v922 = vpop.xlane.xlu0 %921
      %v923 = vsel %vm571, %v917, 0.0
      %924 = vadd.xlane.f32.xlu0 %v923
      %v925 = vpop.xlane.xlu0 %924
      %v926 = vsel %vm578, %v919, 0.0
      %927 = vadd.xlane.f32.xlu0 %v926
      %v928 = vpop.xlane.xlu0 %927
      %v929 = vrcp.pop %v922
      %v930 = vrcp.pop %v925
      %v931 = vrcp.pop %v928
      %v932 = vmul.f32 %v915, %v929
      %v933 = vmul.f32 %v917, %v930
      %v934 = vmul.f32 %v919, %v931
      %v935 = vpack.c.bf16 %v933, %v932
      %v936 = vpack.c.bf16 %v934, %v934
      %937 = vrot.lane.b32.xlu0 %v614, 104
      %v938 = vpop.permute.xlu0 %937
      %939 = vrot.lane.b32.xlu0 %v615, 104
      %v940 = vpop.permute.xlu0 %939
      %v943 = vsel %vm571, %v935, 0
      %v946 = vsel %vm571, %v936, 0
      %v949 = vsel %vm623, %v940, 0
      %951 = vmatpush.bf16.msra.mxu0 0
      %952 = vmatpush.bf16.msra.mxu0 0
      %953 = vmatpush.bf16.msra.mxu0 0
      %954 = vmatpush.bf16.msra.mxu0 0
      %955 = vmatpush.bf16.msra.mxu0 0
      %956 = vmatpush.bf16.msra.mxu0 0
      %957 = vmatpush.bf16.msra.mxu0 %v949
      %958 = vmatpush.bf16.msra.mxu0 %v938
      %959 = vmatmul.bf16.gmra.mxu0 %v943
      %v960 = vpop.f32.mrf.mxu0
      %v961 = vadd.f32 0.0, %v960
      %v962 = vpop.f32.mrf.mxu0
      %v963 = vadd.f32 0.0, %v962
      %964 = vmatmul.bf16.gmra.mxu0 %v946
      %v965 = vpop.f32.mrf.mxu0
      %v966 = vadd.f32 0.0, %v965
      %v967 = vpop.f32.mrf.mxu0
      %968 = vdwg.mxu0
      %972 = vrot.lane.b32.xlu0 %v745, 8
      %v973 = vpop.permute.xlu0 %972
      %974 = vrot.lane.b32.xlu0 %v747, 8
      %v975 = vpop.permute.xlu0 %974
      %976 = vrot.lane.b32.xlu0 %v750, 8
      %v977 = vpop.permute.xlu0 %976
      %984 = vrot.lane.b32.xlu0 %v853, 16
      %v985 = vpop.permute.xlu0 %984
      %986 = vrot.lane.b32.xlu0 %v855, 16
      %v987 = vpop.permute.xlu0 %986
      %988 = vrot.lane.b32.xlu0 %v858, 16
      %v989 = vpop.permute.xlu0 %988
      %996 = vrot.lane.b32.xlu0 %v961, 24
      %v997 = vpop.permute.xlu0 %996
      %998 = vrot.lane.b32.xlu0 %v963, 24
      %v999 = vpop.permute.xlu0 %998
      %1000 = vrot.lane.b32.xlu0 %v966, 24
      %v1001 = vpop.permute.xlu0 %1000
      %v1005 = vsel %vm537, %v637, %v973
      %v1006 = vsel %vm537, %v639, %v975
      %v1007 = vsel %vm537, %v642, %v977
      %vm1008 = vcmask 130048
      %v1009 = vsel %vm1008, %v1005, %v985
      %v1010 = vsel %vm1008, %v1006, %v987
      %v1011 = vsel %vm1008, %v1007, %v989
      %vm1012 = vcmask 195584
      %v1013 = vsel %vm1012, %v1009, %v997
      %v1014 = vsel %vm1012, %v1010, %v999
      %v1015 = vsel %vm1012, %v1011, %v1001
      %v1016 = vpack.c.bf16 %v1014, %v1013
      %v1017 = vpack.c.bf16 %v1015, %v1015
      %v1018 = vperm.slane %v389, 3
      %v1023 = vunpack.c.l.b16 %v369
      %v1024 = vunpack.c.l.b16 %v370
      %v1025 = vunpack.c.l.b16 %v371
      %v1026 = vunpack.c.l.b16 %v372
      %v1027 = vpack.c.b16 %v1024, %v1023
      %v1028 = vpack.c.b16 %v1026, %v1025
      %v1030 = vsel %vm418, %v1016, 0
      %v1033 = vsel %vm418, %v1017, 0
      %v1036 = vsel %vm418, %v1027, 0
      %v1039 = vsel %vm418, %v1028, 0
      %1041 = vmatpush.bf16.xpose.msra.mxu0 0
      %1042 = vmatpush.bf16.xpose.msra.mxu0 0
      %1043 = vmatpush.bf16.xpose.msra.mxu0 0
      %1044 = vmatpush.bf16.xpose.msra.mxu0 0
      %1045 = vmatpush.bf16.xpose.msra.mxu0 0
      %1046 = vmatpush.bf16.xpose.msra.mxu0 0
      %1047 = vmatpush.bf16.xpose.msra.mxu0 %v1039
      %1048 = vmatpush.bf16.xpose.msra.mxu0 %v1036
      %1049 = vmatmul.bf16.gmra.mxu0 %v1030
      %v1050 = vpop.f32.mrf.mxu0
      %v1051 = vadd.f32 %v1018, %v1050
      %v1052 = vpop.f32.mrf.mxu0
      %v1053 = vadd.f32 %v1018, %v1052
      %1054 = vmatmul.bf16.gmra.mxu0 %v1033
      %v1055 = vpop.f32.mrf.mxu0
      %v1056 = vadd.f32 %v1018, %v1055
      %v1057 = vpop.f32.mrf.mxu0
      %1058 = vdwg.mxu0
      %v1059 = vadd.f32 %v351, %v1051
      %v1060 = vadd.f32 %v352, %v1053
      %v1061 = vadd.f32 %v353, %v1056
      %v1062 = vsel %vm418, %v1059, 0.0
      %1063 = vadd.xlane.f32.xlu0 %v1062
      %v1064 = vpop.xlane.xlu0 %1063
      %v1065 = vsel %vm418, %v1060, 0.0
      %1066 = vadd.xlane.f32.xlu0 %v1065
      %v1067 = vpop.xlane.xlu0 %1066
      %vm1068 = vcmask 254976
      %v1069 = vsel %vm1068, %v1061, 0.0
      %1070 = vadd.xlane.f32.xlu0 %v1069
      %v1071 = vpop.xlane.xlu0 %1070
      %v1072 = vrcp.pop 32.0
      %v1073 = vmul.f32 32.0, %v1072
      %v1074 = vsub.f32 1.0, %v1073
      %v1075 = vmul.f32 %v1072, %v1074
      %v1076 = vadd.f32 %v1072, %v1075
      %vm1077 = vweird.f32 %v1072
      %v1078 = vsel %vm1077, %v1072, %v1076
      %v1079 = vmul.f32 %v1064, %v1078
      %v1080 = vmul.f32 %v1067, %v1078
      %v1081 = vmul.f32 %v1071, %v1078
      %v1082 = vsub.f32 %v1059, %v1079
      %v1083 = vsub.f32 %v1060, %v1080
      %v1084 = vsub.f32 %v1061, %v1081
      %v1085 = vmul.f32 %v1082, %v1082
      %v1086 = vmul.f32 %v1083, %v1083
      %v1087 = vmul.f32 %v1084, %v1084
      %v1088 = vsel %vm418, %v1085, 0.0
      %1089 = vadd.xlane.f32.xlu0 %v1088
      %v1090 = vpop.xlane.xlu0 %1089
      %v1091 = vsel %vm418, %v1086, 0.0
      %1092 = vadd.xlane.f32.xlu0 %v1091
      %v1093 = vpop.xlane.xlu0 %1092
      %v1094 = vsel %vm1068, %v1087, 0.0
      %1095 = vadd.xlane.f32.xlu0 %v1094
      %v1096 = vpop.xlane.xlu0 %1095
      %v1097 = vmul.f32 %v1090, %v1078
      %v1098 = vmul.f32 %v1093, %v1078
      %v1099 = vmul.f32 %v1096, %v1078
      %v1100 = vadd.f32 %v1097, 1e-05
      %v1101 = vadd.f32 %v1098, 1e-05
      %v1102 = vadd.f32 %v1099, 1e-05
      %v1103 = vrsqrt.pop %v1100
      %v1104 = vmul.f32 %v1103, %v1100
      %v1105 = vmul.f32 %v1104, %v1103
      %v1106 = vmul.f32 0.5, %v1105
      %v1107 = vsub.f32 1.5, %v1106
      %v1108 = vmul.f32 %v1103, %v1107
      %vm1109 = vweird.f32 %v1100
      %vm1110 = vweird.f32 %v1103
      %vm1111 = vmor %vm1109, %vm1110
      %v1112 = vsel %vm1111, %v1103, %v1108
      %v1113 = vrsqrt.pop %v1101
      %v1114 = vmul.f32 %v1113, %v1101
      %v1115 = vmul.f32 %v1114, %v1113
      %v1116 = vmul.f32 0.5, %v1115
      %v1117 = vsub.f32 1.5, %v1116
      %v1118 = vmul.f32 %v1113, %v1117
      %vm1119 = vweird.f32 %v1101
      %vm1120 = vweird.f32 %v1113
      %vm1121 = vmor %vm1119, %vm1120
      %v1122 = vsel %vm1121, %v1113, %v1118
      %v1123 = vrsqrt.pop %v1102
      %v1124 = vmul.f32 %v1123, %v1102
      %v1125 = vmul.f32 %v1124, %v1123
      %v1126 = vmul.f32 0.5, %v1125
      %v1127 = vsub.f32 1.5, %v1126
      %v1128 = vmul.f32 %v1123, %v1127
      %vm1129 = vweird.f32 %v1102
      %vm1130 = vweird.f32 %v1123
      %vm1131 = vmor %vm1129, %vm1130
      %v1132 = vsel %vm1131, %v1123, %v1128
      %v1133 = vmul.f32 %v1082, %v1112
      %v1134 = vmul.f32 %v1083, %v1122
      %v1135 = vmul.f32 %v1084, %v1132
      %v1136 = vperm.slane %v389, 4
      %v1137 = vmul.f32 %v1133, %v1136
      %v1138 = vmul.f32 %v1134, %v1136
      %v1139 = vmul.f32 %v1135, %v1136
      %v1140 = vperm.slane %v389, 5
      %v1141 = vadd.f32 %v1137, %v1140
      %v1142 = vadd.f32 %v1138, %v1140
      %v1143 = vadd.f32 %v1139, %v1140
      %v1144 = vpack.c.bf16 %v1142, %v1141
      %v1145 = vpack.c.bf16 %v1143, %v1143
      %v1146 = vld [vmem:[%s332] sm:$0x1]
      %v1148 = vperm.slane %v1146, 0
      %v1158 = vunpack.c.l.b16 %v373
      %v1159 = vunpack.c.l.b16 %v374
      %v1160 = vunpack.c.l.b16 %v375
      %v1161 = vunpack.c.l.b16 %v376
      %v1162 = vunpack.c.l.b16 %v377
      %v1163 = vunpack.c.l.b16 %v378
      %v1164 = vunpack.c.l.b16 %v379
      %v1165 = vunpack.c.l.b16 %v380
      %v1166 = vpack.c.b16 %v1159, %v1158
      %v1167 = vpack.c.b16 %v1161, %v1160
      %v1168 = vpack.c.b16 %v1163, %v1162
      %v1169 = vpack.c.b16 %v1165, %v1164
      %v1171 = vsel %vm418, %v1144, 0
      %v1174 = vsel %vm418, %v1145, 0
      %v1177 = vsel %vm418, %v1166, 0
      %v1180 = vsel %vm418, %v1167, 0
      %v1183 = vsel %vm418, %v1168, 0
      %v1186 = vsel %vm418, %v1169, 0
      %1188 = vmatpush.bf16.xpose.msra.mxu0 0
      %1189 = vmatpush.bf16.xpose.msra.mxu0 0
      %1190 = vmatpush.bf16.xpose.msra.mxu0 0
      %1191 = vmatpush.bf16.xpose.msra.mxu0 0
      %1192 = vmatpush.bf16.xpose.msra.mxu0 %v1186
      %1193 = vmatpush.bf16.xpose.msra.mxu0 %v1183
      %1194 = vmatpush.bf16.xpose.msra.mxu0 %v1180
      %1195 = vmatpush.bf16.xpose.msra.mxu0 %v1177
      %1196 = vmatmul.bf16.gmra.mxu0 %v1171
      %v1197 = vpop.f32.mrf.mxu0
      %v1198 = vadd.f32 %v1148, %v1197
      %v1199 = vpop.f32.mrf.mxu0
      %v1200 = vadd.f32 %v1148, %v1199
      %1201 = vmatmul.bf16.gmra.mxu0 %v1174
      %v1202 = vpop.f32.mrf.mxu0
      %v1203 = vadd.f32 %v1148, %v1202
      %v1204 = vpop.f32.mrf.mxu0
      %1205 = vdwg.mxu0
      %v1206 = vmax.f32 %v1198, 0.0
      %v1207 = vmax.f32 %v1200, 0.0
      %v1208 = vmax.f32 %v1203, 0.0
      %v1209 = vpack.c.bf16 %v1207, %v1206
      %v1210 = vpack.c.bf16 %v1208, %v1208
      %v1211 = vperm.slane %v390, 0
      %v1220 = vunpack.c.l.b16 %v381
      %v1221 = vunpack.c.l.b16 %v382
      %v1222 = vunpack.c.l.b16 %v383
      %v1223 = vunpack.c.l.b16 %v384
      %v1224 = vunpack.c.l.b16 %v385
      %v1225 = vunpack.c.l.b16 %v386
      %v1226 = vunpack.c.l.b16 %v387
      %v1227 = vunpack.c.l.b16 %v388
      %v1228 = vpack.c.b16 %v1221, %v1220
      %v1229 = vpack.c.b16 %v1223, %v1222
      %v1230 = vpack.c.b16 %v1225, %v1224
      %v1231 = vpack.c.b16 %v1227, %v1226
      %vm1236 = vcmask 523264
      %v1238 = vsel %vm1236, %v1209, 0
      %v1241 = vsel %vm1236, %v1210, 0
      %1243 = vmatpush.bf16.msra.mxu0 0
      %1244 = vmatpush.bf16.msra.mxu0 0
      %1245 = vmatpush.bf16.msra.mxu0 0
      %1246 = vmatpush.bf16.msra.mxu0 0
      %1247 = vmatpush.bf16.msra.mxu0 %v1231
      %1248 = vmatpush.bf16.msra.mxu0 %v1230
      %1249 = vmatpush.bf16.msra.mxu0 %v1229
      %1250 = vmatpush.bf16.msra.mxu0 %v1228
      %1251 = vmatmul.bf16.gmra.mxu0 %v1238
      %v1252 = vpop.f32.mrf.mxu0
      %v1253 = vadd.f32 %v1211, %v1252
      %v1254 = vpop.f32.mrf.mxu0
      %v1255 = vadd.f32 %v1211, %v1254
      %1256 = vmatmul.bf16.gmra.mxu0 %v1241
      %v1257 = vpop.f32.mrf.mxu0
      %v1258 = vadd.f32 %v1211, %v1257
      %v1259 = vpop.f32.mrf.mxu0
      %1260 = vdwg.mxu0
      %v1261 = vadd.f32 %v1141, %v1253
      %v1262 = vadd.f32 %v1142, %v1255
      %v1263 = vadd.f32 %v1143, %v1258
      %v1264 = vsel %vm418, %v1261, 0.0
      %1265 = vadd.xlane.f32.xlu0 %v1264
      %v1266 = vpop.xlane.xlu0 %1265
      %v1267 = vsel %vm418, %v1262, 0.0
      %1268 = vadd.xlane.f32.xlu0 %v1267
      %v1269 = vpop.xlane.xlu0 %1268
      %v1270 = vsel %vm1068, %v1263, 0.0
      %1271 = vadd.xlane.f32.xlu0 %v1270
      %v1272 = vpop.xlane.xlu0 %1271
      %v1273 = vmul.f32 %v1266, %v1078
      %v1274 = vmul.f32 %v1269, %v1078
      %v1275 = vmul.f32 %v1272, %v1078
      %v1276 = vsub.f32 %v1261, %v1273
      %v1277 = vsub.f32 %v1262, %v1274
      %v1278 = vsub.f32 %v1263, %v1275
      %v1279 = vmul.f32 %v1276, %v1276
      %v1280 = vmul.f32 %v1277, %v1277
      %v1281 = vmul.f32 %v1278, %v1278
      %v1282 = vsel %vm418, %v1279, 0.0
      %1283 = vadd.xlane.f32.xlu0 %v1282
      %v1284 = vpop.xlane.xlu0 %1283
      %v1285 = vsel %vm418, %v1280, 0.0
      %1286 = vadd.xlane.f32.xlu0 %v1285
      %v1287 = vpop.xlane.xlu0 %1286
      %v1288 = vsel %vm1068, %v1281, 0.0
      %1289 = vadd.xlane.f32.xlu0 %v1288
      %v1290 = vpop.xlane.xlu0 %1289
      %v1291 = vmul.f32 %v1284, %v1078
      %v1292 = vmul.f32 %v1287, %v1078
      %v1293 = vmul.f32 %v1290, %v1078
      %v1294 = vadd.f32 %v1291, 1e-05
      %v1295 = vadd.f32 %v1292, 1e-05
      %v1296 = vadd.f32 %v1293, 1e-05
      %v1297 = vrsqrt.pop %v1294
      %v1298 = vmul.f32 %v1297, %v1294
      %v1299 = vmul.f32 %v1298, %v1297
      %v1300 = vmul.f32 0.5, %v1299
      %v1301 = vsub.f32 1.5, %v1300
      %v1302 = vmul.f32 %v1297, %v1301
      %vm1303 = vweird.f32 %v1294
      %vm1304 = vweird.f32 %v1297
      %vm1305 = vmor %vm1303, %vm1304
      %v1306 = vsel %vm1305, %v1297, %v1302
      %v1307 = vrsqrt.pop %v1295
      %v1308 = vmul.f32 %v1307, %v1295
      %v1309 = vmul.f32 %v1308, %v1307
      %v1310 = vmul.f32 0.5, %v1309
      %v1311 = vsub.f32 1.5, %v1310
      %v1312 = vmul.f32 %v1307, %v1311
      %vm1313 = vweird.f32 %v1295
      %vm1314 = vweird.f32 %v1307
      %vm1315 = vmor %vm1313, %vm1314
      %v1316 = vsel %vm1315, %v1307, %v1312
      %v1317 = vrsqrt.pop %v1296
      %v1318 = vmul.f32 %v1317, %v1296
      %v1319 = vmul.f32 %v1318, %v1317
      %v1320 = vmul.f32 0.5, %v1319
      %v1321 = vsub.f32 1.5, %v1320
      %v1322 = vmul.f32 %v1317, %v1321
      %vm1323 = vweird.f32 %v1296
      %vm1324 = vweird.f32 %v1317
      %vm1325 = vmor %vm1323, %vm1324
      %v1326 = vsel %vm1325, %v1317, %v1322
      %v1327 = vmul.f32 %v1276, %v1306
      %v1328 = vmul.f32 %v1277, %v1316
      %v1329 = vmul.f32 %v1278, %v1326
      %v1330 = vperm.slane %v389, 6
      %v1331 = vmul.f32 %v1327, %v1330
      %v1332 = vmul.f32 %v1328, %v1330
      %v1333 = vmul.f32 %v1329, %v1330
      %v1334 = vperm.slane %v389, 7
      %v1335 = vadd.f32 %v1331, %v1334
      %v1336 = vadd.f32 %v1332, %v1334
      %v1337 = vadd.f32 %v1333, %v1334
      %1338 = vst.msk [vmem:[%s337] sm:$0xff] %vm418, %v1335
      %1339 = vst.msk [vmem:[%s337 + $0x8] sm:$0xff] %vm418, %v1336
      %1340 = vst.msk [vmem:[%s337 + $0x10] sm:$0x3] %vm1068, %v1337
      %p1341 = scmp.lt.s32.totalorder %s21, 1
      %s1342 = scalar_select %p1341, %s21, 1
      %s1343 = smul.addr %s1342, 3
      %s1344 = smul.addr %s1343, 8
      %s1345 = scalar_lea.vmem %s6, %s1344
      // Predicated region
      $region49: #{act_forward.8} parent=43 // pred_check
        %p1346 = pneg %p198
      $region50: #{act_forward.8} parent=43 // pred_check_branch
        %1348 = sbr.rel (%p1346) target = $region52
      $region51: #{act_forward.8} parent=43 // pred_region
        _
      $region52: #{act_forward.8} parent=43 // pred_fallthru
        _
    $region44: #{act_forward.8} parent=5 // pred_fallthru
      _
    %p1349 = scmp.le.s32.totalorder 2, %s12
    // Predicated region
    $region53: #{act_forward.8} parent=5 // pred_check
      %p1350 = pneg %p1349
    $region54: #{act_forward.8} parent=5 // pred_check_branch
      %1352 = sbr.rel (%p1350) target = $region56
    $region55: #{act_forward.8} parent=5 // pred_region
      %s1353 = ssub.s32 %s12, 2
      // Predicated region
      $region57: #{act_forward.8} parent=55 // pred_check
        %p1354 = pneg %p204
      $region58: #{act_forward.8} parent=55 // pred_check_branch
        %1356 = sbr.rel (%p1354) target = $region60
      $region59: #{act_forward.8} parent=55 // pred_region
        %p1357 = scmp.lt.s32.totalorder %s23, 1
        %s1358 = scalar_select %p1357, %s23, 1
        %s1359 = smul.addr %s1358, 3
        %s1360 = smul.addr %s1359, 8
        %s1361 = scalar_lea.vmem %s6, %s1360
      $region60: #{act_forward.8} parent=55 // pred_fallthru
        _
    $region56: #{act_forward.8} parent=5 // pred_fallthru
      _
  $region6: #{act_forward.8} parent=0 // loop_footer
    %s16 = sadd.s32 1, %s12
  $region7: #{act_forward.8} parent=0 // loop_footer_branch
    %11 = sbr.rel target = $region3
  $region8: #{act_forward.8} parent=0 // loop_exit
    _

// kernel: act_forward.9
$region0: #{act_forward.9}
  #allocation0 [shape = 'u32[]', space=smem, size = 0x4, offset = 0x4, fixed_abs, tag = 'smem constant byte address 0x4 - core index']
  #allocation1 [shape = 'u32[72,128]{1,0:T(1,128)}', space=vmem, size = 0x9000, scoped, tag = 'internal scratch']
  %s0 = inlined_call_operand.vmem [shape: f32[2,8,32], index: 0, kind: input, shape index: {}]
  %s1 = inlined_call_operand.vmem [shape: f32[2,18,32], index: 1, kind: input, shape index: {}]
  %s2 = inlined_call_operand.vmem [shape: f32[18,32], index: 2, kind: input, shape index: {}]
  %s3 = inlined_call_operand.vmem [shape: f32[8,32], index: 3, kind: input, shape index: {}]
  %s4 = inlined_call_operand.vmem [shape: bf16[1,256,32], index: 4, kind: input, shape index: {}]
  %s5 = inlined_call_operand.vmem [shape: bf16[1,128,32], index: 5, kind: input, shape index: {}]
  %s6 = inlined_call_operand.vmem [shape: f32[1,15,32], index: 6, kind: input, shape index: {}]
  %s7 = inlined_call_operand.vmem [shape: f32[1,1,64], index: 7, kind: input, shape index: {}]
  %s8 = inlined_call_operand.vmem [shape: f32[2,8,32], index: 8, kind: output, shape index: {}]
  %s9 = sld [smem:[#allocation0]]
  $region69: #{act_forward.9} parent=0
    _
  %s11 = ssub.s32 1, %s9
  %s12 = scalar_select 0, %s11, %s9
  loop: start=0, step=1, limit=4
  $region2: #{act_forward.9} parent=0 // loop_pre_header
    _
  $region3: #{act_forward.9} parent=0 // loop_header
    %s14 = sphi 0, %s18
    %p15 = scmp.ge.s32.totalorder %s14, 4
    %s21 = sphi 0, %s33
    %s22 = sphi 0, %s29
    %s23 = sphi 0, %s21
    %s24 = sphi 0, %s22
    %s25 = sphi 0, %s23
    %s26 = sphi 0, %s24
    %s36 = sphi 0, %s38
    %s39 = sphi 0, %s36
    %s40 = sphi 0, %s39
    %s56 = sphi 0, %s40
    %s62 = sphi 0, %s64
    %s65 = sphi 0, %s62
    %s66 = sphi 0, %s65
    %s82 = sphi 0, %s66
    %s86 = sphi 0, %s86
    %s88 = sphi 0, %s86
    %s89 = sphi 0, %s88
    %s103 = sphi 0, %s89
    %s107 = sphi 0, %s107
    %s109 = sphi 0, %s107
    %s110 = sphi 0, %s109
    %s124 = sphi 0, %s110
    %s130 = sphi 0, %s132
    %s133 = sphi 0, %s130
    %s134 = sphi 0, %s133
    %s150 = sphi 0, %s134
    %s156 = sphi 0, %s158
    %s159 = sphi 0, %s156
    %s160 = sphi 0, %s159
    %s176 = sphi 0, %s160
    %s182 = sphi 0, %s184
    %s185 = sphi 0, %s182
    %s186 = sphi 0, %s185
    %s202 = sphi 0, %s186
    %s208 = sphi 0, %s210
    %s211 = sphi 0, %s208
    %s212 = sphi 0, %s211
    %s228 = sphi 0, %s212
    %s234 = sphi 0, %s236
    %s237 = sphi 0, %s234
    %s238 = sphi 0, %s237
    %s254 = sphi 0, %s238
  $region4: #{act_forward.9} parent=0 // loop_header_branch
    %17 = sbr.rel (%p15) target = $region8
  $region5: #{act_forward.9} parent=0 // loop_body
    %s19 = ssub.s32 %s14, 1
    %s20 = ssub.s32 %s14, 2
    %s27 = sadd.s32 1, %s22
    %p28 = scmp.ge.s32.totalorder %s27, 1
    %s29 = scalar_select %p28, 0, %s27
    %s30 = sadd.s32 1, %s21
    %s31 = scalar_select %p28, %s30, %s21
    %p32 = scmp.ge.s32.totalorder %s31, 2
    %s33 = scalar_select %p32, 0, %s31
    %s34 = ssub.s32 %s21, %s33
    %p35 = scmp.eq.s32.totalorder %s34, 0
    %s37 = sadd.s32 %s36, 1
    %s38 = scalar_select %p35, %s36, %s37
    %p41 = pneg %p35
    %p42 = scmp.eq.s32.totalorder %s14, 1
    %p43 = por %p41, %p42
    %p44 = scmp.ne.s32.totalorder %s36, %s39
    %p45 = scmp.eq.s32.totalorder %s14, 0
    %p46 = por %p44, %p45
    %p47 = scmp.ne.s32.totalorder %s36, %s39
    %p48 = scmp.eq.s32.totalorder %s19, 1
    %p49 = por %p47, %p48
    %p50 = scmp.ne.s32.totalorder %s39, %s40
    %p51 = scmp.eq.s32.totalorder %s19, 0
    %p52 = por %p50, %p51
    %p53 = scmp.ne.s32.totalorder %s39, %s40
    %p54 = scmp.eq.s32.totalorder %s20, 1
    %p55 = por %p53, %p54
    %p57 = scmp.ne.s32.totalorder %s40, %s56
    %p58 = scmp.eq.s32.totalorder %s20, 0
    %p59 = por %p57, %p58
    %s60 = ssub.s32 %s21, %s33
    %p61 = scmp.eq.s32.totalorder %s60, 0
    %s63 = sadd.s32 %s62, 1
    %s64 = scalar_select %p61, %s62, %s63
    %p67 = pneg %p61
    %p68 = scmp.eq.s32.totalorder %s14, 1
    %p69 = por %p67, %p68
    %p70 = scmp.ne.s32.totalorder %s62, %s65
    %p71 = scmp.eq.s32.totalorder %s14, 0
    %p72 = por %p70, %p71
    %p73 = scmp.ne.s32.totalorder %s62, %s65
    %p74 = scmp.eq.s32.totalorder %s19, 1
    %p75 = por %p73, %p74
    %p76 = scmp.ne.s32.totalorder %s65, %s66
    %p77 = scmp.eq.s32.totalorder %s19, 0
    %p78 = por %p76, %p77
    %p79 = scmp.ne.s32.totalorder %s65, %s66
    %p80 = scmp.eq.s32.totalorder %s20, 1
    %p81 = por %p79, %p80
    %p83 = scmp.ne.s32.totalorder %s66, %s82
    %p84 = scmp.eq.s32.totalorder %s20, 0
    %p85 = por %p83, %p84
    %s87 = sadd.s32 %s86, 1
    %p90 = scmp.eq.s32.totalorder %s14, 1
    %p91 = scmp.ne.s32.totalorder %s86, %s88
    %p92 = scmp.eq.s32.totalorder %s14, 0
    %p93 = por %p91, %p92
    %p94 = scmp.ne.s32.totalorder %s86, %s88
    %p95 = scmp.eq.s32.totalorder %s19, 1
    %p96 = por %p94, %p95
    %p97 = scmp.ne.s32.totalorder %s88, %s89
    %p98 = scmp.eq.s32.totalorder %s19, 0
    %p99 = por %p97, %p98
    %p100 = scmp.ne.s32.totalorder %s88, %s89
    %p101 = scmp.eq.s32.totalorder %s20, 1
    %p102 = por %p100, %p101
    %p104 = scmp.ne.s32.totalorder %s89, %s103
    %p105 = scmp.eq.s32.totalorder %s20, 0
    %p106 = por %p104, %p105
    %s108 = sadd.s32 %s107, 1
    %p111 = scmp.eq.s32.totalorder %s14, 1
    %p112 = scmp.ne.s32.totalorder %s107, %s109
    %p113 = scmp.eq.s32.totalorder %s14, 0
    %p114 = por %p112, %p113
    %p115 = scmp.ne.s32.totalorder %s107, %s109
    %p116 = scmp.eq.s32.totalorder %s19, 1
    %p117 = por %p115, %p116
    %p118 = scmp.ne.s32.totalorder %s109, %s110
    %p119 = scmp.eq.s32.totalorder %s19, 0
    %p120 = por %p118, %p119
    %p121 = scmp.ne.s32.totalorder %s109, %s110
    %p122 = scmp.eq.s32.totalorder %s20, 1
    %p123 = por %p121, %p122
    %p125 = scmp.ne.s32.totalorder %s110, %s124
    %p126 = scmp.eq.s32.totalorder %s20, 0
    %p127 = por %p125, %p126
    %s128 = ssub.s32 %s22, %s29
    %p129 = scmp.eq.s32.totalorder %s128, 0
    %s131 = sadd.s32 %s130, 1
    %s132 = scalar_select %p129, %s130, %s131
    %p135 = pneg %p129
    %p136 = scmp.eq.s32.totalorder %s14, 1
    %p137 = por %p135, %p136
    %p138 = scmp.ne.s32.totalorder %s130, %s133
    %p139 = scmp.eq.s32.totalorder %s14, 0
    %p140 = por %p138, %p139
    %p141 = scmp.ne.s32.totalorder %s130, %s133
    %p142 = scmp.eq.s32.totalorder %s19, 1
    %p143 = por %p141, %p142
    %p144 = scmp.ne.s32.totalorder %s133, %s134
    %p145 = scmp.eq.s32.totalorder %s19, 0
    %p146 = por %p144, %p145
    %p147 = scmp.ne.s32.totalorder %s133, %s134
    %p148 = scmp.eq.s32.totalorder %s20, 1
    %p149 = por %p147, %p148
    %p151 = scmp.ne.s32.totalorder %s134, %s150
    %p152 = scmp.eq.s32.totalorder %s20, 0
    %p153 = por %p151, %p152
    %s154 = ssub.s32 %s22, %s29
    %p155 = scmp.eq.s32.totalorder %s154, 0
    %s157 = sadd.s32 %s156, 1
    %s158 = scalar_select %p155, %s156, %s157
    %p161 = pneg %p155
    %p162 = scmp.eq.s32.totalorder %s14, 1
    %p163 = por %p161, %p162
    %p164 = scmp.ne.s32.totalorder %s156, %s159
    %p165 = scmp.eq.s32.totalorder %s14, 0
    %p166 = por %p164, %p165
    %p167 = scmp.ne.s32.totalorder %s156, %s159
    %p168 = scmp.eq.s32.totalorder %s19, 1
    %p169 = por %p167, %p168
    %p170 = scmp.ne.s32.totalorder %s159, %s160
    %p171 = scmp.eq.s32.totalorder %s19, 0
    %p172 = por %p170, %p171
    %p173 = scmp.ne.s32.totalorder %s159, %s160
    %p174 = scmp.eq.s32.totalorder %s20, 1
    %p175 = por %p173, %p174
    %p177 = scmp.ne.s32.totalorder %s160, %s176
    %p178 = scmp.eq.s32.totalorder %s20, 0
    %p179 = por %p177, %p178
    %s180 = ssub.s32 %s22, %s29
    %p181 = scmp.eq.s32.totalorder %s180, 0
    %s183 = sadd.s32 %s182, 1
    %s184 = scalar_select %p181, %s182, %s183
    %p187 = pneg %p181
    %p188 = scmp.eq.s32.totalorder %s14, 1
    %p189 = por %p187, %p188
    %p190 = scmp.ne.s32.totalorder %s182, %s185
    %p191 = scmp.eq.s32.totalorder %s14, 0
    %p192 = por %p190, %p191
    %p193 = scmp.ne.s32.totalorder %s182, %s185
    %p194 = scmp.eq.s32.totalorder %s19, 1
    %p195 = por %p193, %p194
    %p196 = scmp.ne.s32.totalorder %s185, %s186
    %p197 = scmp.eq.s32.totalorder %s19, 0
    %p198 = por %p196, %p197
    %p199 = scmp.ne.s32.totalorder %s185, %s186
    %p200 = scmp.eq.s32.totalorder %s20, 1
    %p201 = por %p199, %p200
    %p203 = scmp.ne.s32.totalorder %s186, %s202
    %p204 = scmp.eq.s32.totalorder %s20, 0
    %p205 = por %p203, %p204
    %s206 = ssub.s32 %s22, %s29
    %p207 = scmp.eq.s32.totalorder %s206, 0
    %s209 = sadd.s32 %s208, 1
    %s210 = scalar_select %p207, %s208, %s209
    %p213 = pneg %p207
    %p214 = scmp.eq.s32.totalorder %s14, 1
    %p215 = por %p213, %p214
    %p216 = scmp.ne.s32.totalorder %s208, %s211
    %p217 = scmp.eq.s32.totalorder %s14, 0
    %p218 = por %p216, %p217
    %p219 = scmp.ne.s32.totalorder %s208, %s211
    %p220 = scmp.eq.s32.totalorder %s19, 1
    %p221 = por %p219, %p220
    %p222 = scmp.ne.s32.totalorder %s211, %s212
    %p223 = scmp.eq.s32.totalorder %s19, 0
    %p224 = por %p222, %p223
    %p225 = scmp.ne.s32.totalorder %s211, %s212
    %p226 = scmp.eq.s32.totalorder %s20, 1
    %p227 = por %p225, %p226
    %p229 = scmp.ne.s32.totalorder %s212, %s228
    %p230 = scmp.eq.s32.totalorder %s20, 0
    %p231 = por %p229, %p230
    %s232 = ssub.s32 %s21, %s33
    %p233 = scmp.eq.s32.totalorder %s232, 0
    %s235 = sadd.s32 %s234, 1
    %s236 = scalar_select %p233, %s234, %s235
    %p239 = pneg %p233
    %p240 = scmp.eq.s32.totalorder %s14, 1
    %p241 = por %p239, %p240
    %p242 = scmp.ne.s32.totalorder %s234, %s237
    %p243 = scmp.eq.s32.totalorder %s14, 0
    %p244 = por %p242, %p243
    %p245 = scmp.ne.s32.totalorder %s234, %s237
    %p246 = scmp.eq.s32.totalorder %s19, 1
    %p247 = por %p245, %p246
    %p248 = scmp.ne.s32.totalorder %s237, %s238
    %p249 = scmp.eq.s32.totalorder %s19, 0
    %p250 = por %p248, %p249
    %p251 = scmp.ne.s32.totalorder %s237, %s238
    %p252 = scmp.eq.s32.totalorder %s20, 1
    %p253 = por %p251, %p252
    %p255 = scmp.ne.s32.totalorder %s238, %s254
    %p256 = scmp.eq.s32.totalorder %s20, 0
    %p257 = por %p255, %p256
    %p258 = scmp.le.s32.totalorder 1, %s14
    %p259 = scmp.lt.s32.totalorder %s14, 3
    %p260 = pnand %p258, %p259
    %p261 = pneg %p260
    // Predicated region
    $region9: #{act_forward.9} parent=5 // pred_check
      _
    $region10: #{act_forward.9} parent=5 // pred_check_branch
      %263 = sbr.rel (%p260) target = $region12
    $region11: #{act_forward.9} parent=5 // pred_region
      %s264 = ssub.s32 %s14, 1
      // Predicated region
      $region13: #{act_forward.9} parent=11 // pred_check
        %p265 = pneg %p99
      $region14: #{act_forward.9} parent=11 // pred_check_branch
        %267 = sbr.rel (%p265) target = $region16
      $region15: #{act_forward.9} parent=11 // pred_region
        _
      $region16: #{act_forward.9} parent=11 // pred_fallthru
        _
      // Predicated region
      $region17: #{act_forward.9} parent=11 // pred_check
        %p268 = pneg %p120
      $region18: #{act_forward.9} parent=11 // pred_check_branch
        %270 = sbr.rel (%p268) target = $region20
      $region19: #{act_forward.9} parent=11 // pred_region
        _
      $region20: #{act_forward.9} parent=11 // pred_fallthru
        _
      // Predicated region
      $region21: #{act_forward.9} parent=11 // pred_check
        %p271 = pneg %p146
      $region22: #{act_forward.9} parent=11 // pred_check_branch
        %273 = sbr.rel (%p271) target = $region24
      $region23: #{act_forward.9} parent=11 // pred_region
        %p274 = scmp.lt.s32.totalorder %s24, 0
        %s275 = scalar_select %p274, %s24, 0
        %s276 = smul.addr %s275, 32
        %s277 = smul.addr %s276, 4
        %s278 = scalar_lea.vmem %s4, %s277
      $region24: #{act_forward.9} parent=11 // pred_fallthru
        _
      // Predicated region
      $region25: #{act_forward.9} parent=11 // pred_check
        %p279 = pneg %p172
      $region26: #{act_forward.9} parent=11 // pred_check_branch
        %281 = sbr.rel (%p279) target = $region28
      $region27: #{act_forward.9} parent=11 // pred_region
        %p282 = scmp.lt.s32.totalorder %s24, 0
        %s283 = scalar_select %p282, %s24, 0
        %s284 = smul.addr %s283, 16
        %s285 = smul.addr %s284, 4
        %s286 = scalar_lea.vmem %s5, %s285
      $region28: #{act_forward.9} parent=11 // pred_fallthru
        _
      // Predicated region
      $region29: #{act_forward.9} parent=11 // pred_check
        %p287 = pneg %p198
      $region30: #{act_forward.9} parent=11 // pred_check_branch
        %289 = sbr.rel (%p287) target = $region32
      $region31: #{act_forward.9} parent=11 // pred_region
        %p290 = scmp.lt.s32.totalorder %s24, 0
        %s291 = scalar_select %p290, %s24, 0
        %s292 = smul.addr %s291, 2
        %s293 = smul.addr %s292, 8
        %s294 = scalar_lea.vmem %s6, %s293
      $region32: #{act_forward.9} parent=11 // pred_fallthru
        _
      // Predicated region
      $region33: #{act_forward.9} parent=11 // pred_check
        %p295 = pneg %p224
      $region34: #{act_forward.9} parent=11 // pred_check_branch
        %297 = sbr.rel (%p295) target = $region36
      $region35: #{act_forward.9} parent=11 // pred_region
        %p298 = scmp.lt.s32.totalorder %s24, 0
        %s299 = scalar_select %p298, %s24, 0
        %s300 = scalar_lea.vmem %s7, %s299
      $region36: #{act_forward.9} parent=11 // pred_fallthru
        _
    $region12: #{act_forward.9} parent=5 // pred_fallthru
      _
    %p301 = scmp.lt.s32.totalorder %s14, 2
    // Predicated region
    $region37: #{act_forward.9} parent=5 // pred_check
      %p302 = pneg %p301
    $region38: #{act_forward.9} parent=5 // pred_check_branch
      %304 = sbr.rel (%p302) target = $region40
    $region39: #{act_forward.9} parent=5 // pred_region
      // Predicated region
      $region41: #{act_forward.9} parent=39 // pred_check
        %p305 = pneg %p46
      $region42: #{act_forward.9} parent=39 // pred_check_branch
        %307 = sbr.rel (%p305) target = $region44
      $region43: #{act_forward.9} parent=39 // pred_region
        %p308 = scmp.lt.s32.totalorder %s21, 1
        %s309 = scalar_select %p308, %s21, 1
        %s310 = smul.addr %s309, 8
        %s311 = scalar_lea.vmem %s0, %s310
      $region44: #{act_forward.9} parent=39 // pred_fallthru
        _
      // Predicated region
      $region45: #{act_forward.9} parent=39 // pred_check
        %p312 = pneg %p72
      $region46: #{act_forward.9} parent=39 // pred_check_branch
        %314 = sbr.rel (%p312) target = $region48
      $region47: #{act_forward.9} parent=39 // pred_region
        %p315 = scmp.lt.s32.totalorder %s21, 1
        %s316 = scalar_select %p315, %s21, 1
        %s317 = smul.addr %s316, 3
        %s318 = smul.addr %s317, 8
        %s319 = scalar_lea.vmem %s1, %s318
      $region48: #{act_forward.9} parent=39 // pred_fallthru
        _
    $region40: #{act_forward.9} parent=5 // pred_fallthru
      _
    %p320 = scmp.le.s32.totalorder 1, %s14
    %p321 = scmp.lt.s32.totalorder %s14, 3
    %p322 = pnand %p320, %p321
    %p323 = pneg %p322
    // Predicated region
    $region49: #{act_forward.9} parent=5 // pred_check
      _
    $region50: #{act_forward.9} parent=5 // pred_check_branch
      %325 = sbr.rel (%p322) target = $region52
    $region51: #{act_forward.9} parent=5 // pred_region
      %s326 = ssub.s32 %s14, 1
      %p327 = scmp.lt.s32.totalorder %s23, 1
      %s328 = scalar_select %p327, %s23, 1
      %s329 = smul.addr %s328, 8
      %s330 = scalar_lea.vmem %s0, %s329
      %p331 = pneg %p52
      %p332 = pneg %p49
      %p333 = scmp.lt.s32.totalorder %s23, 1
      %s334 = scalar_select %p333, %s23, 1
      %s335 = smul.addr %s334, 3
      %s336 = smul.addr %s335, 8
      %s337 = scalar_lea.vmem %s1, %s336
      %p338 = pneg %p78
      %p339 = pneg %p75
      %p340 = pneg %p99
      %p341 = pneg %p96
      %p342 = pneg %p120
      %p343 = pneg %p117
      %p344 = scmp.lt.s32.totalorder %s24, 0
      %s345 = scalar_select %p344, %s24, 0
      %s346 = smul.addr %s345, 32
      %s347 = smul.addr %s346, 4
      %s348 = scalar_lea.vmem %s4, %s347
      %p349 = pneg %p146
      %p350 = pneg %p143
      %p351 = scmp.lt.s32.totalorder %s24, 0
      %s352 = scalar_select %p351, %s24, 0
      %s353 = smul.addr %s352, 16
      %s354 = smul.addr %s353, 4
      %s355 = scalar_lea.vmem %s5, %s354
      %p356 = pneg %p172
      %p357 = pneg %p169
      %p358 = scmp.lt.s32.totalorder %s24, 0
      %s359 = scalar_select %p358, %s24, 0
      %s360 = smul.addr %s359, 2
      %s361 = smul.addr %s360, 8
      %s362 = scalar_lea.vmem %s6, %s361
      %p363 = pneg %p198
      %p364 = pneg %p195
      %p365 = scmp.lt.s32.totalorder %s24, 0
      %s366 = scalar_select %p365, %s24, 0
      %s367 = scalar_lea.vmem %s7, %s366
      %p368 = pneg %p224
      %p369 = pneg %p221
      %p370 = pneg %p250
      %p371 = pneg %p247
      %p372 = scmp.lt.s32.totalorder %s23, 1
      %s373 = scalar_select %p372, %s23, 1
      %s374 = smul.addr %s373, 8
      %s375 = scalar_lea.vmem %s8, %s374
      %p376 = scmp.lt.s32.totalorder %s23, 1
      %s377 = scalar_select %p376, %s23, 1
      %s378 = smul.addr %s377, 8
      %s379 = scalar_lea.vmem %s0, %s378
      %p380 = scmp.lt.s32.totalorder %s23, 1
      %s381 = scalar_select %p380, %s23, 1
      %s382 = smul.addr %s381, 3
      %s383 = smul.addr %s382, 8
      %s384 = scalar_lea.vmem %s1, %s383
      %p385 = scmp.lt.s32.totalorder %s24, 0
      %s386 = scalar_select %p385, %s24, 0
      %s387 = smul.addr %s386, 32
      %s388 = smul.addr %s387, 4
      %s389 = scalar_lea.vmem %s4, %s388
      %p390 = scmp.lt.s32.totalorder %s24, 0
      %s391 = scalar_select %p390, %s24, 0
      %s392 = smul.addr %s391, 16
      %s393 = smul.addr %s392, 4
      %s394 = scalar_lea.vmem %s5, %s393
      %p395 = scmp.lt.s32.totalorder %s24, 0
      %s396 = scalar_select %p395, %s24, 0
      %s397 = smul.addr %s396, 2
      %s398 = smul.addr %s397, 8
      %s399 = scalar_lea.vmem %s6, %s398
      %p400 = scmp.lt.s32.totalorder %s24, 0
      %s401 = scalar_select %p400, %s24, 0
      %s402 = scalar_lea.vmem %s7, %s401
      %p403 = scmp.lt.s32.totalorder %s23, 1
      %s404 = scalar_select %p403, %s23, 1
      %s405 = smul.addr %s404, 8
      %s406 = scalar_lea.vmem %s8, %s405
      %p408 = scmp.eq.s32.totalorder %s24, 0
      // Predicated region
      $region53: #{act_forward.9} parent=51 // pred_check
        %p409 = pneg %p408
      $region54: #{act_forward.9} parent=51 // pred_check_branch
        %411 = sbr.rel (%p409) target = $region56
      $region55: #{act_forward.9} parent=51 // pred_region
        %v412 = vld [vmem:[%s379] sm:$0xff]
        %vm413 = vcmask 261120
        %414 = vst.msk [vmem:[%s406] sm:$0xff] %vm413, %v412
      $region56: #{act_forward.9} parent=51 // pred_fallthru
        _
      %v415 = vld [vmem:[%s406] sm:$0xff]
      %v416 = vld [vmem:[%s384] sm:$0xff]
      %v417 = vld [vmem:[%s384 + $0x8] sm:$0xff]
      %v418 = vld [vmem:[%s384 + $0x10] sm:$0x3]
      %v419 = vld [vmem:[%s2] sm:$0xff]
      %v420 = vld [vmem:[%s2 + $0x8] sm:$0xff]
      %v421 = vld [vmem:[%s2 + $0x10] sm:$0x3]
      %v422 = vld [vmem:[%s3] sm:$0xff]
      %v423 = vld [vmem:[%s389] sm:$0xf]
      %v424 = vld [vmem:[%s389 + $0x4] sm:$0xf]
      %v425 = vld [vmem:[%s389 + $0x8] sm:$0xf]
      %v426 = vld [vmem:[%s389 + $0xc] sm:$0xf]
      %v427 = vld [vmem:[%s389 + $0x10] sm:$0xf]
      %v428 = vld [vmem:[%s389 + $0x14] sm:$0xf]
      %v429 = vld [vmem:[%s389 + $0x18] sm:$0xf]
      %v430 = vld [vmem:[%s389 + $0x1c] sm:$0xf]
      %v431 = vld [vmem:[%s389 + $0x20] sm:$0xf]
      %v432 = vld [vmem:[%s389 + $0x24] sm:$0xf]
      %v433 = vld [vmem:[%s389 + $0x28] sm:$0xf]
      %v434 = vld [vmem:[%s389 + $0x2c] sm:$0xf]
      %v435 = vld [vmem:[%s389 + $0x30] sm:$0xf]
      %v436 = vld [vmem:[%s389 + $0x34] sm:$0xf]
      %v437 = vld [vmem:[%s389 + $0x38] sm:$0xf]
      %v438 = vld [vmem:[%s389 + $0x3c] sm:$0xf]
      %v439 = vld [vmem:[%s389 + $0x40] sm:$0xf]
      %v440 = vld [vmem:[%s389 + $0x44] sm:$0xf]
      %v441 = vld [vmem:[%s389 + $0x48] sm:$0xf]
      %v442 = vld [vmem:[%s389 + $0x4c] sm:$0xf]
      %v443 = vld [vmem:[%s389 + $0x50] sm:$0xf]
      %v444 = vld [vmem:[%s389 + $0x54] sm:$0xf]
      %v445 = vld [vmem:[%s389 + $0x58] sm:$0xf]
      %v446 = vld [vmem:[%s389 + $0x5c] sm:$0xf]
      %v447 = vld [vmem:[%s389 + $0x60] sm:$0xf]
      %v448 = vld [vmem:[%s389 + $0x64] sm:$0xf]
      %v449 = vld [vmem:[%s389 + $0x68] sm:$0xf]
      %v450 = vld [vmem:[%s389 + $0x6c] sm:$0xf]
      %v451 = vld [vmem:[%s389 + $0x70] sm:$0xf]
      %v452 = vld [vmem:[%s389 + $0x74] sm:$0xf]
      %v453 = vld [vmem:[%s389 + $0x78] sm:$0xf]
      %v454 = vld [vmem:[%s389 + $0x7c] sm:$0xf]
      %v455 = vld [vmem:[%s394] sm:$0xf]
      %v456 = vld [vmem:[%s394 + $0x4] sm:$0xf]
      %v457 = vld [vmem:[%s394 + $0x8] sm:$0xf]
      %v458 = vld [vmem:[%s394 + $0xc] sm:$0xf]
      %v459 = vld [vmem:[%s394 + $0x10] sm:$0xf]
      %v460 = vld [vmem:[%s394 + $0x14] sm:$0xf]
      %v461 = vld [vmem:[%s394 + $0x18] sm:$0xf]
      %v462 = vld [vmem:[%s394 + $0x1c] sm:$0xf]
      %v463 = vld [vmem:[%s394 + $0x20] sm:$0xf]
      %v464 = vld [vmem:[%s394 + $0x24] sm:$0xf]
      %v465 = vld [vmem:[%s394 + $0x28] sm:$0xf]
      %v466 = vld [vmem:[%s394 + $0x2c] sm:$0xf]
      %v467 = vld [vmem:[%s394 + $0x30] sm:$0xf]
      %v468 = vld [vmem:[%s394 + $0x34] sm:$0xf]
      %v469 = vld [vmem:[%s394 + $0x38] sm:$0xf]
      %v470 = vld [vmem:[%s394 + $0x3c] sm:$0xf]
      %v471 = vld [vmem:[%s399] sm:$0xff]
      %v472 = vld [vmem:[%s399 + $0x8] sm:$0x7f]
      %v473 = vadd.f32 %v415, %v422
      %v474 = vpack.c.bf16 %v473, %v473
      %v475 = vpack.c.bf16 %v415, %v415
      %v484 = vunpack.c.l.b16 %v423
      %v485 = vunpack.c.l.b16 %v424
      %v486 = vunpack.c.l.b16 %v425
      %v487 = vunpack.c.l.b16 %v426
      %v488 = vunpack.c.l.b16 %v427
      %v489 = vunpack.c.l.b16 %v428
      %v490 = vunpack.c.l.b16 %v429
      %v491 = vunpack.c.l.b16 %v430
      %v492 = vpack.c.b16 %v485, %v484
      %v493 = vpack.c.b16 %v487, %v486
      %v494 = vpack.c.b16 %v489, %v488
      %v495 = vpack.c.b16 %v491, %v490
      %vm496 = vcmask 261120
      %v498 = vsel %vm496, %v474, 0
      %v501 = vsel %vm496, %v492, 0
      %v504 = vsel %vm496, %v493, 0
      %v507 = vsel %vm496, %v494, 0
      %v510 = vsel %vm496, %v495, 0
      %512 = vmatpush.bf16.xpose.msra.mxu0 0
      %513 = vmatpush.bf16.xpose.msra.mxu0 0
      %514 = vmatpush.bf16.xpose.msra.mxu0 0
      %515 = vmatpush.bf16.xpose.msra.mxu0 0
      %516 = vmatpush.bf16.xpose.msra.mxu0 %v510
      %517 = vmatpush.bf16.xpose.msra.mxu0 %v507
      %518 = vmatpush.bf16.xpose.msra.mxu0 %v504
      %519 = vmatpush.bf16.xpose.msra.mxu0 %v501
      %520 = vmatmul.bf16.gmra.mxu0 %v498
      %v521 = vpop.f32.mrf.mxu0
      %v522 = vadd.f32 0.0, %v521
      %v523 = vpop.f32.mrf.mxu0
      %524 = vdwg.mxu0
      %v525 = vperm.slane %v471, 0
      %v526 = vadd.f32 %v522, %v525
      %v527 = vperm.slane %v471, 1
      %529 = vrot.lane.b32.xlu0 %v527, 32
      %v530 = vpop.permute.xlu0 %529
      %v532 = vadd.f32 %v522, %v530
      %v533 = vperm.slane %v471, 2
      %v538 = vunpack.c.l.b16 %v431
      %v539 = vunpack.c.l.b16 %v432
      %v540 = vunpack.c.l.b16 %v433
      %v541 = vunpack.c.l.b16 %v434
      %v542 = vpack.c.b16 %v539, %v538
      %v543 = vpack.c.b16 %v541, %v540
      %v545 = vsel %vm496, %v475, 0
      %v548 = vsel %vm496, %v542, 0
      %v551 = vsel %vm496, %v543, 0
      %553 = vmatpush.bf16.xpose.msra.mxu0 0
      %554 = vmatpush.bf16.xpose.msra.mxu0 0
      %555 = vmatpush.bf16.xpose.msra.mxu0 0
      %556 = vmatpush.bf16.xpose.msra.mxu0 0
      %557 = vmatpush.bf16.xpose.msra.mxu0 0
      %558 = vmatpush.bf16.xpose.msra.mxu0 0
      %559 = vmatpush.bf16.xpose.msra.mxu0 %v551
      %560 = vmatpush.bf16.xpose.msra.mxu0 %v548
      %561 = vmatmul.bf16.gmra.mxu0 %v545
      %v562 = vpop.f32.mrf.mxu0
      %v563 = vadd.f32 %v533, %v562
      %v564 = vpop.f32.mrf.mxu0
      %565 = vdwg.mxu0
      %v566 = vpack.c.bf16 %v526, %v526
      %v567 = vpack.c.bf16 %v532, %v532
      %v568 = vpack.c.bf16 %v563, %v563
      %v570 = vunpack.c.l.b16 %v567
      %v571 = vpack.c.b16 %v570, %v570
      %572 = vrot.lane.b32.xlu0 %v571, 96
      %v573 = vpop.permute.xlu0 %572
      %vm574 = vcmask 64512
      %v576 = vsel %vm574, %v566, 0
      %v579 = vsel %vm574, %v573, 0
      %581 = vmatpush.bf16.xpose.msra.mxu0 0
      %582 = vmatpush.bf16.xpose.msra.mxu0 0
      %583 = vmatpush.bf16.xpose.msra.mxu0 0
      %584 = vmatpush.bf16.xpose.msra.mxu0 0
      %585 = vmatpush.bf16.xpose.msra.mxu0 0
      %586 = vmatpush.bf16.xpose.msra.mxu0 0
      %587 = vmatpush.bf16.xpose.msra.mxu0 0
      %588 = vmatpush.bf16.xpose.msra.mxu0 %v579
      %589 = vmatmul.bf16.gmra.mxu0 %v576
      %v590 = vpop.f32.mrf.mxu0
      %v591 = vadd.f32 0.0, %v590
      %v592 = vpop.f32.mrf.mxu0
      %593 = vdwg.mxu0
      %v594 = vmul.f32 %v591, 0.35355338
      %v595 = vsel %vm574, %v594, -inf
      %596 = vmax.xlane.f32.xlu0 %v595
      %v597 = vpop.xlane.xlu0 %596
      %v598 = vsub.f32 %v594, %v597
      %v599 = vmul.f32 %v598, 1.442695
      %v600 = vpow.pop %v599
      %v601 = vsel %vm574, %v600, 0.0
      %602 = vadd.xlane.f32.xlu0 %v601
      %v603 = vpop.xlane.xlu0 %602
      %v604 = vrcp.pop %v603
      %v605 = vmul.f32 %v600, %v604
      %v606 = vpack.c.bf16 %v605, %v605
      %v608 = vsel %vm574, %v606, 0
      %vm610 = vcmask 1043456
      %v612 = vsel %vm610, %v568, 0
      %614 = vmatpush.bf16.msra.mxu0 0
      %615 = vmatpush.bf16.msra.mxu0 0
      %616 = vmatpush.bf16.msra.mxu0 0
      %617 = vmatpush.bf16.msra.mxu0 0
      %618 = vmatpush.bf16.msra.mxu0 0
      %619 = vmatpush.bf16.msra.mxu0 0
      %620 = vmatpush.bf16.msra.mxu0 0
      %621 = vmatpush.bf16.msra.mxu0 %v612
      %622 = vmatmul.bf16.gmra.mxu0 %v608
      %v623 = vpop.f32.mrf.mxu0
      %v624 = vadd.f32 0.0, %v623
      %v625 = vpop.f32.mrf.mxu0
      %626 = vdwg.mxu0
      %v628 = vunpack.c.l.b16 %v566
      %v629 = vpack.c.b16 %v628, %v628
      %630 = vrot.lane.b32.xlu0 %v629, 120
      %v631 = vpop.permute.xlu0 %630
      %632 = vrot.lane.b32.xlu0 %v571, 88
      %v633 = vpop.permute.xlu0 %632
      %v635 = vsel %vm574, %v631, 0
      %v638 = vsel %vm574, %v633, 0
      %640 = vmatpush.bf16.xpose.msra.mxu0 0
      %641 = vmatpush.bf16.xpose.msra.mxu0 0
      %642 = vmatpush.bf16.xpose.msra.mxu0 0
      %643 = vmatpush.bf16.xpose.msra.mxu0 0
      %644 = vmatpush.bf16.xpose.msra.mxu0 0
      %645 = vmatpush.bf16.xpose.msra.mxu0 0
      %646 = vmatpush.bf16.xpose.msra.mxu0 0
      %647 = vmatpush.bf16.xpose.msra.mxu0 %v638
      %648 = vmatmul.bf16.gmra.mxu0 %v635
      %v649 = vpop.f32.mrf.mxu0
      %v650 = vadd.f32 0.0, %v649
      %v651 = vpop.f32.mrf.mxu0
      %652 = vdwg.mxu0
      %v653 = vmul.f32 %v650, 0.35355338
      %v654 = vsel %vm574, %v653, -inf
      %655 = vmax.xlane.f32.xlu0 %v654
      %v656 = vpop.xlane.xlu0 %655
      %v657 = vsub.f32 %v653, %v656
      %v658 = vmul.f32 %v657, 1.442695
      %v659 = vpow.pop %v658
      %v660 = vsel %vm574, %v659, 0.0
      %661 = vadd.xlane.f32.xlu0 %v660
      %v662 = vpop.xlane.xlu0 %661
      %v663 = vrcp.pop %v662
      %v664 = vmul.f32 %v659, %v663
      %v665 = vpack.c.bf16 %v664, %v664
      %v667 = vunpack.c.l.b16 %v568
      %v668 = vpack.c.b16 %v667, %v667
      %669 = vrot.lane.b32.xlu0 %v668, 120
      %v670 = vpop.permute.xlu0 %669
      %v672 = vsel %vm574, %v665, 0
      %v675 = vsel %vm610, %v670, 0
      %677 = vmatpush.bf16.msra.mxu0 0
      %678 = vmatpush.bf16.msra.mxu0 0
      %679 = vmatpush.bf16.msra.mxu0 0
      %680 = vmatpush.bf16.msra.mxu0 0
      %681 = vmatpush.bf16.msra.mxu0 0
      %682 = vmatpush.bf16.msra.mxu0 0
      %683 = vmatpush.bf16.msra.mxu0 0
      %684 = vmatpush.bf16.msra.mxu0 %v675
      %685 = vmatmul.bf16.gmra.mxu0 %v672
      %v686 = vpop.f32.mrf.mxu0
      %v687 = vadd.f32 0.0, %v686
      %v688 = vpop.f32.mrf.mxu0
      %689 = vdwg.mxu0
      %690 = vrot.lane.b32.xlu0 %v629, 112
      %v691 = vpop.permute.xlu0 %690
      %692 = vrot.lane.b32.xlu0 %v571, 80
      %v693 = vpop.permute.xlu0 %692
      %v695 = vsel %vm574, %v691, 0
      %v698 = vsel %vm574, %v693, 0
      %700 = vmatpush.bf16.xpose.msra.mxu0 0
      %701 = vmatpush.bf16.xpose.msra.mxu0 0
      %702 = vmatpush.bf16.xpose.msra.mxu0 0
      %703 = vmatpush.bf16.xpose.msra.mxu0 0
      %704 = vmatpush.bf16.xpose.msra.mxu0 0
      %705 = vmatpush.bf16.xpose.msra.mxu0 0
      %706 = vmatpush.bf16.xpose.msra.mxu0 0
      %707 = vmatpush.bf16.xpose.msra.mxu0 %v698
      %708 = vmatmul.bf16.gmra.mxu0 %v695
      %v709 = vpop.f32.mrf.mxu0
      %v710 = vadd.f32 0.0, %v709
      %v711 = vpop.f32.mrf.mxu0
      %712 = vdwg.mxu0
      %v713 = vmul.f32 %v710, 0.35355338
      %v714 = vsel %vm574, %v713, -inf
      %715 = vmax.xlane.f32.xlu0 %v714
      %v716 = vpop.xlane.xlu0 %715
      %v717 = vsub.f32 %v713, %v716
      %v718 = vmul.f32 %v717, 1.442695
      %v719 = vpow.pop %v718
      %v720 = vsel %vm574, %v719, 0.0
      %721 = vadd.xlane.f32.xlu0 %v720
      %v722 = vpop.xlane.xlu0 %721
      %v723 = vrcp.pop %v722
      %v724 = vmul.f32 %v719, %v723
      %v725 = vpack.c.bf16 %v724, %v724
      %726 = vrot.lane.b32.xlu0 %v668, 112
      %v727 = vpop.permute.xlu0 %726
      %v729 = vsel %vm574, %v725, 0
      %v732 = vsel %vm610, %v727, 0
      %734 = vmatpush.bf16.msra.mxu0 0
      %735 = vmatpush.bf16.msra.mxu0 0
      %736 = vmatpush.bf16.msra.mxu0 0
      %737 = vmatpush.bf16.msra.mxu0 0
      %738 = vmatpush.bf16.msra.mxu0 0
      %739 = vmatpush.bf16.msra.mxu0 0
      %740 = vmatpush.bf16.msra.mxu0 0
      %741 = vmatpush.bf16.msra.mxu0 %v732
      %742 = vmatmul.bf16.gmra.mxu0 %v729
      %v743 = vpop.f32.mrf.mxu0
      %v744 = vadd.f32 0.0, %v743
      %v745 = vpop.f32.mrf.mxu0
      %746 = vdwg.mxu0
      %747 = vrot.lane.b32.xlu0 %v629, 104
      %v748 = vpop.permute.xlu0 %747
      %749 = vrot.lane.b32.xlu0 %v571, 72
      %v750 = vpop.permute.xlu0 %749
      %v752 = vsel %vm574, %v748, 0
      %v755 = vsel %vm574, %v750, 0
      %757 = vmatpush.bf16.xpose.msra.mxu0 0
      %758 = vmatpush.bf16.xpose.msra.mxu0 0
      %759 = vmatpush.bf16.xpose.msra.mxu0 0
      %760 = vmatpush.bf16.xpose.msra.mxu0 0
      %761 = vmatpush.bf16.xpose.msra.mxu0 0
      %762 = vmatpush.bf16.xpose.msra.mxu0 0
      %763 = vmatpush.bf16.xpose.msra.mxu0 0
      %764 = vmatpush.bf16.xpose.msra.mxu0 %v755
      %765 = vmatmul.bf16.gmra.mxu0 %v752
      %v766 = vpop.f32.mrf.mxu0
      %v767 = vadd.f32 0.0, %v766
      %v768 = vpop.f32.mrf.mxu0
      %769 = vdwg.mxu0
      %v770 = vmul.f32 %v767, 0.35355338
      %v771 = vsel %vm574, %v770, -inf
      %772 = vmax.xlane.f32.xlu0 %v771
      %v773 = vpop.xlane.xlu0 %772
      %v774 = vsub.f32 %v770, %v773
      %v775 = vmul.f32 %v774, 1.442695
      %v776 = vpow.pop %v775
      %v777 = vsel %vm574, %v776, 0.0
      %778 = vadd.xlane.f32.xlu0 %v777
      %v779 = vpop.xlane.xlu0 %778
      %v780 = vrcp.pop %v779
      %v781 = vmul.f32 %v776, %v780
      %v782 = vpack.c.bf16 %v781, %v781
      %783 = vrot.lane.b32.xlu0 %v668, 104
      %v784 = vpop.permute.xlu0 %783
      %v786 = vsel %vm574, %v782, 0
      %v789 = vsel %vm610, %v784, 0
      %791 = vmatpush.bf16.msra.mxu0 0
      %792 = vmatpush.bf16.msra.mxu0 0
      %793 = vmatpush.bf16.msra.mxu0 0
      %794 = vmatpush.bf16.msra.mxu0 0
      %795 = vmatpush.bf16.msra.mxu0 0
      %796 = vmatpush.bf16.msra.mxu0 0
      %797 = vmatpush.bf16.msra.mxu0 0
      %798 = vmatpush.bf16.msra.mxu0 %v789
      %799 = vmatmul.bf16.gmra.mxu0 %v786
      %v800 = vpop.f32.mrf.mxu0
      %v801 = vadd.f32 0.0, %v800
      %v802 = vpop.f32.mrf.mxu0
      %803 = vdwg.mxu0
      %805 = vrot.lane.b32.xlu0 %v687, 8
      %v806 = vpop.permute.xlu0 %805
      %809 = vrot.lane.b32.xlu0 %v744, 16
      %v810 = vpop.permute.xlu0 %809
      %813 = vrot.lane.b32.xlu0 %v801, 24
      %v814 = vpop.permute.xlu0 %813
      %v816 = vsel %vm574, %v624, %v806
      %vm817 = vcmask 130048
      %v818 = vsel %vm817, %v816, %v810
      %vm819 = vcmask 195584
      %v820 = vsel %vm819, %v818, %v814
      %v821 = vpack.c.bf16 %v820, %v820
      %v822 = vperm.slane %v471, 3
      %v827 = vunpack.c.l.b16 %v435
      %v828 = vunpack.c.l.b16 %v436
      %v829 = vunpack.c.l.b16 %v437
      %v830 = vunpack.c.l.b16 %v438
      %v831 = vpack.c.b16 %v828, %v827
      %v832 = vpack.c.b16 %v830, %v829
      %v834 = vsel %vm496, %v821, 0
      %v837 = vsel %vm496, %v831, 0
      %v840 = vsel %vm496, %v832, 0
      %842 = vmatpush.bf16.xpose.msra.mxu0 0
      %843 = vmatpush.bf16.xpose.msra.mxu0 0
      %844 = vmatpush.bf16.xpose.msra.mxu0 0
      %845 = vmatpush.bf16.xpose.msra.mxu0 0
      %846 = vmatpush.bf16.xpose.msra.mxu0 0
      %847 = vmatpush.bf16.xpose.msra.mxu0 0
      %848 = vmatpush.bf16.xpose.msra.mxu0 %v840
      %849 = vmatpush.bf16.xpose.msra.mxu0 %v837
      %850 = vmatmul.bf16.gmra.mxu0 %v834
      %v851 = vpop.f32.mrf.mxu0
      %v852 = vadd.f32 %v822, %v851
      %v853 = vpop.f32.mrf.mxu0
      %854 = vdwg.mxu0
      %v855 = vadd.f32 %v415, %v852
      %v856 = vsel %vm496, %v855, 0.0
      %857 = vadd.xlane.f32.xlu0 %v856
      %v858 = vpop.xlane.xlu0 %857
      %v859 = vrcp.pop 32.0
      %v860 = vmul.f32 32.0, %v859
      %v861 = vsub.f32 1.0, %v860
      %v862 = vmul.f32 %v859, %v861
      %v863 = vadd.f32 %v859, %v862
      %vm864 = vweird.f32 %v859
      %v865 = vsel %vm864, %v859, %v863
      %v866 = vmul.f32 %v858, %v865
      %v867 = vsub.f32 %v855, %v866
      %v868 = vmul.f32 %v867, %v867
      %v869 = vsel %vm496, %v868, 0.0
      %870 = vadd.xlane.f32.xlu0 %v869
      %v871 = vpop.xlane.xlu0 %870
      %v872 = vmul.f32 %v871, %v865
      %v873 = vadd.f32 %v872, 1e-05
      %v874 = vrsqrt.pop %v873
      %v875 = vmul.f32 %v874, %v873
      %v876 = vmul.f32 %v875, %v874
      %v877 = vmul.f32 0.5, %v876
      %v878 = vsub.f32 1.5, %v877
      %v879 = vmul.f32 %v874, %v878
      %vm880 = vweird.f32 %v873
      %vm881 = vweird.f32 %v874
      %vm882 = vmor %vm880, %vm881
      %v883 = vsel %vm882, %v874, %v879
      %v884 = vmul.f32 %v867, %v883
      %v885 = vperm.slane %v472, 0
      %v886 = vmul.f32 %v884, %v885
      %v887 = vperm.slane %v472, 1
      %v888 = vadd.f32 %v886, %v887
      %v889 = vadd.f32 %v888, %v422
      %v890 = vpack.c.bf16 %v889, %v889
      %v891 = vperm.slane %v471, 4
      %v896 = vunpack.c.l.b16 %v439
      %v897 = vunpack.c.l.b16 %v440
      %v898 = vunpack.c.l.b16 %v441
      %v899 = vunpack.c.l.b16 %v442
      %v900 = vpack.c.b16 %v897, %v896
      %v901 = vpack.c.b16 %v899, %v898
      %v903 = vsel %vm496, %v890, 0
      %v906 = vsel %vm496, %v900, 0
      %v909 = vsel %vm496, %v901, 0
      %911 = vmatpush.bf16.xpose.msra.mxu0 0
      %912 = vmatpush.bf16.xpose.msra.mxu0 0
      %913 = vmatpush.bf16.xpose.msra.mxu0 0
      %914 = vmatpush.bf16.xpose.msra.mxu0 0
      %915 = vmatpush.bf16.xpose.msra.mxu0 0
      %916 = vmatpush.bf16.xpose.msra.mxu0 0
      %917 = vmatpush.bf16.xpose.msra.mxu0 %v909
      %918 = vmatpush.bf16.xpose.msra.mxu0 %v906
      %919 = vmatmul.bf16.gmra.mxu0 %v903
      %v920 = vpop.f32.mrf.mxu0
      %v921 = vadd.f32 %v891, %v920
      %v922 = vpop.f32.mrf.mxu0
      %923 = vdwg.mxu0
      %v924 = vadd.f32 %v416, %v419
      %v925 = vadd.f32 %v417, %v420
      %v926 = vadd.f32 %v418, %v421
      %v927 = vpack.c.bf16 %v925, %v924
      %v928 = vpack.c.bf16 %v926, %v926
      %v929 = vperm.slane %v471, 5
      %v934 = vunpack.c.l.b16 %v443
      %v935 = vunpack.c.l.b16 %v444
      %v936 = vunpack.c.l.b16 %v445
      %v937 = vunpack.c.l.b16 %v446
      %v938 = vpack.c.b16 %v935, %v934
      %v939 = vpack.c.b16 %v937, %v936
      %v941 = vsel %vm496, %v927, 0
      %v944 = vsel %vm496, %v928, 0
      %v947 = vsel %vm496, %v938, 0
      %v950 = vsel %vm496, %v939, 0
      %952 = vmatpush.bf16.xpose.msra.mxu0 0
      %953 = vmatpush.bf16.xpose.msra.mxu0 0
      %954 = vmatpush.bf16.xpose.msra.mxu0 0
      %955 = vmatpush.bf16.xpose.msra.mxu0 0
      %956 = vmatpush.bf16.xpose.msra.mxu0 0
      %957 = vmatpush.bf16.xpose.msra.mxu0 0
      %958 = vmatpush.bf16.xpose.msra.mxu0 %v950
      %959 = vmatpush.bf16.xpose.msra.mxu0 %v947
      %960 = vmatmul.bf16.gmra.mxu0 %v941
      %v961 = vpop.f32.mrf.mxu0
      %v962 = vadd.f32 %v929, %v961
      %v963 = vpop.f32.mrf.mxu0
      %v964 = vadd.f32 %v929, %v963
      %965 = vmatmul.bf16.gmra.mxu0 %v944
      %v966 = vpop.f32.mrf.mxu0
      %v967 = vadd.f32 %v929, %v966
      %v968 = vpop.f32.mrf.mxu0
      %969 = vdwg.mxu0
      %v970 = vpack.c.bf16 %v417, %v416
      %v971 = vpack.c.bf16 %v418, %v418
      %v972 = vperm.slane %v471, 6
      %v977 = vunpack.c.l.b16 %v447
      %v978 = vunpack.c.l.b16 %v448
      %v979 = vunpack.c.l.b16 %v449
      %v980 = vunpack.c.l.b16 %v450
      %v981 = vpack.c.b16 %v978, %v977
      %v982 = vpack.c.b16 %v980, %v979
      %v984 = vsel %vm496, %v970, 0
      %v987 = vsel %vm496, %v971, 0
      %v990 = vsel %vm496, %v981, 0
      %v993 = vsel %vm496, %v982, 0
      %995 = vmatpush.bf16.xpose.msra.mxu0 0
      %996 = vmatpush.bf16.xpose.msra.mxu0 0
      %997 = vmatpush.bf16.xpose.msra.mxu0 0
      %998 = vmatpush.bf16.xpose.msra.mxu0 0
      %999 = vmatpush.bf16.xpose.msra.mxu0 0
      %1000 = vmatpush.bf16.xpose.msra.mxu0 0
      %1001 = vmatpush.bf16.xpose.msra.mxu0 %v993
      %1002 = vmatpush.bf16.xpose.msra.mxu0 %v990
      %1003 = vmatmul.bf16.gmra.mxu0 %v984
      %v1004 = vpop.f32.mrf.mxu0
      %v1005 = vadd.f32 %v972, %v1004
      %v1006 = vpop.f32.mrf.mxu0
      %v1007 = vadd.f32 %v972, %v1006
      %1008 = vmatmul.bf16.gmra.mxu0 %v987
      %v1009 = vpop.f32.mrf.mxu0
      %v1010 = vadd.f32 %v972, %v1009
      %v1011 = vpop.f32.mrf.mxu0
      %1012 = vdwg.mxu0
      %v1013 = vpack.c.bf16 %v921, %v921
      %v1014 = vpack.c.bf16 %v962, %v962
      %v1015 = vpack.c.bf16 %v964, %v964
      %v1016 = vpack.c.bf16 %v967, %v967
      %v1017 = vpack.c.bf16 %v1005, %v1005
      %v1018 = vpack.c.bf16 %v1007, %v1007
      %v1019 = vpack.c.bf16 %v1010, %v1010
      %v1023 = vunpack.c.l.b16 %v1014
      %v1024 = vunpack.c.l.b16 %v1015
      %v1025 = vunpack.c.l.b16 %v1016
      %v1026 = vpack.c.b16 %v1024, %v1023
      %v1027 = vpack.c.b16 %v1025, %v1025
      %v1029 = vsel %vm574, %v1013, 0
      %v1032 = vsel %vm574, %v1026, 0
      %v1035 = vsel %vm574, %v1027, 0
      %1037 = vmatpush.bf16.xpose.msra.mxu0 0
      %1038 = vmatpush.bf16.xpose.msra.mxu0 0
      %1039 = vmatpush.bf16.xpose.msra.mxu0 0
      %1040 = vmatpush.bf16.xpose.msra.mxu0 0
      %1041 = vmatpush.bf16.xpose.msra.mxu0 0
      %1042 = vmatpush.bf16.xpose.msra.mxu0 0
      %1043 = vmatpush.bf16.xpose.msra.mxu0 %v1035
      %1044 = vmatpush.bf16.xpose.msra.mxu0 %v1032
      %1045 = vmatmul.bf16.gmra.mxu0 %v1029
      %v1046 = vpop.f32.mrf.mxu0
      %v1047 = vadd.f32 0.0, %v1046
      %v1048 = vpop.f32.mrf.mxu0
      %1049 = vdwg.mxu0
      %v1050 = vmul.f32 %v1047, 0.35355338
      %vm1051 = vcmask 146432
      %v1052 = vsel %vm1051, %v1050, -inf
      %1053 = vmax.xlane.f32.xlu0 %v1052
      %v1054 = vpop.xlane.xlu0 %1053
      %v1055 = vsub.f32 %v1050, %v1054
      %v1056 = vmul.f32 %v1055, 1.442695
      %v1057 = vpow.pop %v1056
      %v1058 = vsel %vm1051, %v1057, 0.0
      %1059 = vadd.xlane.f32.xlu0 %v1058
      %v1060 = vpop.xlane.xlu0 %1059
      %v1061 = vrcp.pop %v1060
      %v1062 = vmul.f32 %v1057, %v1061
      %v1063 = vpack.c.bf16 %v1062, %v1062
      %v1067 = vunpack.c.l.b16 %v1017
      %v1068 = vunpack.c.l.b16 %v1018
      %v1069 = vunpack.c.l.b16 %v1019
      %v1070 = vpack.c.b16 %v1068, %v1067
      %v1071 = vpack.c.b16 %v1069, %v1069
      %v1074 = vsel %vm1051, %v1063, 0
      %vm1076 = vcmask 1040384
      %v1078 = vsel %vm1076, %v1071, 0
      %1080 = vmatpush.bf16.msra.mxu0 0
      %1081 = vmatpush.bf16.msra.mxu0 0
      %1082 = vmatpush.bf16.msra.mxu0 0
      %1083 = vmatpush.bf16.msra.mxu0 0
      %1084 = vmatpush.bf16.msra.mxu0 0
      %1085 = vmatpush.bf16.msra.mxu0 0
      %1086 = vmatpush.bf16.msra.mxu0 %v1078
      %1087 = vmatpush.bf16.msra.mxu0 %v1070
      %1088 = vmatmul.bf16.gmra.mxu0 %v1074
      %v1089 = vpop.f32.mrf.mxu0
      %v1090 = vadd.f32 0.0, %v1089
      %v1091 = vpop.f32.mrf.mxu0
      %1092 = vdwg.mxu0
      %v1094 = vunpack.c.l.b16 %v1013
      %v1095 = vpack.c.b16 %v1094, %v1094
      %1096 = vrot.lane.b32.xlu0 %v1095, 120
      %v1097 = vpop.permute.xlu0 %1096
      %1098 = vrot.lane.b32.xlu0 %v1026, 120
      %v1099 = vpop.permute.xlu0 %1098
      %1100 = vrot.lane.b32.xlu0 %v1027, 120
      %v1101 = vpop.permute.xlu0 %1100
      %v1103 = vsel %vm574, %v1097, 0
      %v1106 = vsel %vm574, %v1099, 0
      %v1109 = vsel %vm574, %v1101, 0
      %1111 = vmatpush.bf16.xpose.msra.mxu0 0
      %1112 = vmatpush.bf16.xpose.msra.mxu0 0
      %1113 = vmatpush.bf16.xpose.msra.mxu0 0
      %1114 = vmatpush.bf16.xpose.msra.mxu0 0
      %1115 = vmatpush.bf16.xpose.msra.mxu0 0
      %1116 = vmatpush.bf16.xpose.msra.mxu0 0
      %1117 = vmatpush.bf16.xpose.msra.mxu0 %v1109
      %1118 = vmatpush.bf16.xpose.msra.mxu0 %v1106
      %1119 = vmatmul.bf16.gmra.mxu0 %v1103
      %v1120 = vpop.f32.mrf.mxu0
      %v1121 = vadd.f32 0.0, %v1120
      %v1122 = vpop.f32.mrf.mxu0
      %1123 = vdwg.mxu0
      %v1124 = vmul.f32 %v1121, 0.35355338
      %v1125 = vsel %vm1051, %v1124, -inf
      %1126 = vmax.xlane.f32.xlu0 %v1125
      %v1127 = vpop.xlane.xlu0 %1126
      %v1128 = vsub.f32 %v1124, %v1127
      %v1129 = vmul.f32 %v1128, 1.442695
      %v1130 = vpow.pop %v1129
      %v1131 = vsel %vm1051, %v1130, 0.0
      %1132 = vadd.xlane.f32.xlu0 %v1131
      %v1133 = vpop.xlane.xlu0 %1132
      %v1134 = vrcp.pop %v1133
      %v1135 = vmul.f32 %v1130, %v1134
      %v1136 = vpack.c.bf16 %v1135, %v1135
      %1137 = vrot.lane.b32.xlu0 %v1070, 120
      %v1138 = vpop.permute.xlu0 %1137
      %1139 = vrot.lane.b32.xlu0 %v1071, 120
      %v1140 = vpop.permute.xlu0 %1139
      %v1143 = vsel %vm1051, %v1136, 0
      %v1146 = vsel %vm1076, %v1140, 0
      %1148 = vmatpush.bf16.msra.mxu0 0
      %1149 = vmatpush.bf16.msra.mxu0 0
      %1150 = vmatpush.bf16.msra.mxu0 0
      %1151 = vmatpush.bf16.msra.mxu0 0
      %1152 = vmatpush.bf16.msra.mxu0 0
      %1153 = vmatpush.bf16.msra.mxu0 0
      %1154 = vmatpush.bf16.msra.mxu0 %v1146
      %1155 = vmatpush.bf16.msra.mxu0 %v1138
      %1156 = vmatmul.bf16.gmra.mxu0 %v1143
      %v1157 = vpop.f32.mrf.mxu0
      %v1158 = vadd.f32 0.0, %v1157
      %v1159 = vpop.f32.mrf.mxu0
      %1160 = vdwg.mxu0
      %1161 = vrot.lane.b32.xlu0 %v1095, 112
      %v1162 = vpop.permute.xlu0 %1161
      %1163 = vrot.lane.b32.xlu0 %v1026, 112
      %v1164 = vpop.permute.xlu0 %1163
      %1165 = vrot.lane.b32.xlu0 %v1027, 112
      %v1166 = vpop.permute.xlu0 %1165
      %v1168 = vsel %vm574, %v1162, 0
      %v1171 = vsel %vm574, %v1164, 0
      %v1174 = vsel %vm574, %v1166, 0
      %1176 = vmatpush.bf16.xpose.msra.mxu0 0
      %1177 = vmatpush.bf16.xpose.msra.mxu0 0
      %1178 = vmatpush.bf16.xpose.msra.mxu0 0
      %1179 = vmatpush.bf16.xpose.msra.mxu0 0
      %1180 = vmatpush.bf16.xpose.msra.mxu0 0
      %1181 = vmatpush.bf16.xpose.msra.mxu0 0
      %1182 = vmatpush.bf16.xpose.msra.mxu0 %v1174
      %1183 = vmatpush.bf16.xpose.msra.mxu0 %v1171
      %1184 = vmatmul.bf16.gmra.mxu0 %v1168
      %v1185 = vpop.f32.mrf.mxu0
      %v1186 = vadd.f32 0.0, %v1185
      %v1187 = vpop.f32.mrf.mxu0
      %1188 = vdwg.mxu0
      %v1189 = vmul.f32 %v1186, 0.35355338
      %v1190 = vsel %vm1051, %v1189, -inf
      %1191 = vmax.xlane.f32.xlu0 %v1190
      %v1192 = vpop.xlane.xlu0 %1191
      %v1193 = vsub.f32 %v1189, %v1192
      %v1194 = vmul.f32 %v1193, 1.442695
      %v1195 = vpow.pop %v1194
      %v1196 = vsel %vm1051, %v1195, 0.0
      %1197 = vadd.xlane.f32.xlu0 %v1196
      %v1198 = vpop.xlane.xlu0 %1197
      %v1199 = vrcp.pop %v1198
      %v1200 = vmul.f32 %v1195, %v1199
      %v1201 = vpack.c.bf16 %v1200, %v1200
      %1202 = vrot.lane.b32.xlu0 %v1070, 112
      %v1203 = vpop.permute.xlu0 %1202
      %1204 = vrot.lane.b32.xlu0 %v1071, 112
      %v1205 = vpop.permute.xlu0 %1204
      %v1208 = vsel %vm1051, %v1201, 0
      %v1211 = vsel %vm1076, %v1205, 0
      %1213 = vmatpush.bf16.msra.mxu0 0
      %1214 = vmatpush.bf16.msra.mxu0 0
      %1215 = vmatpush.bf16.msra.mxu0 0
      %1216 = vmatpush.bf16.msra.mxu0 0
      %1217 = vmatpush.bf16.msra.mxu0 0
      %1218 = vmatpush.bf16.msra.mxu0 0
      %1219 = vmatpush.bf16.msra.mxu0 %v1211
      %1220 = vmatpush.bf16.msra.mxu0 %v1203
      %1221 = vmatmul.bf16.gmra.mxu0 %v1208
      %v1222 = vpop.f32.mrf.mxu0
      %v1223 = vadd.f32 0.0, %v1222
      %v1224 = vpop.f32.mrf.mxu0
      %1225 = vdwg.mxu0
      %1226 = vrot.lane.b32.xlu0 %v1095, 104
      %v1227 = vpop.permute.xlu0 %1226
      %1228 = vrot.lane.b32.xlu0 %v1026, 104
      %v1229 = vpop.permute.xlu0 %1228
      %1230 = vrot.lane.b32.xlu0 %v1027, 104
      %v1231 = vpop.permute.xlu0 %1230
      %v1233 = vsel %vm574, %v1227, 0
      %v1236 = vsel %vm574, %v1229, 0
      %v1239 = vsel %vm574, %v1231, 0
      %1241 = vmatpush.bf16.xpose.msra.mxu0 0
      %1242 = vmatpush.bf16.xpose.msra.mxu0 0
      %1243 = vmatpush.bf16.xpose.msra.mxu0 0
      %1244 = vmatpush.bf16.xpose.msra.mxu0 0
      %1245 = vmatpush.bf16.xpose.msra.mxu0 0
      %1246 = vmatpush.bf16.xpose.msra.mxu0 0
      %1247 = vmatpush.bf16.xpose.msra.mxu0 %v1239
      %1248 = vmatpush.bf16.xpose.msra.mxu0 %v1236
      %1249 = vmatmul.bf16.gmra.mxu0 %v1233
      %v1250 = vpop.f32.mrf.mxu0
      %v1251 = vadd.f32 0.0, %v1250
      %v1252 = vpop.f32.mrf.mxu0
      %1253 = vdwg.mxu0
      %v1254 = vmul.f32 %v1251, 0.35355338
      %v1255 = vsel %vm1051, %v1254, -inf
      %1256 = vmax.xlane.f32.xlu0 %v1255
      %v1257 = vpop.xlane.xlu0 %1256
      %v1258 = vsub.f32 %v1254, %v1257
      %v1259 = vmul.f32 %v1258, 1.442695
      %v1260 = vpow.pop %v1259
      %v1261 = vsel %vm1051, %v1260, 0.0
      %1262 = vadd.xlane.f32.xlu0 %v1261
      %v1263 = vpop.xlane.xlu0 %1262
      %v1264 = vrcp.pop %v1263
      %v1265 = vmul.f32 %v1260, %v1264
      %v1266 = vpack.c.bf16 %v1265, %v1265
      %1267 = vrot.lane.b32.xlu0 %v1070, 104
      %v1268 = vpop.permute.xlu0 %1267
      %1269 = vrot.lane.b32.xlu0 %v1071, 104
      %v1270 = vpop.permute.xlu0 %1269
      %v1273 = vsel %vm1051, %v1266, 0
      %v1276 = vsel %vm1076, %v1270, 0
      %1278 = vmatpush.bf16.msra.mxu0 0
      %1279 = vmatpush.bf16.msra.mxu0 0
      %1280 = vmatpush.bf16.msra.mxu0 0
      %1281 = vmatpush.bf16.msra.mxu0 0
      %1282 = vmatpush.bf16.msra.mxu0 0
      %1283 = vmatpush.bf16.msra.mxu0 0
      %1284 = vmatpush.bf16.msra.mxu0 %v1276
      %1285 = vmatpush.bf16.msra.mxu0 %v1268
      %1286 = vmatmul.bf16.gmra.mxu0 %v1273
      %v1287 = vpop.f32.mrf.mxu0
      %v1288 = vadd.f32 0.0, %v1287
      %v1289 = vpop.f32.mrf.mxu0
      %1290 = vdwg.mxu0
      %1292 = vrot.lane.b32.xlu0 %v1158, 8
      %v1293 = vpop.permute.xlu0 %1292
      %1296 = vrot.lane.b32.xlu0 %v1223, 16
      %v1297 = vpop.permute.xlu0 %1296
      %1300 = vrot.lane.b32.xlu0 %v1288, 24
      %v1301 = vpop.permute.xlu0 %1300
      %v1303 = vsel %vm574, %v1090, %v1293
      %v1304 = vsel %vm817, %v1303, %v1297
      %v1305 = vsel %vm819, %v1304, %v1301
      %v1306 = vpack.c.bf16 %v1305, %v1305
      %v1307 = vperm.slane %v471, 7
      %v1312 = vunpack.c.l.b16 %v451
      %v1313 = vunpack.c.l.b16 %v452
      %v1314 = vunpack.c.l.b16 %v453
      %v1315 = vunpack.c.l.b16 %v454
      %v1316 = vpack.c.b16 %v1313, %v1312
      %v1317 = vpack.c.b16 %v1315, %v1314
      %v1319 = vsel %vm496, %v1306, 0
      %v1322 = vsel %vm496, %v1316, 0
      %v1325 = vsel %vm496, %v1317, 0
      %1327 = vmatpush.bf16.xpose.msra.mxu0 0
      %1328 = vmatpush.bf16.xpose.msra.mxu0 0
      %1329 = vmatpush.bf16.xpose.msra.mxu0 0
      %1330 = vmatpush.bf16.xpose.msra.mxu0 0
      %1331 = vmatpush.bf16.xpose.msra.mxu0 0
      %1332 = vmatpush.bf16.xpose.msra.mxu0 0
      %1333 = vmatpush.bf16.xpose.msra.mxu0 %v1325
      %1334 = vmatpush.bf16.xpose.msra.mxu0 %v1322
      %1335 = vmatmul.bf16.gmra.mxu0 %v1319
      %v1336 = vpop.f32.mrf.mxu0
      %v1337 = vadd.f32 %v1307, %v1336
      %v1338 = vpop.f32.mrf.mxu0
      %1339 = vdwg.mxu0
      %v1340 = vadd.f32 %v888, %v1337
      %v1341 = vsel %vm496, %v1340, 0.0
      %1342 = vadd.xlane.f32.xlu0 %v1341
      %v1343 = vpop.xlane.xlu0 %1342
      %v1344 = vmul.f32 %v1343, %v865
      %v1345 = vsub.f32 %v1340, %v1344
      %v1346 = vmul.f32 %v1345, %v1345
      %v1347 = vsel %vm496, %v1346, 0.0
      %1348 = vadd.xlane.f32.xlu0 %v1347
      %v1349 = vpop.xlane.xlu0 %1348
      %v1350 = vmul.f32 %v1349, %v865
      %v1351 = vadd.f32 %v1350, 1e-05
      %v1352 = vrsqrt.pop %v1351
      %v1353 = vmul.f32 %v1352, %v1351
      %v1354 = vmul.f32 %v1353, %v1352
      %v1355 = vmul.f32 0.5, %v1354
      %v1356 = vsub.f32 1.5, %v1355
      %v1357 = vmul.f32 %v1352, %v1356
      %vm1358 = vweird.f32 %v1351
      %vm1359 = vweird.f32 %v1352
      %vm1360 = vmor %vm1358, %vm1359
      %v1361 = vsel %vm1360, %v1352, %v1357
      %v1362 = vmul.f32 %v1345, %v1361
      %v1363 = vperm.slane %v472, 2
      %v1364 = vmul.f32 %v1362, %v1363
      %v1365 = vperm.slane %v472, 3
      %v1366 = vadd.f32 %v1364, %v1365
      %v1367 = vpack.c.bf16 %v1366, %v1366
      %v1368 = vld [vmem:[%s402] sm:$0x1]
      %v1370 = vperm.slane %v1368, 0
      %v1380 = vunpack.c.l.b16 %v455
      %v1381 = vunpack.c.l.b16 %v456
      %v1382 = vunpack.c.l.b16 %v457
      %v1383 = vunpack.c.l.b16 %v458
      %v1384 = vunpack.c.l.b16 %v459
      %v1385 = vunpack.c.l.b16 %v460
      %v1386 = vunpack.c.l.b16 %v461
      %v1387 = vunpack.c.l.b16 %v462
      %v1388 = vpack.c.b16 %v1381, %v1380
      %v1389 = vpack.c.b16 %v1383, %v1382
      %v1390 = vpack.c.b16 %v1385, %v1384
      %v1391 = vpack.c.b16 %v1387, %v1386
      %v1393 = vsel %vm496, %v1367, 0
      %v1396 = vsel %vm496, %v1388, 0
      %v1399 = vsel %vm496, %v1389, 0
      %v1402 = vsel %vm496, %v1390, 0
      %v1405 = vsel %vm496, %v1391, 0
      %1407 = vmatpush.bf16.xpose.msra.mxu0 0
      %1408 = vmatpush.bf16.xpose.msra.mxu0 0
      %1409 = vmatpush.bf16.xpose.msra.mxu0 0
      %1410 = vmatpush.bf16.xpose.msra.mxu0 0
      %1411 = vmatpush.bf16.xpose.msra.mxu0 %v1405
      %1412 = vmatpush.bf16.xpose.msra.mxu0 %v1402
      %1413 = vmatpush.bf16.xpose.msra.mxu0 %v1399
      %1414 = vmatpush.bf16.xpose.msra.mxu0 %v1396
      %1415 = vmatmul.bf16.gmra.mxu0 %v1393
      %v1416 = vpop.f32.mrf.mxu0
      %v1417 = vadd.f32 %v1370, %v1416
      %v1418 = vpop.f32.mrf.mxu0
      %1419 = vdwg.mxu0
      %v1420 = vmax.f32 %v1417, 0.0
      %v1421 = vpack.c.bf16 %v1420, %v1420
      %v1422 = vperm.slane %v472, 6
      %v1431 = vunpack.c.l.b16 %v463
      %v1432 = vunpack.c.l.b16 %v464
      %v1433 = vunpack.c.l.b16 %v465
      %v1434 = vunpack.c.l.b16 %v466
      %v1435 = vunpack.c.l.b16 %v467
      %v1436 = vunpack.c.l.b16 %v468
      %v1437 = vunpack.c.l.b16 %v469
      %v1438 = vunpack.c.l.b16 %v470
      %v1439 = vpack.c.b16 %v1432, %v1431
      %v1440 = vpack.c.b16 %v1434, %v1433
      %v1441 = vpack.c.b16 %v1436, %v1435
      %v1442 = vpack.c.b16 %v1438, %v1437
      %vm1447 = vcmask 523264
      %v1449 = vsel %vm1447, %v1421, 0
      %1451 = vmatpush.bf16.msra.mxu0 0
      %1452 = vmatpush.bf16.msra.mxu0 0
      %1453 = vmatpush.bf16.msra.mxu0 0
      %1454 = vmatpush.bf16.msra.mxu0 0
      %1455 = vmatpush.bf16.msra.mxu0 %v1442
      %1456 = vmatpush.bf16.msra.mxu0 %v1441
      %1457 = vmatpush.bf16.msra.mxu0 %v1440
      %1458 = vmatpush.bf16.msra.mxu0 %v1439
      %1459 = vmatmul.bf16.gmra.mxu0 %v1449
      %v1460 = vpop.f32.mrf.mxu0
      %v1461 = vadd.f32 %v1422, %v1460
      %v1462 = vpop.f32.mrf.mxu0
      %1463 = vdwg.mxu0
      %v1464 = vadd.f32 %v1366, %v1461
      %v1465 = vsel %vm496, %v1464, 0.0
      %1466 = vadd.xlane.f32.xlu0 %v1465
      %v1467 = vpop.xlane.xlu0 %1466
      %v1468 = vmul.f32 %v1467, %v865
      %v1469 = vsub.f32 %v1464, %v1468
      %v1470 = vmul.f32 %v1469, %v1469
      %v1471 = vsel %vm496, %v1470, 0.0
      %1472 = vadd.xlane.f32.xlu0 %v1471
      %v1473 = vpop.xlane.xlu0 %1472
      %v1474 = vmul.f32 %v1473, %v865
      %v1475 = vadd.f32 %v1474, 1e-05
      %v1476 = vrsqrt.pop %v1475
      %v1477 = vmul.f32 %v1476, %v1475
      %v1478 = vmul.f32 %v1477, %v1476
      %v1479 = vmul.f32 0.5, %v1478
      %v1480 = vsub.f32 1.5, %v1479
      %v1481 = vmul.f32 %v1476, %v1480
      %vm1482 = vweird.f32 %v1475
      %vm1483 = vweird.f32 %v1476
      %vm1484 = vmor %vm1482, %vm1483
      %v1485 = vsel %vm1484, %v1476, %v1481
      %v1486 = vmul.f32 %v1469, %v1485
      %v1487 = vperm.slane %v472, 4
      %v1488 = vmul.f32 %v1486, %v1487
      %v1489 = vperm.slane %v472, 5
      %v1490 = vadd.f32 %v1488, %v1489
      %1491 = vst.msk [vmem:[%s406] sm:$0xff] %vm496, %v1490
      %p1492 = scmp.lt.s32.totalorder %s23, 1
      %s1493 = scalar_select %p1492, %s23, 1
      %s1494 = smul.addr %s1493, 8
      %s1495 = scalar_lea.vmem %s8, %s1494
      // Predicated region
      $region57: #{act_forward.9} parent=51 // pred_check
        %p1496 = pneg %p247
      $region58: #{act_forward.9} parent=51 // pred_check_branch
        %1498 = sbr.rel (%p1496) target = $region60
      $region59: #{act_forward.9} parent=51 // pred_region
        _
      $region60: #{act_forward.9} parent=51 // pred_fallthru
        _
    $region52: #{act_forward.9} parent=5 // pred_fallthru
      _
    %p1499 = scmp.le.s32.totalorder 2, %s14
    // Predicated region
    $region61: #{act_forward.9} parent=5 // pred_check
      %p1500 = pneg %p1499
    $region62: #{act_forward.9} parent=5 // pred_check_branch
      %1502 = sbr.rel (%p1500) target = $region64
    $region63: #{act_forward.9} parent=5 // pred_region
      %s1503 = ssub.s32 %s14, 2
      // Predicated region
      $region65: #{act_forward.9} parent=63 // pred_check
        %p1504 = pneg %p253
      $region66: #{act_forward.9} parent=63 // pred_check_branch
        %1506 = sbr.rel (%p1504) target = $region68
      $region67: #{act_forward.9} parent=63 // pred_region
        %p1507 = scmp.lt.s32.totalorder %s25, 1
        %s1508 = scalar_select %p1507, %s25, 1
        %s1509 = smul.addr %s1508, 8
        %s1510 = scalar_lea.vmem %s8, %s1509
      $region68: #{act_forward.9} parent=63 // pred_fallthru
        _
    $region64: #{act_forward.9} parent=5 // pred_fallthru
      _
  $region6: #{act_forward.9} parent=0 // loop_footer
    %s18 = sadd.s32 1, %s14
  $region7: #{act_forward.9} parent=0 // loop_footer_branch
    %13 = sbr.rel target = $region3
  $region8: #{act_forward.9} parent=0 // loop_exit
    _

</llo_original>
